<compile_context>
chip_gen: v5e
topology: v5e:2x2
jax: 0.10.0
libtpu: 0.0.40
codegen_flags: <defaults>
</compile_context>

<pallas_src>
import math
import numpy as np

import jax
import jax.numpy as jnp
from jax import lax
from jax.experimental import pallas as pl
from jax.experimental.pallas import tpu as pltpu


SCAN_UNROLL = 8  # timesteps per fori_loop iteration (L_chunk must be a multiple of 8)


# ---------------------------------------------------------------------------
# numerically explicit helpers (same definitions used in kernel & reference)
# ---------------------------------------------------------------------------
def _sigmoid(x):
    return 1.0 / (1.0 + jnp.exp(-x))


def _softplus(x):
    # matches F.softplus with threshold=20 (log(1+exp) kept; proven lowering)
    return jnp.where(x > 20.0, x, jnp.log(1.0 + jnp.exp(jnp.minimum(x, 20.0))))


# ---------------------------------------------------------------------------
# Pallas kernel: one (batch row, L-chunk) per grid step
# ---------------------------------------------------------------------------
def mamba_kernel(h_ref, w_in_ref, w_conv_ref, b_conv_ref, w_x_ref, w_dt_ref,
                 b_dt_ref, a_ref, d_ref, w_out_ref, out_ref,
                 state_scr, conv_scr, delta_scr, bc_scr, y_scr):
    f32 = jnp.float32
    bf16 = jnp.bfloat16
    Lc = h_ref.shape[1]
    d_inner = d_ref.shape[1]
    d_state = a_ref.shape[0]
    d_conv = w_conv_ref.shape[0]
    dt_rank = w_dt_ref.shape[0]
    PAD = conv_scr.shape[0] - Lc              # sublane-aligned room for the conv history
    U = SCAN_UNROLL

    # ---- first chunk of each batch row: reset SSM state & conv history ---------
    # (relies on the chunk axis being "arbitrary"/sequential; see module comment)
    @pl.when(pl.program_id(1) == 0)
    def _():
        state_scr[...] = jnp.zeros_like(state_scr)
        if PAD:
            conv_scr[pl.ds(0, PAD), :] = jnp.zeros((PAD, d_inner), f32)

    # ---- fused in_proj (bf16 MXU, f32 accumulate) -------------------------------
    h = h_ref[0]                                                    # (Lc, d_model) bf16
    xz = jnp.dot(h, w_in_ref[...], preferred_element_type=f32)
    x = xz[:, :d_inner]                                             # conv/scan branch
    z = xz[:, d_inner:]                                             # gate branch

    # ---- causal depthwise conv via the padded conv scratch (no concat copies) ---
    conv_scr[pl.ds(PAD, Lc), :] = x
    conv = jnp.zeros((Lc, d_inner), f32)
    for k in range(d_conv):                                         # static taps
        conv = conv + (conv_scr[pl.ds(PAD - (d_conv - 1) + k, Lc), :]
                       * w_conv_ref[pl.ds(k, 1), :])
    conv = conv + b_conv_ref[...]
    if d_conv > 1:
        # pre-conv tail becomes next chunk's history (before xc overwrites the body)
        tail = conv_scr[pl.ds(PAD + Lc - (d_conv - 1), d_conv - 1), :]
        conv_scr[pl.ds(PAD - (d_conv - 1), d_conv - 1), :] = tail
    xc = conv * _sigmoid(conv)                                      # SiLU, (Lc, d_inner)
    conv_scr[pl.ds(PAD, Lc), :] = xc                                # scan reads xc rows here

    # ---- fused x_proj -> [dt | B | C] (N zero-padded to 128), then dt_proj ------
    dbl = jnp.dot(xc.astype(bf16), w_x_ref[...], preferred_element_type=f32)
    dt_in = dbl[:, :dt_rank]                                        # (Lc, dt_rank)
    delta = _softplus(jnp.dot(dt_in.astype(bf16), w_dt_ref[...],
                              preferred_element_type=f32) + b_dt_ref[...])
    delta_scr[...] = delta                                          # (Lc, d_inner)
    bc_scr[...] = dbl[:, dt_rank:dt_rank + 2 * d_state]             # packed [B | C]

    # masks that turn one packed (1, 2*d_state) row into (d_state, 1) B / C columns
    rowi = lax.broadcasted_iota(jnp.int32, (d_state, 2 * d_state), 0)
    coli = lax.broadcasted_iota(jnp.int32, (d_state, 2 * d_state), 1)
    mask_b = (coli == rowi).astype(f32)
    mask_c = (coli == rowi + d_state).astype(f32)

    a = a_ref[...]                                                  # (d_state, d_inner)
    d_row = d_ref[...]                                              # (1, d_inner)

    # ---- selective scan: U timesteps per iteration, coalesced y store -----------
    def block(i, st):
        l0 = pl.multiple_of(i * U, U)
        rows = []
        for r in range(U):                                          # static 8-step unroll
            l = l0 + r
            dl = delta_scr[pl.ds(l, 1), :]                          # (1, d_inner)
            ul = conv_scr[pl.ds(PAD + l, 1), :]                     # xc row, (1, d_inner)
            bc = bc_scr[pl.ds(l, 1), :]                             # (1, 2*d_state)
            bc_b = jnp.broadcast_to(bc, (d_state, 2 * d_state))
            bcol = jnp.sum(bc_b * mask_b, axis=1, keepdims=True)    # (d_state, 1)
            ccol = jnp.sum(bc_b * mask_c, axis=1, keepdims=True)    # (d_state, 1)
            dA = jnp.exp(a * dl)                                    # (d_state, d_inner)
            st = st * dA + bcol * (dl * ul)                         # recurrence
            rows.append(jnp.sum(ccol * st, axis=0, keepdims=True) + d_row * ul)
        y_scr[pl.ds(l0, U), :] = jnp.concatenate(rows, axis=0)      # one aligned store
        return st

    st = lax.fori_loop(0, Lc // U, block, state_scr[...])
    state_scr[...] = st                                             # carry to next chunk

    # ---- gate (silu(z)), out_proj (bf16 MXU) -------------------------------------
    y = y_scr[...] * (z * _sigmoid(z))
    out = jnp.dot(y.astype(bf16), w_out_ref[...], preferred_element_type=f32)
    out_ref[0] = out.astype(out_ref.dtype)


# ---------------------------------------------------------------------------
# wrapper: weight plumbing + pallas_call
# ---------------------------------------------------------------------------
def mamba_pallas(h, p, L_chunk=None, vmem_limit_bytes=64 * 1024 * 1024):
    B, L, d_model = h.shape
    d_inner = p["D"].shape[0]
    d_state = p["A_log"].shape[1]
    d_conv = p["conv_w"].shape[1]
    dt_rank = p["dt_w"].shape[1]

    if L_chunk is None:
        L_chunk = L if L <= 512 else 512
    assert L % L_chunk == 0, "L must be a multiple of L_chunk"
    assert L_chunk % SCAN_UNROLL == 0, "L_chunk must be a multiple of 8"
    assert L_chunk >= d_conv - 1, "L_chunk must cover the conv receptive carry"
    nL = L // L_chunk
    PAD = 8 * ((d_conv - 1 + 7) // 8) if d_conv > 1 else 0

    f32, bf16 = jnp.float32, jnp.bfloat16

    # activations travel as bf16 (matmuls already run bf16 with f32 accumulation)
    h_bf = h.astype(bf16)

    n_x = dt_rank + 2 * d_state
    n_x_pad = ((n_x + 127) // 128) * 128                 # lane-dense x_proj N dimension

    w_in = p["in_w"].T.astype(bf16)                      # (d_model, 2*d_inner)  [x | z]
    w_conv = p["conv_w"].T.astype(f32)                   # (d_conv, d_inner)
    b_conv = p["conv_b"][None, :].astype(f32)            # (1, d_inner)
    w_x = jnp.zeros((d_inner, n_x_pad), bf16).at[:, :n_x].set(p["x_w"].T.astype(bf16))
    w_dt = p["dt_w"].T.astype(bf16)                      # (dt_rank, d_inner)
    b_dt = p["dt_b"][None, :].astype(f32)                # (1, d_inner)
    A_t = (-jnp.exp(p["A_log"])).T.astype(f32)           # (d_state, d_inner)
    D_row = p["D"][None, :].astype(f32)                  # (1, d_inner)
    w_out = p["out_w"].T.astype(bf16)                    # (d_inner, d_model)

    args = (h_bf, w_in, w_conv, b_conv, w_x, w_dt, b_dt, A_t, D_row, w_out)

    def _call(single_buffer_weights):
        def wspec(arr):  # replicated (grid-invariant) weight block
            n = arr.ndim
            idx = lambda b, c, n=n: (0,) * n
            if single_buffer_weights:
                # constant index_map -> no need to double-buffer the weight tiles
                return pl.BlockSpec(arr.shape, idx, pipeline_mode=pl.Buffered(1))
            return pl.BlockSpec(arr.shape, idx)

        grid_spec = pltpu.PrefetchScalarGridSpec(
            num_scalar_prefetch=0,
            grid=(B, nL),
            in_specs=[
                pl.BlockSpec((1, L_chunk, d_model), lambda b, c: (b, c, 0)),
                wspec(w_in), wspec(w_conv), wspec(b_conv), wspec(w_x),
                wspec(w_dt), wspec(b_dt), wspec(A_t), wspec(D_row), wspec(w_out),
            ],
            out_specs=pl.BlockSpec((1, L_chunk, d_model), lambda b, c: (b, c, 0)),
            scratch_shapes=[
                pltpu.VMEM((d_state, d_inner), f32),         # SSM state (carried over chunks)
                pltpu.VMEM((PAD + L_chunk, d_inner), f32),   # conv history + x / xc body
                pltpu.VMEM((L_chunk, d_inner), f32),         # delta
                pltpu.VMEM((L_chunk, 2 * d_state), f32),     # packed [B | C]
                pltpu.VMEM((L_chunk, d_inner), f32),         # y
            ],
        )
        return pl.pallas_call(
            mamba_kernel,
            out_shape=jax.ShapeDtypeStruct((B, L, d_model), h.dtype),
            grid_spec=grid_spec,
            compiler_params=pltpu.CompilerParams(
                # chunk axis MUST stay "arbitrary": state/conv carry lives in scratch.
                dimension_semantics=("parallel", "arbitrary"),
                vmem_limit_bytes=vmem_limit_bytes),
        )(*args)

    try:
        return _call(True)
    except Exception:
        # pl.Buffered(1) (single-buffered weights) not accepted by this jax/Mosaic
        # version -> fall back to default double-buffered weight specs.
        return _call(False)


# ---------------------------------------------------------------------------
# pure-JAX reference (mirrors the PyTorch slow path) for validation
# ---------------------------------------------------------------------------
def mamba_reference(h, p):
    d_inner = p["D"].shape[0]
    d_state = p["A_log"].shape[1]
    d_conv = p["conv_w"].shape[1]
    dt_rank = p["dt_w"].shape[1]
    B, L, _ = h.shape

    xz = jnp.einsum("bld,ed->ble", h, p["in_w"])                    # (B, L, 2*d_inner)
    x, z = xz[..., :d_inner], xz[..., d_inner:]

    x_pad = jnp.pad(x, ((0, 0), (d_conv - 1, 0), (0, 0)))
    conv = jnp.zeros_like(x)
    for k in range(d_conv):
        conv = conv + x_pad[:, k:k + L, :] * p["conv_w"][:, k][None, None, :]
    conv = conv + p["conv_b"][None, None, :]
    xc = conv * _sigmoid(conv)                                      # (B, L, d_inner)

    x_dbl = jnp.einsum("bld,ed->ble", xc, p["x_w"])                 # (B, L, dt_rank+2*d_state)
    dt_in = x_dbl[..., :dt_rank]
    Bm = x_dbl[..., dt_rank:dt_rank + d_state]
    Cm = x_dbl[..., dt_rank + d_state:]
    delta = _softplus(jnp.einsum("blr,dr->bld", dt_in, p["dt_w"]) + p["dt_b"][None, None, :])

    A = -jnp.exp(p["A_log"])                                        # (d_inner, d_state)

    def step(state, inp):
        d_l, u_l, b_l, c_l = inp
        dA = jnp.exp(d_l[:, :, None] * A[None, :, :])
        dBu = (d_l * u_l)[:, :, None] * b_l[:, None, :]
        state = state * dA + dBu
        y = jnp.einsum("bdn,bn->bd", state, c_l)
        return state, y

    xs = (jnp.moveaxis(delta, 1, 0), jnp.moveaxis(xc, 1, 0),
          jnp.moveaxis(Bm, 1, 0), jnp.moveaxis(Cm, 1, 0))
    state0 = jnp.zeros((B, d_inner, d_state), jnp.float32)
    _, ys = lax.scan(step, state0, xs)
    y = jnp.moveaxis(ys, 0, 1)                                      # (B, L, d_inner)
    y = y + xc * p["D"][None, None, :]
    y = y * (z * _sigmoid(z))
    return jnp.einsum("bld,ed->ble", y, p["out_w"])


# ---------------------------------------------------------------------------
# deterministic synthetic parameters (shapes from Mamba.__init__)
# ---------------------------------------------------------------------------
def init_params(key, d_model, d_state=16, d_conv=4, expand=2,
                dt_min=0.001, dt_max=0.1, dt_init_floor=1e-4):
    d_inner = int(expand * d_model)
    dt_rank = math.ceil(d_model / 16)
    ks = jax.random.split(key, 7)
    s_in = 1.0 / math.sqrt(d_model)
    s_di = 1.0 / math.sqrt(d_inner)
    in_w = jax.random.uniform(ks[0], (2 * d_inner, d_model), jnp.float32, -s_in, s_in)
    conv_w = jax.random.uniform(ks[1], (d_inner, d_conv), jnp.float32, -0.5, 0.5) / math.sqrt(d_conv)
    conv_b = jax.random.uniform(ks[2], (d_inner,), jnp.float32, -0.1, 0.1)
    x_w = jax.random.uniform(ks[3], (dt_rank + 2 * d_state, d_inner), jnp.float32, -s_di, s_di)
    dt_init_std = dt_rank ** (-0.5)
    dt_w = jax.random.uniform(ks[4], (d_inner, dt_rank), jnp.float32, -dt_init_std, dt_init_std)
    dt = jnp.exp(jax.random.uniform(ks[5], (d_inner,), jnp.float32)
                 * (math.log(dt_max) - math.log(dt_min)) + math.log(dt_min))
    dt = jnp.maximum(dt, dt_init_floor)
    inv_dt = dt + jnp.log(-jnp.expm1(-dt))                          # softplus^-1(dt)
    A_log = jnp.log(jnp.broadcast_to(
        jnp.arange(1, d_state + 1, dtype=jnp.float32), (d_inner, d_state)))
    D = jnp.ones((d_inner,), jnp.float32)
    out_w = jax.random.uniform(ks[6], (d_model, d_inner), jnp.float32, -s_di, s_di)
    return dict(in_w=in_w, conv_w=conv_w, conv_b=conv_b, x_w=x_w,
                dt_w=dt_w, dt_b=inv_dt, A_log=A_log, D=D, out_w=out_w)


if __name__ == "__main__":
    key = jax.random.PRNGKey(0)
    k_param, k_x = jax.random.split(key)
    # NOTE: toy shapes (d_model=32 -> d_inner=64) are lane-sparse; production callers
    # should pad d_model/d_inner to multiples of 128 (256 on v6e/v7x) — review item 13.
    B, L, d_model = 2, 32, 32                 # -> d_inner=64, d_state=16, d_conv=4, dt_rank=2
    params = init_params(k_param, d_model)
    hidden_states = jax.random.normal(k_x, (B, L, d_model), jnp.float32)

    # L_chunk=16 -> 2 sequence chunks (exercises state/conv-carry handoff) and
    # 2 unrolled 8-step scan blocks per chunk (exercises the fori_loop + coalesced store).
    out = mamba_pallas(hidden_states, params, L_chunk=16)
    out = jax.block_until_ready(out)

    with jax.default_matmul_precision("highest"):
        ref = jax.block_until_ready(mamba_reference(hidden_states, params))
    # Kernel runs projection matmuls with bf16 operands (f32 accumulate).
    np.testing.assert_allclose(np.asarray(out), np.asarray(ref), rtol=5e-2, atol=5e-3)

    print("KERNEL_OK")
</pallas_src>

<mosaic_0001>
module attributes {stable_mosaic.version = 11 : i64} {
  func.func @mamba_kernel(%arg0: i32, %arg1: i32, %arg2: memref<1x16x32xbf16, #tpu.memory_space<vmem>>, %arg3: memref<32x128xbf16, #tpu.memory_space<vmem>>, %arg4: memref<4x64xf32, #tpu.memory_space<vmem>>, %arg5: memref<1x64xf32, #tpu.memory_space<vmem>>, %arg6: memref<64x128xbf16, #tpu.memory_space<vmem>>, %arg7: memref<2x64xbf16, #tpu.memory_space<vmem>>, %arg8: memref<1x64xf32, #tpu.memory_space<vmem>>, %arg9: memref<16x64xf32, #tpu.memory_space<vmem>>, %arg10: memref<1x64xf32, #tpu.memory_space<vmem>>, %arg11: memref<64x32xbf16, #tpu.memory_space<vmem>>, %arg12: memref<1x16x32xf32, #tpu.memory_space<vmem>>, %arg13: memref<16x64xf32, #tpu.memory_space<vmem>>, %arg14: memref<24x64xf32, #tpu.memory_space<vmem>>, %arg15: memref<16x64xf32, #tpu.memory_space<vmem>>, %arg16: memref<16x32xf32, #tpu.memory_space<vmem>>, %arg17: memref<16x64xf32, #tpu.memory_space<vmem>>) attributes {dimension_semantics = [#tpu.dimension_semantics<parallel>, #tpu.dimension_semantics<arbitrary>], iteration_bounds = array<i64: 2, 2>, scalar_prefetch = 0 : i64, scratch_operands = 5 : i64, tpu.core_type = #tpu.core_type<tc>, window_params = [{transform_indices = @transform_0, window_bounds = array<i64: 1, 16, 32>}, {pipeline_mode = #tpu.pipeline_mode<synchronous>, transform_indices = @transform_1, window_bounds = array<i64: 32, 128>}, {pipeline_mode = #tpu.pipeline_mode<synchronous>, transform_indices = @transform_2, window_bounds = array<i64: 4, 64>}, {pipeline_mode = #tpu.pipeline_mode<synchronous>, transform_indices = @transform_3, window_bounds = array<i64: 1, 64>}, {pipeline_mode = #tpu.pipeline_mode<synchronous>, transform_indices = @transform_4, window_bounds = array<i64: 64, 128>}, {pipeline_mode = #tpu.pipeline_mode<synchronous>, transform_indices = @transform_5, window_bounds = array<i64: 2, 64>}, {pipeline_mode = #tpu.pipeline_mode<synchronous>, transform_indices = @transform_6, window_bounds = array<i64: 1, 64>}, {pipeline_mode = #tpu.pipeline_mode<synchronous>, transform_indices = @transform_7, window_bounds = array<i64: 16, 64>}, {pipeline_mode = #tpu.pipeline_mode<synchronous>, transform_indices = @transform_8, window_bounds = array<i64: 1, 64>}, {pipeline_mode = #tpu.pipeline_mode<synchronous>, transform_indices = @transform_9, window_bounds = array<i64: 64, 32>}, {transform_indices = @transform_10, window_bounds = array<i64: 1, 16, 32>}]} {
    %c0_i32 = arith.constant 0 : i32
    %0 = arith.cmpi eq, %arg1, %c0_i32 : i32
    %1 = arith.extui %0 : i1 to i32
    %c0_i32_0 = arith.constant 0 : i32
    %2 = arith.cmpi ne, %1, %c0_i32_0 : i32
    scf.if %2 {
      %cst_63 = arith.constant 0.000000e+00 : f32
      %99 = vector.broadcast %cst_63 : f32 to vector<16x64xf32>
      %c0_64 = arith.constant 0 : index
      %c0_65 = arith.constant 0 : index
      %100 = vector.load %arg13[%c0_64, %c0_65] : memref<16x64xf32, #tpu.memory_space<vmem>>, vector<16x64xf32>
      tpu.vector_store %arg13[%c0_64, %c0_65], %99 {strides = array<i32>} : memref<16x64xf32, #tpu.memory_space<vmem>>, vector<16x64xf32>,
      %cst_66 = arith.constant 0.000000e+00 : f32
      %101 = vector.broadcast %cst_66 : f32 to vector<8x64xf32>
      %c0_67 = arith.constant 0 : index
      %c0_68 = arith.constant 0 : index
      %102 = vector.load %arg14[%c0_67, %c0_68] : memref<24x64xf32, #tpu.memory_space<vmem>>, vector<8x64xf32>
      tpu.vector_store %arg14[%c0_67, %c0_68], %101 {strides = array<i32>} : memref<24x64xf32, #tpu.memory_space<vmem>>, vector<8x64xf32>,
    } else {
    }
    %c0 = arith.constant 0 : index
    %c0_1 = arith.constant 0 : index
    %c0_2 = arith.constant 0 : index
    %3 = vector.load %arg2[%c0, %c0_1, %c0_2] : memref<1x16x32xbf16, #tpu.memory_space<vmem>>, vector<1x16x32xbf16>
    %4 = vector.shape_cast %3 : vector<1x16x32xbf16> to vector<16x32xbf16>
    %c0_3 = arith.constant 0 : index
    %c0_4 = arith.constant 0 : index
    %5 = vector.load %arg3[%c0_3, %c0_4] : memref<32x128xbf16, #tpu.memory_space<vmem>>, vector<32x128xbf16>
    %cst = arith.constant dense<0.000000e+00> : vector<16x128xf32>
    %6 = tpu.matmul %4, %5, %cst {dimension_numbers = #tpu.dot_dimension_numbers<[1], [0], [0], [1], [0, 0, 1, 1], [], []>} : vector<16x32xbf16>, vector<32x128xbf16>, vector<16x128xf32> -> vector<16x128xf32>
    %7 = vector.extract_strided_slice %6 {offsets = [0, 0], sizes = [16, 64], strides = [1, 1]} : vector<16x128xf32> to vector<16x64xf32>
    %8 = vector.extract_strided_slice %6 {offsets = [0, 64], sizes = [16, 64], strides = [1, 1]} : vector<16x128xf32> to vector<16x64xf32>
    %c8 = arith.constant 8 : index
    %c0_5 = arith.constant 0 : index
    %9 = vector.load %arg14[%c8, %c0_5] : memref<24x64xf32, #tpu.memory_space<vmem>>, vector<16x64xf32>
    tpu.vector_store %arg14[%c8, %c0_5], %7 {strides = array<i32>} : memref<24x64xf32, #tpu.memory_space<vmem>>, vector<16x64xf32>,
    %cst_6 = arith.constant 0.000000e+00 : f32
    %10 = vector.broadcast %cst_6 : f32 to vector<16x64xf32>
    %c5 = arith.constant 5 : index
    %c0_7 = arith.constant 0 : index
    %11 = vector.load %arg14[%c5, %c0_7] : memref<24x64xf32, #tpu.memory_space<vmem>>, vector<16x64xf32>
    %c0_8 = arith.constant 0 : index
    %c0_9 = arith.constant 0 : index
    %12 = vector.load %arg4[%c0_8, %c0_9] : memref<4x64xf32, #tpu.memory_space<vmem>>, vector<1x64xf32>
    %13 = vector.broadcast %12 : vector<1x64xf32> to vector<16x64xf32>
    %14 = arith.mulf %11, %13 : vector<16x64xf32>
    %15 = arith.addf %10, %14 : vector<16x64xf32>
    %c6 = arith.constant 6 : index
    %c0_10 = arith.constant 0 : index
    %16 = vector.load %arg14[%c6, %c0_10] : memref<24x64xf32, #tpu.memory_space<vmem>>, vector<16x64xf32>
    %c1 = arith.constant 1 : index
    %c0_11 = arith.constant 0 : index
    %17 = vector.load %arg4[%c1, %c0_11] : memref<4x64xf32, #tpu.memory_space<vmem>>, vector<1x64xf32>
    %18 = vector.broadcast %17 : vector<1x64xf32> to vector<16x64xf32>
    %19 = arith.mulf %16, %18 : vector<16x64xf32>
    %20 = arith.addf %15, %19 : vector<16x64xf32>
    %c7 = arith.constant 7 : index
    %c0_12 = arith.constant 0 : index
    %21 = vector.load %arg14[%c7, %c0_12] : memref<24x64xf32, #tpu.memory_space<vmem>>, vector<16x64xf32>
    %c2 = arith.constant 2 : index
    %c0_13 = arith.constant 0 : index
    %22 = vector.load %arg4[%c2, %c0_13] : memref<4x64xf32, #tpu.memory_space<vmem>>, vector<1x64xf32>
    %23 = vector.broadcast %22 : vector<1x64xf32> to vector<16x64xf32>
    %24 = arith.mulf %21, %23 : vector<16x64xf32>
    %25 = arith.addf %20, %24 : vector<16x64xf32>
    %c8_14 = arith.constant 8 : index
    %c0_15 = arith.constant 0 : index
    %26 = vector.load %arg14[%c8_14, %c0_15] : memref<24x64xf32, #tpu.memory_space<vmem>>, vector<16x64xf32>
    %c3 = arith.constant 3 : index
    %c0_16 = arith.constant 0 : index
    %27 = vector.load %arg4[%c3, %c0_16] : memref<4x64xf32, #tpu.memory_space<vmem>>, vector<1x64xf32>
    %28 = vector.broadcast %27 : vector<1x64xf32> to vector<16x64xf32>
    %29 = arith.mulf %26, %28 : vector<16x64xf32>
    %30 = arith.addf %25, %29 : vector<16x64xf32>
    %c0_17 = arith.constant 0 : index
    %c0_18 = arith.constant 0 : index
    %31 = vector.load %arg5[%c0_17, %c0_18] : memref<1x64xf32, #tpu.memory_space<vmem>>, vector<1x64xf32>
    %32 = vector.broadcast %31 : vector<1x64xf32> to vector<16x64xf32>
    %33 = arith.addf %30, %32 : vector<16x64xf32>
    %c21 = arith.constant 21 : index
    %c0_19 = arith.constant 0 : index
    %34 = vector.load %arg14[%c21, %c0_19] : memref<24x64xf32, #tpu.memory_space<vmem>>, vector<3x64xf32>
    %c5_20 = arith.constant 5 : index
    %c0_21 = arith.constant 0 : index
    %35 = vector.load %arg14[%c5_20, %c0_21] : memref<24x64xf32, #tpu.memory_space<vmem>>, vector<3x64xf32>
    tpu.vector_store %arg14[%c5_20, %c0_21], %34 {strides = array<i32>} : memref<24x64xf32, #tpu.memory_space<vmem>>, vector<3x64xf32>,
    %cst_22 = arith.constant 0.000000e+00 : f32
    %36 = vector.broadcast %cst_22 : f32 to vector<16x64xf32>
    %37 = arith.subf %36, %33 : vector<16x64xf32>
    %38 = math.exp %37 : vector<16x64xf32>
    %cst_23 = arith.constant 1.000000e+00 : f32
    %39 = vector.broadcast %cst_23 : f32 to vector<16x64xf32>
    %40 = arith.addf %39, %38 : vector<16x64xf32>
    %cst_24 = arith.constant 1.000000e+00 : f32
    %41 = vector.broadcast %cst_24 : f32 to vector<16x64xf32>
    %42 = arith.divf %41, %40 : vector<16x64xf32>
    %43 = arith.mulf %33, %42 : vector<16x64xf32>
    %c8_25 = arith.constant 8 : index
    %c0_26 = arith.constant 0 : index
    %44 = vector.load %arg14[%c8_25, %c0_26] : memref<24x64xf32, #tpu.memory_space<vmem>>, vector<16x64xf32>
    tpu.vector_store %arg14[%c8_25, %c0_26], %43 {strides = array<i32>} : memref<24x64xf32, #tpu.memory_space<vmem>>, vector<16x64xf32>,
    %45 = arith.truncf %43 : vector<16x64xf32> to vector<16x64xbf16>
    %c0_27 = arith.constant 0 : index
    %c0_28 = arith.constant 0 : index
    %46 = vector.load %arg6[%c0_27, %c0_28] : memref<64x128xbf16, #tpu.memory_space<vmem>>, vector<64x128xbf16>
    %cst_29 = arith.constant dense<0.000000e+00> : vector<16x128xf32>
    %47 = tpu.matmul %45, %46, %cst_29 {dimension_numbers = #tpu.dot_dimension_numbers<[1], [0], [0], [1], [0, 0, 1, 1], [], []>} : vector<16x64xbf16>, vector<64x128xbf16>, vector<16x128xf32> -> vector<16x128xf32>
    %48 = vector.extract_strided_slice %47 {offsets = [0, 0], sizes = [16, 2], strides = [1, 1]} : vector<16x128xf32> to vector<16x2xf32>
    %49 = arith.truncf %48 : vector<16x2xf32> to vector<16x2xbf16>
    %c0_30 = arith.constant 0 : index
    %c0_31 = arith.constant 0 : index
    %50 = vector.load %arg7[%c0_30, %c0_31] : memref<2x64xbf16, #tpu.memory_space<vmem>>, vector<2x64xbf16>
    %cst_32 = arith.constant dense<0.000000e+00> : vector<16x64xf32>
    %51 = tpu.matmul %49, %50, %cst_32 {dimension_numbers = #tpu.dot_dimension_numbers<[1], [0], [0], [1], [0, 0, 1, 1], [], []>} : vector<16x2xbf16>, vector<2x64xbf16>, vector<16x64xf32> -> vector<16x64xf32>
    %c0_33 = arith.constant 0 : index
    %c0_34 = arith.constant 0 : index
    %52 = vector.load %arg8[%c0_33, %c0_34] : memref<1x64xf32, #tpu.memory_space<vmem>>, vector<1x64xf32>
    %53 = vector.broadcast %52 : vector<1x64xf32> to vector<16x64xf32>
    %54 = arith.addf %51, %53 : vector<16x64xf32>
    %cst_35 = arith.constant 2.000000e+01 : f32
    %55 = vector.broadcast %cst_35 : f32 to vector<16x64xf32>
    %56 = arith.cmpf ogt, %54, %55 : vector<16x64xf32>
    %cst_36 = arith.constant 2.000000e+01 : f32
    %57 = vector.broadcast %cst_36 : f32 to vector<16x64xf32>
    %58 = arith.minimumf %54, %57 : vector<16x64xf32>
    %59 = math.exp %58 : vector<16x64xf32>
    %cst_37 = arith.constant 1.000000e+00 : f32
    %60 = vector.broadcast %cst_37 : f32 to vector<16x64xf32>
    %61 = arith.addf %60, %59 : vector<16x64xf32>
    %62 = math.log %61 : vector<16x64xf32>
    %63 = arith.select %56, %54, %62 : vector<16x64xi1>, vector<16x64xf32>
    %c0_38 = arith.constant 0 : index
    %c0_39 = arith.constant 0 : index
    %64 = vector.load %arg15[%c0_38, %c0_39] : memref<16x64xf32, #tpu.memory_space<vmem>>, vector<16x64xf32>
    tpu.vector_store %arg15[%c0_38, %c0_39], %63 {strides = array<i32>} : memref<16x64xf32, #tpu.memory_space<vmem>>, vector<16x64xf32>,
    %65 = vector.extract_strided_slice %47 {offsets = [0, 2], sizes = [16, 32], strides = [1, 1]} : vector<16x128xf32> to vector<16x32xf32>
    %c0_40 = arith.constant 0 : index
    %c0_41 = arith.constant 0 : index
    %66 = vector.load %arg16[%c0_40, %c0_41] : memref<16x32xf32, #tpu.memory_space<vmem>>, vector<16x32xf32>
    tpu.vector_store %arg16[%c0_40, %c0_41], %65 {strides = array<i32>} : memref<16x32xf32, #tpu.memory_space<vmem>>, vector<16x32xf32>,
    %67 = tpu.iota {dimensions = array<i32: 0>} : vector<16x32xi32>
    %68 = tpu.iota {dimensions = array<i32: 1>} : vector<16x32xi32>
    %69 = arith.cmpi eq, %68, %67 : vector<16x32xi32>
    %70 = arith.extui %69 : vector<16x32xi1> to vector<16x32xi32>
    %71 = arith.sitofp %70 : vector<16x32xi32> to vector<16x32xf32>
    %c16_i32 = arith.constant 16 : i32
    %72 = vector.broadcast %c16_i32 : i32 to vector<16x32xi32>
    %73 = arith.addi %67, %72 : vector<16x32xi32>
    %74 = arith.cmpi eq, %68, %73 : vector<16x32xi32>
    %75 = arith.extui %74 : vector<16x32xi1> to vector<16x32xi32>
    %76 = arith.sitofp %75 : vector<16x32xi32> to vector<16x32xf32>
    %c0_42 = arith.constant 0 : index
    %c0_43 = arith.constant 0 : index
    %77 = vector.load %arg9[%c0_42, %c0_43] : memref<16x64xf32, #tpu.memory_space<vmem>>, vector<16x64xf32>
    %c0_44 = arith.constant 0 : index
    %c0_45 = arith.constant 0 : index
    %78 = vector.load %arg10[%c0_44, %c0_45] : memref<1x64xf32, #tpu.memory_space<vmem>>, vector<1x64xf32>
    %c0_46 = arith.constant 0 : index
    %c0_47 = arith.constant 0 : index
    %79 = vector.load %arg13[%c0_46, %c0_47] : memref<16x64xf32, #tpu.memory_space<vmem>>, vector<16x64xf32>
    %c0_i32_48 = arith.constant 0 : i32
    %c2_i32 = arith.constant 2 : i32
    %80 = arith.addi %c0_i32_48, %c2_i32 : i32
    %c1_i32 = arith.constant 1 : i32
    %81 = scf.for %arg18 = %c0_i32_48 to %80 step %c1_i32 iter_args(%arg19 = %79) -> (vector<16x64xf32>)  : i32 {
      %c8_i32 = arith.constant 8 : i32
      %99 = arith.muli %arg18, %c8_i32 : i32
      %100 = tpu.assume_multiple %99, 8 : i32
      %c0_i32_63 = arith.constant 0 : i32
      %101 = arith.addi %100, %c0_i32_63 : i32
      %102 = arith.index_cast %101 : i32 to index
      %c0_64 = arith.constant 0 : index
      %103 = vector.load %arg15[%102, %c0_64] : memref<16x64xf32, #tpu.memory_space<vmem>>, vector<1x64xf32>
      %c8_i32_65 = arith.constant 8 : i32
      %104 = arith.addi %c8_i32_65, %101 : i32
      %105 = arith.index_cast %104 : i32 to index
      %c0_66 = arith.constant 0 : index
      %106 = vector.load %arg14[%105, %c0_66] : memref<24x64xf32, #tpu.memory_space<vmem>>, vector<1x64xf32>
      %107 = arith.index_cast %101 : i32 to index
      %c0_67 = arith.constant 0 : index
      %108 = vector.load %arg16[%107, %c0_67] : memref<16x32xf32, #tpu.memory_space<vmem>>, vector<1x32xf32>
      %109 = vector.shape_cast %108 : vector<1x32xf32> to vector<1x32xf32>
      %110 = vector.broadcast %109 : vector<1x32xf32> to vector<16x32xf32>
      %111 = arith.mulf %110, %71 : vector<16x32xf32>
      %cst_68 = arith.constant dense<0.000000e+00> : vector<16xf32>
      %112 = vector.multi_reduction <add>, %111, %cst_68 [1] : vector<16x32xf32> to vector<16xf32>
      %113 = vector.shape_cast %112 : vector<16xf32> to vector<16x1xf32>
      %114 = arith.mulf %110, %76 : vector<16x32xf32>
      %cst_69 = arith.constant dense<0.000000e+00> : vector<16xf32>
      %115 = vector.multi_reduction <add>, %114, %cst_69 [1] : vector<16x32xf32> to vector<16xf32>
      %116 = vector.shape_cast %115 : vector<16xf32> to vector<16x1xf32>
      %117 = vector.broadcast %103 : vector<1x64xf32> to vector<16x64xf32>
      %118 = arith.mulf %77, %117 : vector<16x64xf32>
      %119 = math.exp %118 : vector<16x64xf32>
      %120 = arith.mulf %arg19, %119 : vector<16x64xf32>
      %121 = arith.mulf %103, %106 : vector<1x64xf32>
      %122 = vector.broadcast %113 : vector<16x1xf32> to vector<16x64xf32>
      %123 = vector.broadcast %121 : vector<1x64xf32> to vector<16x64xf32>
      %124 = arith.mulf %122, %123 : vector<16x64xf32>
      %125 = arith.addf %120, %124 : vector<16x64xf32>
      %126 = vector.broadcast %116 : vector<16x1xf32> to vector<16x64xf32>
      %127 = arith.mulf %126, %125 : vector<16x64xf32>
      %cst_70 = arith.constant dense<0.000000e+00> : vector<64xf32>
      %128 = vector.multi_reduction <add>, %127, %cst_70 [0] : vector<16x64xf32> to vector<64xf32>
      %129 = vector.shape_cast %128 : vector<64xf32> to vector<1x64xf32>
      %130 = arith.mulf %78, %106 : vector<1x64xf32>
      %131 = arith.addf %129, %130 : vector<1x64xf32>
      %c1_i32_71 = arith.constant 1 : i32
      %132 = arith.addi %100, %c1_i32_71 : i32
      %133 = arith.index_cast %132 : i32 to index
      %c0_72 = arith.constant 0 : index
      %134 = vector.load %arg15[%133, %c0_72] : memref<16x64xf32, #tpu.memory_space<vmem>>, vector<1x64xf32>
      %c8_i32_73 = arith.constant 8 : i32
      %135 = arith.addi %c8_i32_73, %132 : i32
      %136 = arith.index_cast %135 : i32 to index
      %c0_74 = arith.constant 0 : index
      %137 = vector.load %arg14[%136, %c0_74] : memref<24x64xf32, #tpu.memory_space<vmem>>, vector<1x64xf32>
      %138 = arith.index_cast %132 : i32 to index
      %c0_75 = arith.constant 0 : index
      %139 = vector.load %arg16[%138, %c0_75] : memref<16x32xf32, #tpu.memory_space<vmem>>, vector<1x32xf32>
      %140 = vector.shape_cast %139 : vector<1x32xf32> to vector<1x32xf32>
      %141 = vector.broadcast %140 : vector<1x32xf32> to vector<16x32xf32>
      %142 = arith.mulf %141, %71 : vector<16x32xf32>
      %cst_76 = arith.constant dense<0.000000e+00> : vector<16xf32>
      %143 = vector.multi_reduction <add>, %142, %cst_76 [1] : vector<16x32xf32> to vector<16xf32>
      %144 = vector.shape_cast %143 : vector<16xf32> to vector<16x1xf32>
      %145 = arith.mulf %141, %76 : vector<16x32xf32>
      %cst_77 = arith.constant dense<0.000000e+00> : vector<16xf32>
      %146 = vector.multi_reduction <add>, %145, %cst_77 [1] : vector<16x32xf32> to vector<16xf32>
      %147 = vector.shape_cast %146 : vector<16xf32> to vector<16x1xf32>
      %148 = vector.broadcast %134 : vector<1x64xf32> to vector<16x64xf32>
      %149 = arith.mulf %77, %148 : vector<16x64xf32>
      %150 = math.exp %149 : vector<16x64xf32>
      %151 = arith.mulf %125, %150 : vector<16x64xf32>
      %152 = arith.mulf %134, %137 : vector<1x64xf32>
      %153 = vector.broadcast %144 : vector<16x1xf32> to vector<16x64xf32>
      %154 = vector.broadcast %152 : vector<1x64xf32> to vector<16x64xf32>
      %155 = arith.mulf %153, %154 : vector<16x64xf32>
      %156 = arith.addf %151, %155 : vector<16x64xf32>
      %157 = vector.broadcast %147 : vector<16x1xf32> to vector<16x64xf32>
      %158 = arith.mulf %157, %156 : vector<16x64xf32>
      %cst_78 = arith.constant dense<0.000000e+00> : vector<64xf32>
      %159 = vector.multi_reduction <add>, %158, %cst_78 [0] : vector<16x64xf32> to vector<64xf32>
      %160 = vector.shape_cast %159 : vector<64xf32> to vector<1x64xf32>
      %161 = arith.mulf %78, %137 : vector<1x64xf32>
      %162 = arith.addf %160, %161 : vector<1x64xf32>
      %c2_i32_79 = arith.constant 2 : i32
      %163 = arith.addi %100, %c2_i32_79 : i32
      %164 = arith.index_cast %163 : i32 to index
      %c0_80 = arith.constant 0 : index
      %165 = vector.load %arg15[%164, %c0_80] : memref<16x64xf32, #tpu.memory_space<vmem>>, vector<1x64xf32>
      %c8_i32_81 = arith.constant 8 : i32
      %166 = arith.addi %c8_i32_81, %163 : i32
      %167 = arith.index_cast %166 : i32 to index
      %c0_82 = arith.constant 0 : index
      %168 = vector.load %arg14[%167, %c0_82] : memref<24x64xf32, #tpu.memory_space<vmem>>, vector<1x64xf32>
      %169 = arith.index_cast %163 : i32 to index
      %c0_83 = arith.constant 0 : index
      %170 = vector.load %arg16[%169, %c0_83] : memref<16x32xf32, #tpu.memory_space<vmem>>, vector<1x32xf32>
      %171 = vector.shape_cast %170 : vector<1x32xf32> to vector<1x32xf32>
      %172 = vector.broadcast %171 : vector<1x32xf32> to vector<16x32xf32>
      %173 = arith.mulf %172, %71 : vector<16x32xf32>
      %cst_84 = arith.constant dense<0.000000e+00> : vector<16xf32>
      %174 = vector.multi_reduction <add>, %173, %cst_84 [1] : vector<16x32xf32> to vector<16xf32>
      %175 = vector.shape_cast %174 : vector<16xf32> to vector<16x1xf32>
      %176 = arith.mulf %172, %76 : vector<16x32xf32>
      %cst_85 = arith.constant dense<0.000000e+00> : vector<16xf32>
      %177 = vector.multi_reduction <add>, %176, %cst_85 [1] : vector<16x32xf32> to vector<16xf32>
      %178 = vector.shape_cast %177 : vector<16xf32> to vector<16x1xf32>
      %179 = vector.broadcast %165 : vector<1x64xf32> to vector<16x64xf32>
      %180 = arith.mulf %77, %179 : vector<16x64xf32>
      %181 = math.exp %180 : vector<16x64xf32>
      %182 = arith.mulf %156, %181 : vector<16x64xf32>
      %183 = arith.mulf %165, %168 : vector<1x64xf32>
      %184 = vector.broadcast %175 : vector<16x1xf32> to vector<16x64xf32>
      %185 = vector.broadcast %183 : vector<1x64xf32> to vector<16x64xf32>
      %186 = arith.mulf %184, %185 : vector<16x64xf32>
      %187 = arith.addf %182, %186 : vector<16x64xf32>
      %188 = vector.broadcast %178 : vector<16x1xf32> to vector<16x64xf32>
      %189 = arith.mulf %188, %187 : vector<16x64xf32>
      %cst_86 = arith.constant dense<0.000000e+00> : vector<64xf32>
      %190 = vector.multi_reduction <add>, %189, %cst_86 [0] : vector<16x64xf32> to vector<64xf32>
      %191 = vector.shape_cast %190 : vector<64xf32> to vector<1x64xf32>
      %192 = arith.mulf %78, %168 : vector<1x64xf32>
      %193 = arith.addf %191, %192 : vector<1x64xf32>
      %c3_i32 = arith.constant 3 : i32
      %194 = arith.addi %100, %c3_i32 : i32
      %195 = arith.index_cast %194 : i32 to index
      %c0_87 = arith.constant 0 : index
      %196 = vector.load %arg15[%195, %c0_87] : memref<16x64xf32, #tpu.memory_space<vmem>>, vector<1x64xf32>
      %c8_i32_88 = arith.constant 8 : i32
      %197 = arith.addi %c8_i32_88, %194 : i32
      %198 = arith.index_cast %197 : i32 to index
      %c0_89 = arith.constant 0 : index
      %199 = vector.load %arg14[%198, %c0_89] : memref<24x64xf32, #tpu.memory_space<vmem>>, vector<1x64xf32>
      %200 = arith.index_cast %194 : i32 to index
      %c0_90 = arith.constant 0 : index
      %201 = vector.load %arg16[%200, %c0_90] : memref<16x32xf32, #tpu.memory_space<vmem>>, vector<1x32xf32>
      %202 = vector.shape_cast %201 : vector<1x32xf32> to vector<1x32xf32>
      %203 = vector.broadcast %202 : vector<1x32xf32> to vector<16x32xf32>
      %204 = arith.mulf %203, %71 : vector<16x32xf32>
      %cst_91 = arith.constant dense<0.000000e+00> : vector<16xf32>
      %205 = vector.multi_reduction <add>, %204, %cst_91 [1] : vector<16x32xf32> to vector<16xf32>
      %206 = vector.shape_cast %205 : vector<16xf32> to vector<16x1xf32>
      %207 = arith.mulf %203, %76 : vector<16x32xf32>
      %cst_92 = arith.constant dense<0.000000e+00> : vector<16xf32>
      %208 = vector.multi_reduction <add>, %207, %cst_92 [1] : vector<16x32xf32> to vector<16xf32>
      %209 = vector.shape_cast %208 : vector<16xf32> to vector<16x1xf32>
      %210 = vector.broadcast %196 : vector<1x64xf32> to vector<16x64xf32>
      %211 = arith.mulf %77, %210 : vector<16x64xf32>
      %212 = math.exp %211 : vector<16x64xf32>
      %213 = arith.mulf %187, %212 : vector<16x64xf32>
      %214 = arith.mulf %196, %199 : vector<1x64xf32>
      %215 = vector.broadcast %206 : vector<16x1xf32> to vector<16x64xf32>
      %216 = vector.broadcast %214 : vector<1x64xf32> to vector<16x64xf32>
      %217 = arith.mulf %215, %216 : vector<16x64xf32>
      %218 = arith.addf %213, %217 : vector<16x64xf32>
      %219 = vector.broadcast %209 : vector<16x1xf32> to vector<16x64xf32>
      %220 = arith.mulf %219, %218 : vector<16x64xf32>
      %cst_93 = arith.constant dense<0.000000e+00> : vector<64xf32>
      %221 = vector.multi_reduction <add>, %220, %cst_93 [0] : vector<16x64xf32> to vector<64xf32>
      %222 = vector.shape_cast %221 : vector<64xf32> to vector<1x64xf32>
      %223 = arith.mulf %78, %199 : vector<1x64xf32>
      %224 = arith.addf %222, %223 : vector<1x64xf32>
      %c4_i32 = arith.constant 4 : i32
      %225 = arith.addi %100, %c4_i32 : i32
      %226 = arith.index_cast %225 : i32 to index
      %c0_94 = arith.constant 0 : index
      %227 = vector.load %arg15[%226, %c0_94] : memref<16x64xf32, #tpu.memory_space<vmem>>, vector<1x64xf32>
      %c8_i32_95 = arith.constant 8 : i32
      %228 = arith.addi %c8_i32_95, %225 : i32
      %229 = arith.index_cast %228 : i32 to index
      %c0_96 = arith.constant 0 : index
      %230 = vector.load %arg14[%229, %c0_96] : memref<24x64xf32, #tpu.memory_space<vmem>>, vector<1x64xf32>
      %231 = arith.index_cast %225 : i32 to index
      %c0_97 = arith.constant 0 : index
      %232 = vector.load %arg16[%231, %c0_97] : memref<16x32xf32, #tpu.memory_space<vmem>>, vector<1x32xf32>
      %233 = vector.shape_cast %232 : vector<1x32xf32> to vector<1x32xf32>
      %234 = vector.broadcast %233 : vector<1x32xf32> to vector<16x32xf32>
      %235 = arith.mulf %234, %71 : vector<16x32xf32>
      %cst_98 = arith.constant dense<0.000000e+00> : vector<16xf32>
      %236 = vector.multi_reduction <add>, %235, %cst_98 [1] : vector<16x32xf32> to vector<16xf32>
      %237 = vector.shape_cast %236 : vector<16xf32> to vector<16x1xf32>
      %238 = arith.mulf %234, %76 : vector<16x32xf32>
      %cst_99 = arith.constant dense<0.000000e+00> : vector<16xf32>
      %239 = vector.multi_reduction <add>, %238, %cst_99 [1] : vector<16x32xf32> to vector<16xf32>
      %240 = vector.shape_cast %239 : vector<16xf32> to vector<16x1xf32>
      %241 = vector.broadcast %227 : vector<1x64xf32> to vector<16x64xf32>
      %242 = arith.mulf %77, %241 : vector<16x64xf32>
      %243 = math.exp %242 : vector<16x64xf32>
      %244 = arith.mulf %218, %243 : vector<16x64xf32>
      %245 = arith.mulf %227, %230 : vector<1x64xf32>
      %246 = vector.broadcast %237 : vector<16x1xf32> to vector<16x64xf32>
      %247 = vector.broadcast %245 : vector<1x64xf32> to vector<16x64xf32>
      %248 = arith.mulf %246, %247 : vector<16x64xf32>
      %249 = arith.addf %244, %248 : vector<16x64xf32>
      %250 = vector.broadcast %240 : vector<16x1xf32> to vector<16x64xf32>
      %251 = arith.mulf %250, %249 : vector<16x64xf32>
      %cst_100 = arith.constant dense<0.000000e+00> : vector<64xf32>
      %252 = vector.multi_reduction <add>, %251, %cst_100 [0] : vector<16x64xf32> to vector<64xf32>
      %253 = vector.shape_cast %252 : vector<64xf32> to vector<1x64xf32>
      %254 = arith.mulf %78, %230 : vector<1x64xf32>
      %255 = arith.addf %253, %254 : vector<1x64xf32>
      %c5_i32 = arith.constant 5 : i32
      %256 = arith.addi %100, %c5_i32 : i32
      %257 = arith.index_cast %256 : i32 to index
      %c0_101 = arith.constant 0 : index
      %258 = vector.load %arg15[%257, %c0_101] : memref<16x64xf32, #tpu.memory_space<vmem>>, vector<1x64xf32>
      %c8_i32_102 = arith.constant 8 : i32
      %259 = arith.addi %c8_i32_102, %256 : i32
      %260 = arith.index_cast %259 : i32 to index
      %c0_103 = arith.constant 0 : index
      %261 = vector.load %arg14[%260, %c0_103] : memref<24x64xf32, #tpu.memory_space<vmem>>, vector<1x64xf32>
      %262 = arith.index_cast %256 : i32 to index
      %c0_104 = arith.constant 0 : index
      %263 = vector.load %arg16[%262, %c0_104] : memref<16x32xf32, #tpu.memory_space<vmem>>, vector<1x32xf32>
      %264 = vector.shape_cast %263 : vector<1x32xf32> to vector<1x32xf32>
      %265 = vector.broadcast %264 : vector<1x32xf32> to vector<16x32xf32>
      %266 = arith.mulf %265, %71 : vector<16x32xf32>
      %cst_105 = arith.constant dense<0.000000e+00> : vector<16xf32>
      %267 = vector.multi_reduction <add>, %266, %cst_105 [1] : vector<16x32xf32> to vector<16xf32>
      %268 = vector.shape_cast %267 : vector<16xf32> to vector<16x1xf32>
      %269 = arith.mulf %265, %76 : vector<16x32xf32>
      %cst_106 = arith.constant dense<0.000000e+00> : vector<16xf32>
      %270 = vector.multi_reduction <add>, %269, %cst_106 [1] : vector<16x32xf32> to vector<16xf32>
      %271 = vector.shape_cast %270 : vector<16xf32> to vector<16x1xf32>
      %272 = vector.broadcast %258 : vector<1x64xf32> to vector<16x64xf32>
      %273 = arith.mulf %77, %272 : vector<16x64xf32>
      %274 = math.exp %273 : vector<16x64xf32>
      %275 = arith.mulf %249, %274 : vector<16x64xf32>
      %276 = arith.mulf %258, %261 : vector<1x64xf32>
      %277 = vector.broadcast %268 : vector<16x1xf32> to vector<16x64xf32>
      %278 = vector.broadcast %276 : vector<1x64xf32> to vector<16x64xf32>
      %279 = arith.mulf %277, %278 : vector<16x64xf32>
      %280 = arith.addf %275, %279 : vector<16x64xf32>
      %281 = vector.broadcast %271 : vector<16x1xf32> to vector<16x64xf32>
      %282 = arith.mulf %281, %280 : vector<16x64xf32>
      %cst_107 = arith.constant dense<0.000000e+00> : vector<64xf32>
      %283 = vector.multi_reduction <add>, %282, %cst_107 [0] : vector<16x64xf32> to vector<64xf32>
      %284 = vector.shape_cast %283 : vector<64xf32> to vector<1x64xf32>
      %285 = arith.mulf %78, %261 : vector<1x64xf32>
      %286 = arith.addf %284, %285 : vector<1x64xf32>
      %c6_i32 = arith.constant 6 : i32
      %287 = arith.addi %100, %c6_i32 : i32
      %288 = arith.index_cast %287 : i32 to index
      %c0_108 = arith.constant 0 : index
      %289 = vector.load %arg15[%288, %c0_108] : memref<16x64xf32, #tpu.memory_space<vmem>>, vector<1x64xf32>
      %c8_i32_109 = arith.constant 8 : i32
      %290 = arith.addi %c8_i32_109, %287 : i32
      %291 = arith.index_cast %290 : i32 to index
      %c0_110 = arith.constant 0 : index
      %292 = vector.load %arg14[%291, %c0_110] : memref<24x64xf32, #tpu.memory_space<vmem>>, vector<1x64xf32>
      %293 = arith.index_cast %287 : i32 to index
      %c0_111 = arith.constant 0 : index
      %294 = vector.load %arg16[%293, %c0_111] : memref<16x32xf32, #tpu.memory_space<vmem>>, vector<1x32xf32>
      %295 = vector.shape_cast %294 : vector<1x32xf32> to vector<1x32xf32>
      %296 = vector.broadcast %295 : vector<1x32xf32> to vector<16x32xf32>
      %297 = arith.mulf %296, %71 : vector<16x32xf32>
      %cst_112 = arith.constant dense<0.000000e+00> : vector<16xf32>
      %298 = vector.multi_reduction <add>, %297, %cst_112 [1] : vector<16x32xf32> to vector<16xf32>
      %299 = vector.shape_cast %298 : vector<16xf32> to vector<16x1xf32>
      %300 = arith.mulf %296, %76 : vector<16x32xf32>
      %cst_113 = arith.constant dense<0.000000e+00> : vector<16xf32>
      %301 = vector.multi_reduction <add>, %300, %cst_113 [1] : vector<16x32xf32> to vector<16xf32>
      %302 = vector.shape_cast %301 : vector<16xf32> to vector<16x1xf32>
      %303 = vector.broadcast %289 : vector<1x64xf32> to vector<16x64xf32>
      %304 = arith.mulf %77, %303 : vector<16x64xf32>
      %305 = math.exp %304 : vector<16x64xf32>
      %306 = arith.mulf %280, %305 : vector<16x64xf32>
      %307 = arith.mulf %289, %292 : vector<1x64xf32>
      %308 = vector.broadcast %299 : vector<16x1xf32> to vector<16x64xf32>
      %309 = vector.broadcast %307 : vector<1x64xf32> to vector<16x64xf32>
      %310 = arith.mulf %308, %309 : vector<16x64xf32>
      %311 = arith.addf %306, %310 : vector<16x64xf32>
      %312 = vector.broadcast %302 : vector<16x1xf32> to vector<16x64xf32>
      %313 = arith.mulf %312, %311 : vector<16x64xf32>
      %cst_114 = arith.constant dense<0.000000e+00> : vector<64xf32>
      %314 = vector.multi_reduction <add>, %313, %cst_114 [0] : vector<16x64xf32> to vector<64xf32>
      %315 = vector.shape_cast %314 : vector<64xf32> to vector<1x64xf32>
      %316 = arith.mulf %78, %292 : vector<1x64xf32>
      %317 = arith.addf %315, %316 : vector<1x64xf32>
      %c7_i32 = arith.constant 7 : i32
      %318 = arith.addi %100, %c7_i32 : i32
      %319 = arith.index_cast %318 : i32 to index
      %c0_115 = arith.constant 0 : index
      %320 = vector.load %arg15[%319, %c0_115] : memref<16x64xf32, #tpu.memory_space<vmem>>, vector<1x64xf32>
      %c8_i32_116 = arith.constant 8 : i32
      %321 = arith.addi %c8_i32_116, %318 : i32
      %322 = arith.index_cast %321 : i32 to index
      %c0_117 = arith.constant 0 : index
      %323 = vector.load %arg14[%322, %c0_117] : memref<24x64xf32, #tpu.memory_space<vmem>>, vector<1x64xf32>
      %324 = arith.index_cast %318 : i32 to index
      %c0_118 = arith.constant 0 : index
      %325 = vector.load %arg16[%324, %c0_118] : memref<16x32xf32, #tpu.memory_space<vmem>>, vector<1x32xf32>
      %326 = vector.shape_cast %325 : vector<1x32xf32> to vector<1x32xf32>
      %327 = vector.broadcast %326 : vector<1x32xf32> to vector<16x32xf32>
      %328 = arith.mulf %327, %71 : vector<16x32xf32>
      %cst_119 = arith.constant dense<0.000000e+00> : vector<16xf32>
      %329 = vector.multi_reduction <add>, %328, %cst_119 [1] : vector<16x32xf32> to vector<16xf32>
      %330 = vector.shape_cast %329 : vector<16xf32> to vector<16x1xf32>
      %331 = arith.mulf %327, %76 : vector<16x32xf32>
      %cst_120 = arith.constant dense<0.000000e+00> : vector<16xf32>
      %332 = vector.multi_reduction <add>, %331, %cst_120 [1] : vector<16x32xf32> to vector<16xf32>
      %333 = vector.shape_cast %332 : vector<16xf32> to vector<16x1xf32>
      %334 = vector.broadcast %320 : vector<1x64xf32> to vector<16x64xf32>
      %335 = arith.mulf %77, %334 : vector<16x64xf32>
      %336 = math.exp %335 : vector<16x64xf32>
      %337 = arith.mulf %311, %336 : vector<16x64xf32>
      %338 = arith.mulf %320, %323 : vector<1x64xf32>
      %339 = vector.broadcast %330 : vector<16x1xf32> to vector<16x64xf32>
      %340 = vector.broadcast %338 : vector<1x64xf32> to vector<16x64xf32>
      %341 = arith.mulf %339, %340 : vector<16x64xf32>
      %342 = arith.addf %337, %341 : vector<16x64xf32>
      %343 = vector.broadcast %333 : vector<16x1xf32> to vector<16x64xf32>
      %344 = arith.mulf %343, %342 : vector<16x64xf32>
      %cst_121 = arith.constant dense<0.000000e+00> : vector<64xf32>
      %345 = vector.multi_reduction <add>, %344, %cst_121 [0] : vector<16x64xf32> to vector<64xf32>
      %346 = vector.shape_cast %345 : vector<64xf32> to vector<1x64xf32>
      %347 = arith.mulf %78, %323 : vector<1x64xf32>
      %348 = arith.addf %346, %347 : vector<1x64xf32>
      %349 = tpu.concatenate %131, %162, %193, %224, %255, %286, %317, %348 in 0 : vector<1x64xf32>, vector<1x64xf32>, vector<1x64xf32>, vector<1x64xf32>, vector<1x64xf32>, vector<1x64xf32>, vector<1x64xf32>, vector<1x64xf32> -> vector<8x64xf32>
      %350 = arith.index_cast %100 : i32 to index
      %c0_122 = arith.constant 0 : index
      %351 = vector.load %arg17[%350, %c0_122] : memref<16x64xf32, #tpu.memory_space<vmem>>, vector<8x64xf32>
      tpu.vector_store %arg17[%350, %c0_122], %349 {strides = array<i32>} : memref<16x64xf32, #tpu.memory_space<vmem>>, vector<8x64xf32>,
      scf.yield %342 : vector<16x64xf32>
    }
    %c2_i32_49 = arith.constant 2 : i32
    %c0_50 = arith.constant 0 : index
    %c0_51 = arith.constant 0 : index
    %82 = vector.load %arg13[%c0_50, %c0_51] : memref<16x64xf32, #tpu.memory_space<vmem>>, vector<16x64xf32>
    tpu.vector_store %arg13[%c0_50, %c0_51], %81 {strides = array<i32>} : memref<16x64xf32, #tpu.memory_space<vmem>>, vector<16x64xf32>,
    %c0_52 = arith.constant 0 : index
    %c0_53 = arith.constant 0 : index
    %83 = vector.load %arg17[%c0_52, %c0_53] : memref<16x64xf32, #tpu.memory_space<vmem>>, vector<16x64xf32>
    %cst_54 = arith.constant 0.000000e+00 : f32
    %84 = vector.broadcast %cst_54 : f32 to vector<16x64xf32>
    %85 = arith.subf %84, %8 : vector<16x64xf32>
    %86 = math.exp %85 : vector<16x64xf32>
    %cst_55 = arith.constant 1.000000e+00 : f32
    %87 = vector.broadcast %cst_55 : f32 to vector<16x64xf32>
    %88 = arith.addf %87, %86 : vector<16x64xf32>
    %cst_56 = arith.constant 1.000000e+00 : f32
    %89 = vector.broadcast %cst_56 : f32 to vector<16x64xf32>
    %90 = arith.divf %89, %88 : vector<16x64xf32>
    %91 = arith.mulf %8, %90 : vector<16x64xf32>
    %92 = arith.mulf %83, %91 : vector<16x64xf32>
    %93 = arith.truncf %92 : vector<16x64xf32> to vector<16x64xbf16>
    %c0_57 = arith.constant 0 : index
    %c0_58 = arith.constant 0 : index
    %94 = vector.load %arg11[%c0_57, %c0_58] : memref<64x32xbf16, #tpu.memory_space<vmem>>, vector<64x32xbf16>
    %cst_59 = arith.constant dense<0.000000e+00> : vector<16x32xf32>
    %95 = tpu.matmul %93, %94, %cst_59 {dimension_numbers = #tpu.dot_dimension_numbers<[1], [0], [0], [1], [0, 0, 1, 1], [], []>} : vector<16x64xbf16>, vector<64x32xbf16>, vector<16x32xf32> -> vector<16x32xf32>
    %c0_60 = arith.constant 0 : index
    %c0_61 = arith.constant 0 : index
    %c0_62 = arith.constant 0 : index
    %96 = vector.load %arg12[%c0_60, %c0_61, %c0_62] : memref<1x16x32xf32, #tpu.memory_space<vmem>>, vector<1x16x32xf32>
    %97 = vector.shape_cast %96 : vector<1x16x32xf32> to vector<16x32xf32>
    %98 = vector.shape_cast %95 : vector<16x32xf32> to vector<1x16x32xf32>
    tpu.vector_store %arg12[%c0_60, %c0_61, %c0_62], %98 {strides = array<i32>} : memref<1x16x32xf32, #tpu.memory_space<vmem>>, vector<1x16x32xf32>,
    return
  }
  func.func @transform_0(%arg0: i32, %arg1: i32) -> (i32, i32, i32) {
    %c0_i32 = arith.constant 0 : i32
    %c0_i32_0 = arith.constant 0 : i32
    return %arg0, %arg1, %c0_i32 : i32, i32, i32
  }
  func.func @transform_1(%arg0: i32, %arg1: i32) -> (i32, i32) {
    %c0_i32 = arith.constant 0 : i32
    %c0_i32_0 = arith.constant 0 : i32
    %c0_i32_1 = arith.constant 0 : i32
    return %c0_i32, %c0_i32_0 : i32, i32
  }
  func.func @transform_2(%arg0: i32, %arg1: i32) -> (i32, i32) {
    %c0_i32 = arith.constant 0 : i32
    %c0_i32_0 = arith.constant 0 : i32
    %c0_i32_1 = arith.constant 0 : i32
    return %c0_i32, %c0_i32_0 : i32, i32
  }
  func.func @transform_3(%arg0: i32, %arg1: i32) -> (i32, i32) {
    %c0_i32 = arith.constant 0 : i32
    %c0_i32_0 = arith.constant 0 : i32
    %c0_i32_1 = arith.constant 0 : i32
    return %c0_i32, %c0_i32_0 : i32, i32
  }
  func.func @transform_4(%arg0: i32, %arg1: i32) -> (i32, i32) {
    %c0_i32 = arith.constant 0 : i32
    %c0_i32_0 = arith.constant 0 : i32
    %c0_i32_1 = arith.constant 0 : i32
    return %c0_i32, %c0_i32_0 : i32, i32
  }
  func.func @transform_5(%arg0: i32, %arg1: i32) -> (i32, i32) {
    %c0_i32 = arith.constant 0 : i32
    %c0_i32_0 = arith.constant 0 : i32
    %c0_i32_1 = arith.constant 0 : i32
    return %c0_i32, %c0_i32_0 : i32, i32
  }
  func.func @transform_6(%arg0: i32, %arg1: i32) -> (i32, i32) {
    %c0_i32 = arith.constant 0 : i32
    %c0_i32_0 = arith.constant 0 : i32
    %c0_i32_1 = arith.constant 0 : i32
    return %c0_i32, %c0_i32_0 : i32, i32
  }
  func.func @transform_7(%arg0: i32, %arg1: i32) -> (i32, i32) {
    %c0_i32 = arith.constant 0 : i32
    %c0_i32_0 = arith.constant 0 : i32
    %c0_i32_1 = arith.constant 0 : i32
    return %c0_i32, %c0_i32_0 : i32, i32
  }
  func.func @transform_8(%arg0: i32, %arg1: i32) -> (i32, i32) {
    %c0_i32 = arith.constant 0 : i32
    %c0_i32_0 = arith.constant 0 : i32
    %c0_i32_1 = arith.constant 0 : i32
    return %c0_i32, %c0_i32_0 : i32, i32
  }
  func.func @transform_9(%arg0: i32, %arg1: i32) -> (i32, i32) {
    %c0_i32 = arith.constant 0 : i32
    %c0_i32_0 = arith.constant 0 : i32
    %c0_i32_1 = arith.constant 0 : i32
    return %c0_i32, %c0_i32_0 : i32, i32
  }
  func.func @transform_10(%arg0: i32, %arg1: i32) -> (i32, i32, i32) {
    %c0_i32 = arith.constant 0 : i32
    %c0_i32_0 = arith.constant 0 : i32
    return %arg0, %arg1, %c0_i32 : i32, i32, i32
  }
}

module attributes {stable_mosaic.version = 11 : i64} {
  func.func @mamba_kernel(%arg0: i32, %arg1: i32, %arg2: memref<1x16x32xbf16, #tpu.memory_space<vmem>>, %arg3: memref<32x128xbf16, #tpu.memory_space<vmem>>, %arg4: memref<4x64xf32, #tpu.memory_space<vmem>>, %arg5: memref<1x64xf32, #tpu.memory_space<vmem>>, %arg6: memref<64x128xbf16, #tpu.memory_space<vmem>>, %arg7: memref<2x64xbf16, #tpu.memory_space<vmem>>, %arg8: memref<1x64xf32, #tpu.memory_space<vmem>>, %arg9: memref<16x64xf32, #tpu.memory_space<vmem>>, %arg10: memref<1x64xf32, #tpu.memory_space<vmem>>, %arg11: memref<64x32xbf16, #tpu.memory_space<vmem>>, %arg12: memref<1x16x32xf32, #tpu.memory_space<vmem>>, %arg13: memref<16x64xf32, #tpu.memory_space<vmem>>, %arg14: memref<24x64xf32, #tpu.memory_space<vmem>>, %arg15: memref<16x64xf32, #tpu.memory_space<vmem>>, %arg16: memref<16x32xf32, #tpu.memory_space<vmem>>, %arg17: memref<16x64xf32, #tpu.memory_space<vmem>>) attributes {dimension_semantics = [#tpu.dimension_semantics<parallel>, #tpu.dimension_semantics<arbitrary>], iteration_bounds = array<i64: 2, 2>, scalar_prefetch = 0 : i64, scratch_operands = 5 : i64, tpu.core_type = #tpu.core_type<tc>, window_params = [{transform_indices = @transform_0, window_bounds = array<i64: 1, 16, 32>}, {pipeline_mode = #tpu.pipeline_mode<synchronous>, transform_indices = @transform_1, window_bounds = array<i64: 32, 128>}, {pipeline_mode = #tpu.pipeline_mode<synchronous>, transform_indices = @transform_2, window_bounds = array<i64: 4, 64>}, {pipeline_mode = #tpu.pipeline_mode<synchronous>, transform_indices = @transform_3, window_bounds = array<i64: 1, 64>}, {pipeline_mode = #tpu.pipeline_mode<synchronous>, transform_indices = @transform_4, window_bounds = array<i64: 64, 128>}, {pipeline_mode = #tpu.pipeline_mode<synchronous>, transform_indices = @transform_5, window_bounds = array<i64: 2, 64>}, {pipeline_mode = #tpu.pipeline_mode<synchronous>, transform_indices = @transform_6, window_bounds = array<i64: 1, 64>}, {pipeline_mode = #tpu.pipeline_mode<synchronous>, transform_indices = @transform_7, window_bounds = array<i64: 16, 64>}, {pipeline_mode = #tpu.pipeline_mode<synchronous>, transform_indices = @transform_8, window_bounds = array<i64: 1, 64>}, {pipeline_mode = #tpu.pipeline_mode<synchronous>, transform_indices = @transform_9, window_bounds = array<i64: 64, 32>}, {transform_indices = @transform_10, window_bounds = array<i64: 1, 16, 32>}]} {
    %c0_i32 = arith.constant 0 : i32
    %0 = arith.cmpi eq, %arg1, %c0_i32 : i32
    %1 = arith.extui %0 : i1 to i32
    %c0_i32_0 = arith.constant 0 : i32
    %2 = arith.cmpi ne, %1, %c0_i32_0 : i32
    scf.if %2 {
      %cst_63 = arith.constant 0.000000e+00 : f32
      %99 = vector.broadcast %cst_63 : f32 to vector<16x64xf32>
      %c0_64 = arith.constant 0 : index
      %c0_65 = arith.constant 0 : index
      %100 = vector.load %arg13[%c0_64, %c0_65] : memref<16x64xf32, #tpu.memory_space<vmem>>, vector<16x64xf32>
      tpu.vector_store %arg13[%c0_64, %c0_65], %99 {strides = array<i32>} : memref<16x64xf32, #tpu.memory_space<vmem>>, vector<16x64xf32>,
      %cst_66 = arith.constant 0.000000e+00 : f32
      %101 = vector.broadcast %cst_66 : f32 to vector<8x64xf32>
      %c0_67 = arith.constant 0 : index
      %c0_68 = arith.constant 0 : index
      %102 = vector.load %arg14[%c0_67, %c0_68] : memref<24x64xf32, #tpu.memory_space<vmem>>, vector<8x64xf32>
      tpu.vector_store %arg14[%c0_67, %c0_68], %101 {strides = array<i32>} : memref<24x64xf32, #tpu.memory_space<vmem>>, vector<8x64xf32>,
    } else {
    }
    %c0 = arith.constant 0 : index
    %c0_1 = arith.constant 0 : index
    %c0_2 = arith.constant 0 : index
    %3 = vector.load %arg2[%c0, %c0_1, %c0_2] : memref<1x16x32xbf16, #tpu.memory_space<vmem>>, vector<1x16x32xbf16>
    %4 = vector.shape_cast %3 : vector<1x16x32xbf16> to vector<16x32xbf16>
    %c0_3 = arith.constant 0 : index
    %c0_4 = arith.constant 0 : index
    %5 = vector.load %arg3[%c0_3, %c0_4] : memref<32x128xbf16, #tpu.memory_space<vmem>>, vector<32x128xbf16>
    %cst = arith.constant dense<0.000000e+00> : vector<16x128xf32>
    %6 = tpu.matmul %4, %5, %cst {dimension_numbers = #tpu.dot_dimension_numbers<[1], [0], [0], [1], [0, 0, 1, 1], [], []>} : vector<16x32xbf16>, vector<32x128xbf16>, vector<16x128xf32> -> vector<16x128xf32>
    %7 = vector.extract_strided_slice %6 {offsets = [0, 0], sizes = [16, 64], strides = [1, 1]} : vector<16x128xf32> to vector<16x64xf32>
    %8 = vector.extract_strided_slice %6 {offsets = [0, 64], sizes = [16, 64], strides = [1, 1]} : vector<16x128xf32> to vector<16x64xf32>
    %c8 = arith.constant 8 : index
    %c0_5 = arith.constant 0 : index
    %9 = vector.load %arg14[%c8, %c0_5] : memref<24x64xf32, #tpu.memory_space<vmem>>, vector<16x64xf32>
    tpu.vector_store %arg14[%c8, %c0_5], %7 {strides = array<i32>} : memref<24x64xf32, #tpu.memory_space<vmem>>, vector<16x64xf32>,
    %cst_6 = arith.constant 0.000000e+00 : f32
    %10 = vector.broadcast %cst_6 : f32 to vector<16x64xf32>
    %c5 = arith.constant 5 : index
    %c0_7 = arith.constant 0 : index
    %11 = vector.load %arg14[%c5, %c0_7] : memref<24x64xf32, #tpu.memory_space<vmem>>, vector<16x64xf32>
    %c0_8 = arith.constant 0 : index
    %c0_9 = arith.constant 0 : index
    %12 = vector.load %arg4[%c0_8, %c0_9] : memref<4x64xf32, #tpu.memory_space<vmem>>, vector<1x64xf32>
    %13 = vector.broadcast %12 : vector<1x64xf32> to vector<16x64xf32>
    %14 = arith.mulf %11, %13 : vector<16x64xf32>
    %15 = arith.addf %10, %14 : vector<16x64xf32>
    %c6 = arith.constant 6 : index
    %c0_10 = arith.constant 0 : index
    %16 = vector.load %arg14[%c6, %c0_10] : memref<24x64xf32, #tpu.memory_space<vmem>>, vector<16x64xf32>
    %c1 = arith.constant 1 : index
    %c0_11 = arith.constant 0 : index
    %17 = vector.load %arg4[%c1, %c0_11] : memref<4x64xf32, #tpu.memory_space<vmem>>, vector<1x64xf32>
    %18 = vector.broadcast %17 : vector<1x64xf32> to vector<16x64xf32>
    %19 = arith.mulf %16, %18 : vector<16x64xf32>
    %20 = arith.addf %15, %19 : vector<16x64xf32>
    %c7 = arith.constant 7 : index
    %c0_12 = arith.constant 0 : index
    %21 = vector.load %arg14[%c7, %c0_12] : memref<24x64xf32, #tpu.memory_space<vmem>>, vector<16x64xf32>
    %c2 = arith.constant 2 : index
    %c0_13 = arith.constant 0 : index
    %22 = vector.load %arg4[%c2, %c0_13] : memref<4x64xf32, #tpu.memory_space<vmem>>, vector<1x64xf32>
    %23 = vector.broadcast %22 : vector<1x64xf32> to vector<16x64xf32>
    %24 = arith.mulf %21, %23 : vector<16x64xf32>
    %25 = arith.addf %20, %24 : vector<16x64xf32>
    %c8_14 = arith.constant 8 : index
    %c0_15 = arith.constant 0 : index
    %26 = vector.load %arg14[%c8_14, %c0_15] : memref<24x64xf32, #tpu.memory_space<vmem>>, vector<16x64xf32>
    %c3 = arith.constant 3 : index
    %c0_16 = arith.constant 0 : index
    %27 = vector.load %arg4[%c3, %c0_16] : memref<4x64xf32, #tpu.memory_space<vmem>>, vector<1x64xf32>
    %28 = vector.broadcast %27 : vector<1x64xf32> to vector<16x64xf32>
    %29 = arith.mulf %26, %28 : vector<16x64xf32>
    %30 = arith.addf %25, %29 : vector<16x64xf32>
    %c0_17 = arith.constant 0 : index
    %c0_18 = arith.constant 0 : index
    %31 = vector.load %arg5[%c0_17, %c0_18] : memref<1x64xf32, #tpu.memory_space<vmem>>, vector<1x64xf32>
    %32 = vector.broadcast %31 : vector<1x64xf32> to vector<16x64xf32>
    %33 = arith.addf %30, %32 : vector<16x64xf32>
    %c21 = arith.constant 21 : index
    %c0_19 = arith.constant 0 : index
    %34 = vector.load %arg14[%c21, %c0_19] : memref<24x64xf32, #tpu.memory_space<vmem>>, vector<3x64xf32>
    %c5_20 = arith.constant 5 : index
    %c0_21 = arith.constant 0 : index
    %35 = vector.load %arg14[%c5_20, %c0_21] : memref<24x64xf32, #tpu.memory_space<vmem>>, vector<3x64xf32>
    tpu.vector_store %arg14[%c5_20, %c0_21], %34 {strides = array<i32>} : memref<24x64xf32, #tpu.memory_space<vmem>>, vector<3x64xf32>,
    %cst_22 = arith.constant 0.000000e+00 : f32
    %36 = vector.broadcast %cst_22 : f32 to vector<16x64xf32>
    %37 = arith.subf %36, %33 : vector<16x64xf32>
    %38 = math.exp %37 : vector<16x64xf32>
    %cst_23 = arith.constant 1.000000e+00 : f32
    %39 = vector.broadcast %cst_23 : f32 to vector<16x64xf32>
    %40 = arith.addf %39, %38 : vector<16x64xf32>
    %cst_24 = arith.constant 1.000000e+00 : f32
    %41 = vector.broadcast %cst_24 : f32 to vector<16x64xf32>
    %42 = arith.divf %41, %40 : vector<16x64xf32>
    %43 = arith.mulf %33, %42 : vector<16x64xf32>
    %c8_25 = arith.constant 8 : index
    %c0_26 = arith.constant 0 : index
    %44 = vector.load %arg14[%c8_25, %c0_26] : memref<24x64xf32, #tpu.memory_space<vmem>>, vector<16x64xf32>
    tpu.vector_store %arg14[%c8_25, %c0_26], %43 {strides = array<i32>} : memref<24x64xf32, #tpu.memory_space<vmem>>, vector<16x64xf32>,
    %45 = arith.truncf %43 : vector<16x64xf32> to vector<16x64xbf16>
    %c0_27 = arith.constant 0 : index
    %c0_28 = arith.constant 0 : index
    %46 = vector.load %arg6[%c0_27, %c0_28] : memref<64x128xbf16, #tpu.memory_space<vmem>>, vector<64x128xbf16>
    %cst_29 = arith.constant dense<0.000000e+00> : vector<16x128xf32>
    %47 = tpu.matmul %45, %46, %cst_29 {dimension_numbers = #tpu.dot_dimension_numbers<[1], [0], [0], [1], [0, 0, 1, 1], [], []>} : vector<16x64xbf16>, vector<64x128xbf16>, vector<16x128xf32> -> vector<16x128xf32>
    %48 = vector.extract_strided_slice %47 {offsets = [0, 0], sizes = [16, 2], strides = [1, 1]} : vector<16x128xf32> to vector<16x2xf32>
    %49 = arith.truncf %48 : vector<16x2xf32> to vector<16x2xbf16>
    %c0_30 = arith.constant 0 : index
    %c0_31 = arith.constant 0 : index
    %50 = vector.load %arg7[%c0_30, %c0_31] : memref<2x64xbf16, #tpu.memory_space<vmem>>, vector<2x64xbf16>
    %cst_32 = arith.constant dense<0.000000e+00> : vector<16x64xf32>
    %51 = tpu.matmul %49, %50, %cst_32 {dimension_numbers = #tpu.dot_dimension_numbers<[1], [0], [0], [1], [0, 0, 1, 1], [], []>} : vector<16x2xbf16>, vector<2x64xbf16>, vector<16x64xf32> -> vector<16x64xf32>
    %c0_33 = arith.constant 0 : index
    %c0_34 = arith.constant 0 : index
    %52 = vector.load %arg8[%c0_33, %c0_34] : memref<1x64xf32, #tpu.memory_space<vmem>>, vector<1x64xf32>
    %53 = vector.broadcast %52 : vector<1x64xf32> to vector<16x64xf32>
    %54 = arith.addf %51, %53 : vector<16x64xf32>
    %cst_35 = arith.constant 2.000000e+01 : f32
    %55 = vector.broadcast %cst_35 : f32 to vector<16x64xf32>
    %56 = arith.cmpf ogt, %54, %55 : vector<16x64xf32>
    %cst_36 = arith.constant 2.000000e+01 : f32
    %57 = vector.broadcast %cst_36 : f32 to vector<16x64xf32>
    %58 = arith.minimumf %54, %57 : vector<16x64xf32>
    %59 = math.exp %58 : vector<16x64xf32>
    %cst_37 = arith.constant 1.000000e+00 : f32
    %60 = vector.broadcast %cst_37 : f32 to vector<16x64xf32>
    %61 = arith.addf %60, %59 : vector<16x64xf32>
    %62 = math.log %61 : vector<16x64xf32>
    %63 = arith.select %56, %54, %62 : vector<16x64xi1>, vector<16x64xf32>
    %c0_38 = arith.constant 0 : index
    %c0_39 = arith.constant 0 : index
    %64 = vector.load %arg15[%c0_38, %c0_39] : memref<16x64xf32, #tpu.memory_space<vmem>>, vector<16x64xf32>
    tpu.vector_store %arg15[%c0_38, %c0_39], %63 {strides = array<i32>} : memref<16x64xf32, #tpu.memory_space<vmem>>, vector<16x64xf32>,
    %65 = vector.extract_strided_slice %47 {offsets = [0, 2], sizes = [16, 32], strides = [1, 1]} : vector<16x128xf32> to vector<16x32xf32>
    %c0_40 = arith.constant 0 : index
    %c0_41 = arith.constant 0 : index
    %66 = vector.load %arg16[%c0_40, %c0_41] : memref<16x32xf32, #tpu.memory_space<vmem>>, vector<16x32xf32>
    tpu.vector_store %arg16[%c0_40, %c0_41], %65 {strides = array<i32>} : memref<16x32xf32, #tpu.memory_space<vmem>>, vector<16x32xf32>,
    %67 = tpu.iota {dimensions = array<i32: 0>} : vector<16x32xi32>
    %68 = tpu.iota {dimensions = array<i32: 1>} : vector<16x32xi32>
    %69 = arith.cmpi eq, %68, %67 : vector<16x32xi32>
    %70 = arith.extui %69 : vector<16x32xi1> to vector<16x32xi32>
    %71 = arith.sitofp %70 : vector<16x32xi32> to vector<16x32xf32>
    %c16_i32 = arith.constant 16 : i32
    %72 = vector.broadcast %c16_i32 : i32 to vector<16x32xi32>
    %73 = arith.addi %67, %72 : vector<16x32xi32>
    %74 = arith.cmpi eq, %68, %73 : vector<16x32xi32>
    %75 = arith.extui %74 : vector<16x32xi1> to vector<16x32xi32>
    %76 = arith.sitofp %75 : vector<16x32xi32> to vector<16x32xf32>
    %c0_42 = arith.constant 0 : index
    %c0_43 = arith.constant 0 : index
    %77 = vector.load %arg9[%c0_42, %c0_43] : memref<16x64xf32, #tpu.memory_space<vmem>>, vector<16x64xf32>
    %c0_44 = arith.constant 0 : index
    %c0_45 = arith.constant 0 : index
    %78 = vector.load %arg10[%c0_44, %c0_45] : memref<1x64xf32, #tpu.memory_space<vmem>>, vector<1x64xf32>
    %c0_46 = arith.constant 0 : index
    %c0_47 = arith.constant 0 : index
    %79 = vector.load %arg13[%c0_46, %c0_47] : memref<16x64xf32, #tpu.memory_space<vmem>>, vector<16x64xf32>
    %c0_i32_48 = arith.constant 0 : i32
    %c2_i32 = arith.constant 2 : i32
    %80 = arith.addi %c0_i32_48, %c2_i32 : i32
    %c1_i32 = arith.constant 1 : i32
    %81 = scf.for %arg18 = %c0_i32_48 to %80 step %c1_i32 iter_args(%arg19 = %79) -> (vector<16x64xf32>)  : i32 {
      %c8_i32 = arith.constant 8 : i32
      %99 = arith.muli %arg18, %c8_i32 : i32
      %100 = tpu.assume_multiple %99, 8 : i32
      %c0_i32_63 = arith.constant 0 : i32
      %101 = arith.addi %100, %c0_i32_63 : i32
      %102 = arith.index_cast %101 : i32 to index
      %c0_64 = arith.constant 0 : index
      %103 = vector.load %arg15[%102, %c0_64] : memref<16x64xf32, #tpu.memory_space<vmem>>, vector<1x64xf32>
      %c8_i32_65 = arith.constant 8 : i32
      %104 = arith.addi %c8_i32_65, %101 : i32
      %105 = arith.index_cast %104 : i32 to index
      %c0_66 = arith.constant 0 : index
      %106 = vector.load %arg14[%105, %c0_66] : memref<24x64xf32, #tpu.memory_space<vmem>>, vector<1x64xf32>
      %107 = arith.index_cast %101 : i32 to index
      %c0_67 = arith.constant 0 : index
      %108 = vector.load %arg16[%107, %c0_67] : memref<16x32xf32, #tpu.memory_space<vmem>>, vector<1x32xf32>
      %109 = vector.shape_cast %108 : vector<1x32xf32> to vector<1x32xf32>
      %110 = vector.broadcast %109 : vector<1x32xf32> to vector<16x32xf32>
      %111 = arith.mulf %110, %71 : vector<16x32xf32>
      %cst_68 = arith.constant dense<0.000000e+00> : vector<16xf32>
      %112 = vector.multi_reduction <add>, %111, %cst_68 [1] : vector<16x32xf32> to vector<16xf32>
      %113 = vector.shape_cast %112 : vector<16xf32> to vector<16x1xf32>
      %114 = arith.mulf %110, %76 : vector<16x32xf32>
      %cst_69 = arith.constant dense<0.000000e+00> : vector<16xf32>
      %115 = vector.multi_reduction <add>, %114, %cst_69 [1] : vector<16x32xf32> to vector<16xf32>
      %116 = vector.shape_cast %115 : vector<16xf32> to vector<16x1xf32>
      %117 = vector.broadcast %103 : vector<1x64xf32> to vector<16x64xf32>
      %118 = arith.mulf %77, %117 : vector<16x64xf32>
      %119 = math.exp %118 : vector<16x64xf32>
      %120 = arith.mulf %arg19, %119 : vector<16x64xf32>
      %121 = arith.mulf %103, %106 : vector<1x64xf32>
      %122 = vector.broadcast %113 : vector<16x1xf32> to vector<16x64xf32>
      %123 = vector.broadcast %121 : vector<1x64xf32> to vector<16x64xf32>
      %124 = arith.mulf %122, %123 : vector<16x64xf32>
      %125 = arith.addf %120, %124 : vector<16x64xf32>
      %126 = vector.broadcast %116 : vector<16x1xf32> to vector<16x64xf32>
      %127 = arith.mulf %126, %125 : vector<16x64xf32>
      %cst_70 = arith.constant dense<0.000000e+00> : vector<64xf32>
      %128 = vector.multi_reduction <add>, %127, %cst_70 [0] : vector<16x64xf32> to vector<64xf32>
      %129 = vector.shape_cast %128 : vector<64xf32> to vector<1x64xf32>
      %130 = arith.mulf %78, %106 : vector<1x64xf32>
      %131 = arith.addf %129, %130 : vector<1x64xf32>
      %c1_i32_71 = arith.constant 1 : i32
      %132 = arith.addi %100, %c1_i32_71 : i32
      %133 = arith.index_cast %132 : i32 to index
      %c0_72 = arith.constant 0 : index
      %134 = vector.load %arg15[%133, %c0_72] : memref<16x64xf32, #tpu.memory_space<vmem>>, vector<1x64xf32>
      %c8_i32_73 = arith.constant 8 : i32
      %135 = arith.addi %c8_i32_73, %132 : i32
      %136 = arith.index_cast %135 : i32 to index
      %c0_74 = arith.constant 0 : index
      %137 = vector.load %arg14[%136, %c0_74] : memref<24x64xf32, #tpu.memory_space<vmem>>, vector<1x64xf32>
      %138 = arith.index_cast %132 : i32 to index
      %c0_75 = arith.constant 0 : index
      %139 = vector.load %arg16[%138, %c0_75] : memref<16x32xf32, #tpu.memory_space<vmem>>, vector<1x32xf32>
      %140 = vector.shape_cast %139 : vector<1x32xf32> to vector<1x32xf32>
      %141 = vector.broadcast %140 : vector<1x32xf32> to vector<16x32xf32>
      %142 = arith.mulf %141, %71 : vector<16x32xf32>
      %cst_76 = arith.constant dense<0.000000e+00> : vector<16xf32>
      %143 = vector.multi_reduction <add>, %142, %cst_76 [1] : vector<16x32xf32> to vector<16xf32>
      %144 = vector.shape_cast %143 : vector<16xf32> to vector<16x1xf32>
      %145 = arith.mulf %141, %76 : vector<16x32xf32>
      %cst_77 = arith.constant dense<0.000000e+00> : vector<16xf32>
      %146 = vector.multi_reduction <add>, %145, %cst_77 [1] : vector<16x32xf32> to vector<16xf32>
      %147 = vector.shape_cast %146 : vector<16xf32> to vector<16x1xf32>
      %148 = vector.broadcast %134 : vector<1x64xf32> to vector<16x64xf32>
      %149 = arith.mulf %77, %148 : vector<16x64xf32>
      %150 = math.exp %149 : vector<16x64xf32>
      %151 = arith.mulf %125, %150 : vector<16x64xf32>
      %152 = arith.mulf %134, %137 : vector<1x64xf32>
      %153 = vector.broadcast %144 : vector<16x1xf32> to vector<16x64xf32>
      %154 = vector.broadcast %152 : vector<1x64xf32> to vector<16x64xf32>
      %155 = arith.mulf %153, %154 : vector<16x64xf32>
      %156 = arith.addf %151, %155 : vector<16x64xf32>
      %157 = vector.broadcast %147 : vector<16x1xf32> to vector<16x64xf32>
      %158 = arith.mulf %157, %156 : vector<16x64xf32>
      %cst_78 = arith.constant dense<0.000000e+00> : vector<64xf32>
      %159 = vector.multi_reduction <add>, %158, %cst_78 [0] : vector<16x64xf32> to vector<64xf32>
      %160 = vector.shape_cast %159 : vector<64xf32> to vector<1x64xf32>
      %161 = arith.mulf %78, %137 : vector<1x64xf32>
      %162 = arith.addf %160, %161 : vector<1x64xf32>
      %c2_i32_79 = arith.constant 2 : i32
      %163 = arith.addi %100, %c2_i32_79 : i32
      %164 = arith.index_cast %163 : i32 to index
      %c0_80 = arith.constant 0 : index
      %165 = vector.load %arg15[%164, %c0_80] : memref<16x64xf32, #tpu.memory_space<vmem>>, vector<1x64xf32>
      %c8_i32_81 = arith.constant 8 : i32
      %166 = arith.addi %c8_i32_81, %163 : i32
      %167 = arith.index_cast %166 : i32 to index
      %c0_82 = arith.constant 0 : index
      %168 = vector.load %arg14[%167, %c0_82] : memref<24x64xf32, #tpu.memory_space<vmem>>, vector<1x64xf32>
      %169 = arith.index_cast %163 : i32 to index
      %c0_83 = arith.constant 0 : index
      %170 = vector.load %arg16[%169, %c0_83] : memref<16x32xf32, #tpu.memory_space<vmem>>, vector<1x32xf32>
      %171 = vector.shape_cast %170 : vector<1x32xf32> to vector<1x32xf32>
      %172 = vector.broadcast %171 : vector<1x32xf32> to vector<16x32xf32>
      %173 = arith.mulf %172, %71 : vector<16x32xf32>
      %cst_84 = arith.constant dense<0.000000e+00> : vector<16xf32>
      %174 = vector.multi_reduction <add>, %173, %cst_84 [1] : vector<16x32xf32> to vector<16xf32>
      %175 = vector.shape_cast %174 : vector<16xf32> to vector<16x1xf32>
      %176 = arith.mulf %172, %76 : vector<16x32xf32>
      %cst_85 = arith.constant dense<0.000000e+00> : vector<16xf32>
      %177 = vector.multi_reduction <add>, %176, %cst_85 [1] : vector<16x32xf32> to vector<16xf32>
      %178 = vector.shape_cast %177 : vector<16xf32> to vector<16x1xf32>
      %179 = vector.broadcast %165 : vector<1x64xf32> to vector<16x64xf32>
      %180 = arith.mulf %77, %179 : vector<16x64xf32>
      %181 = math.exp %180 : vector<16x64xf32>
      %182 = arith.mulf %156, %181 : vector<16x64xf32>
      %183 = arith.mulf %165, %168 : vector<1x64xf32>
      %184 = vector.broadcast %175 : vector<16x1xf32> to vector<16x64xf32>
      %185 = vector.broadcast %183 : vector<1x64xf32> to vector<16x64xf32>
      %186 = arith.mulf %184, %185 : vector<16x64xf32>
      %187 = arith.addf %182, %186 : vector<16x64xf32>
      %188 = vector.broadcast %178 : vector<16x1xf32> to vector<16x64xf32>
      %189 = arith.mulf %188, %187 : vector<16x64xf32>
      %cst_86 = arith.constant dense<0.000000e+00> : vector<64xf32>
      %190 = vector.multi_reduction <add>, %189, %cst_86 [0] : vector<16x64xf32> to vector<64xf32>
      %191 = vector.shape_cast %190 : vector<64xf32> to vector<1x64xf32>
      %192 = arith.mulf %78, %168 : vector<1x64xf32>
      %193 = arith.addf %191, %192 : vector<1x64xf32>
      %c3_i32 = arith.constant 3 : i32
      %194 = arith.addi %100, %c3_i32 : i32
      %195 = arith.index_cast %194 : i32 to index
      %c0_87 = arith.constant 0 : index
      %196 = vector.load %arg15[%195, %c0_87] : memref<16x64xf32, #tpu.memory_space<vmem>>, vector<1x64xf32>
      %c8_i32_88 = arith.constant 8 : i32
      %197 = arith.addi %c8_i32_88, %194 : i32
      %198 = arith.index_cast %197 : i32 to index
      %c0_89 = arith.constant 0 : index
      %199 = vector.load %arg14[%198, %c0_89] : memref<24x64xf32, #tpu.memory_space<vmem>>, vector<1x64xf32>
      %200 = arith.index_cast %194 : i32 to index
      %c0_90 = arith.constant 0 : index
      %201 = vector.load %arg16[%200, %c0_90] : memref<16x32xf32, #tpu.memory_space<vmem>>, vector<1x32xf32>
      %202 = vector.shape_cast %201 : vector<1x32xf32> to vector<1x32xf32>
      %203 = vector.broadcast %202 : vector<1x32xf32> to vector<16x32xf32>
      %204 = arith.mulf %203, %71 : vector<16x32xf32>
      %cst_91 = arith.constant dense<0.000000e+00> : vector<16xf32>
      %205 = vector.multi_reduction <add>, %204, %cst_91 [1] : vector<16x32xf32> to vector<16xf32>
      %206 = vector.shape_cast %205 : vector<16xf32> to vector<16x1xf32>
      %207 = arith.mulf %203, %76 : vector<16x32xf32>
      %cst_92 = arith.constant dense<0.000000e+00> : vector<16xf32>
      %208 = vector.multi_reduction <add>, %207, %cst_92 [1] : vector<16x32xf32> to vector<16xf32>
      %209 = vector.shape_cast %208 : vector<16xf32> to vector<16x1xf32>
      %210 = vector.broadcast %196 : vector<1x64xf32> to vector<16x64xf32>
      %211 = arith.mulf %77, %210 : vector<16x64xf32>
      %212 = math.exp %211 : vector<16x64xf32>
      %213 = arith.mulf %187, %212 : vector<16x64xf32>
      %214 = arith.mulf %196, %199 : vector<1x64xf32>
      %215 = vector.broadcast %206 : vector<16x1xf32> to vector<16x64xf32>
      %216 = vector.broadcast %214 : vector<1x64xf32> to vector<16x64xf32>
      %217 = arith.mulf %215, %216 : vector<16x64xf32>
      %218 = arith.addf %213, %217 : vector<16x64xf32>
      %219 = vector.broadcast %209 : vector<16x1xf32> to vector<16x64xf32>
      %220 = arith.mulf %219, %218 : vector<16x64xf32>
      %cst_93 = arith.constant dense<0.000000e+00> : vector<64xf32>
      %221 = vector.multi_reduction <add>, %220, %cst_93 [0] : vector<16x64xf32> to vector<64xf32>
      %222 = vector.shape_cast %221 : vector<64xf32> to vector<1x64xf32>
      %223 = arith.mulf %78, %199 : vector<1x64xf32>
      %224 = arith.addf %222, %223 : vector<1x64xf32>
      %c4_i32 = arith.constant 4 : i32
      %225 = arith.addi %100, %c4_i32 : i32
      %226 = arith.index_cast %225 : i32 to index
      %c0_94 = arith.constant 0 : index
      %227 = vector.load %arg15[%226, %c0_94] : memref<16x64xf32, #tpu.memory_space<vmem>>, vector<1x64xf32>
      %c8_i32_95 = arith.constant 8 : i32
      %228 = arith.addi %c8_i32_95, %225 : i32
      %229 = arith.index_cast %228 : i32 to index
      %c0_96 = arith.constant 0 : index
      %230 = vector.load %arg14[%229, %c0_96] : memref<24x64xf32, #tpu.memory_space<vmem>>, vector<1x64xf32>
      %231 = arith.index_cast %225 : i32 to index
      %c0_97 = arith.constant 0 : index
      %232 = vector.load %arg16[%231, %c0_97] : memref<16x32xf32, #tpu.memory_space<vmem>>, vector<1x32xf32>
      %233 = vector.shape_cast %232 : vector<1x32xf32> to vector<1x32xf32>
      %234 = vector.broadcast %233 : vector<1x32xf32> to vector<16x32xf32>
      %235 = arith.mulf %234, %71 : vector<16x32xf32>
      %cst_98 = arith.constant dense<0.000000e+00> : vector<16xf32>
      %236 = vector.multi_reduction <add>, %235, %cst_98 [1] : vector<16x32xf32> to vector<16xf32>
      %237 = vector.shape_cast %236 : vector<16xf32> to vector<16x1xf32>
      %238 = arith.mulf %234, %76 : vector<16x32xf32>
      %cst_99 = arith.constant dense<0.000000e+00> : vector<16xf32>
      %239 = vector.multi_reduction <add>, %238, %cst_99 [1] : vector<16x32xf32> to vector<16xf32>
      %240 = vector.shape_cast %239 : vector<16xf32> to vector<16x1xf32>
      %241 = vector.broadcast %227 : vector<1x64xf32> to vector<16x64xf32>
      %242 = arith.mulf %77, %241 : vector<16x64xf32>
      %243 = math.exp %242 : vector<16x64xf32>
      %244 = arith.mulf %218, %243 : vector<16x64xf32>
      %245 = arith.mulf %227, %230 : vector<1x64xf32>
      %246 = vector.broadcast %237 : vector<16x1xf32> to vector<16x64xf32>
      %247 = vector.broadcast %245 : vector<1x64xf32> to vector<16x64xf32>
      %248 = arith.mulf %246, %247 : vector<16x64xf32>
      %249 = arith.addf %244, %248 : vector<16x64xf32>
      %250 = vector.broadcast %240 : vector<16x1xf32> to vector<16x64xf32>
      %251 = arith.mulf %250, %249 : vector<16x64xf32>
      %cst_100 = arith.constant dense<0.000000e+00> : vector<64xf32>
      %252 = vector.multi_reduction <add>, %251, %cst_100 [0] : vector<16x64xf32> to vector<64xf32>
      %253 = vector.shape_cast %252 : vector<64xf32> to vector<1x64xf32>
      %254 = arith.mulf %78, %230 : vector<1x64xf32>
      %255 = arith.addf %253, %254 : vector<1x64xf32>
      %c5_i32 = arith.constant 5 : i32
      %256 = arith.addi %100, %c5_i32 : i32
      %257 = arith.index_cast %256 : i32 to index
      %c0_101 = arith.constant 0 : index
      %258 = vector.load %arg15[%257, %c0_101] : memref<16x64xf32, #tpu.memory_space<vmem>>, vector<1x64xf32>
      %c8_i32_102 = arith.constant 8 : i32
      %259 = arith.addi %c8_i32_102, %256 : i32
      %260 = arith.index_cast %259 : i32 to index
      %c0_103 = arith.constant 0 : index
      %261 = vector.load %arg14[%260, %c0_103] : memref<24x64xf32, #tpu.memory_space<vmem>>, vector<1x64xf32>
      %262 = arith.index_cast %256 : i32 to index
      %c0_104 = arith.constant 0 : index
      %263 = vector.load %arg16[%262, %c0_104] : memref<16x32xf32, #tpu.memory_space<vmem>>, vector<1x32xf32>
      %264 = vector.shape_cast %263 : vector<1x32xf32> to vector<1x32xf32>
      %265 = vector.broadcast %264 : vector<1x32xf32> to vector<16x32xf32>
      %266 = arith.mulf %265, %71 : vector<16x32xf32>
      %cst_105 = arith.constant dense<0.000000e+00> : vector<16xf32>
      %267 = vector.multi_reduction <add>, %266, %cst_105 [1] : vector<16x32xf32> to vector<16xf32>
      %268 = vector.shape_cast %267 : vector<16xf32> to vector<16x1xf32>
      %269 = arith.mulf %265, %76 : vector<16x32xf32>
      %cst_106 = arith.constant dense<0.000000e+00> : vector<16xf32>
      %270 = vector.multi_reduction <add>, %269, %cst_106 [1] : vector<16x32xf32> to vector<16xf32>
      %271 = vector.shape_cast %270 : vector<16xf32> to vector<16x1xf32>
      %272 = vector.broadcast %258 : vector<1x64xf32> to vector<16x64xf32>
      %273 = arith.mulf %77, %272 : vector<16x64xf32>
      %274 = math.exp %273 : vector<16x64xf32>
      %275 = arith.mulf %249, %274 : vector<16x64xf32>
      %276 = arith.mulf %258, %261 : vector<1x64xf32>
      %277 = vector.broadcast %268 : vector<16x1xf32> to vector<16x64xf32>
      %278 = vector.broadcast %276 : vector<1x64xf32> to vector<16x64xf32>
      %279 = arith.mulf %277, %278 : vector<16x64xf32>
      %280 = arith.addf %275, %279 : vector<16x64xf32>
      %281 = vector.broadcast %271 : vector<16x1xf32> to vector<16x64xf32>
      %282 = arith.mulf %281, %280 : vector<16x64xf32>
      %cst_107 = arith.constant dense<0.000000e+00> : vector<64xf32>
      %283 = vector.multi_reduction <add>, %282, %cst_107 [0] : vector<16x64xf32> to vector<64xf32>
      %284 = vector.shape_cast %283 : vector<64xf32> to vector<1x64xf32>
      %285 = arith.mulf %78, %261 : vector<1x64xf32>
      %286 = arith.addf %284, %285 : vector<1x64xf32>
      %c6_i32 = arith.constant 6 : i32
      %287 = arith.addi %100, %c6_i32 : i32
      %288 = arith.index_cast %287 : i32 to index
      %c0_108 = arith.constant 0 : index
      %289 = vector.load %arg15[%288, %c0_108] : memref<16x64xf32, #tpu.memory_space<vmem>>, vector<1x64xf32>
      %c8_i32_109 = arith.constant 8 : i32
      %290 = arith.addi %c8_i32_109, %287 : i32
      %291 = arith.index_cast %290 : i32 to index
      %c0_110 = arith.constant 0 : index
      %292 = vector.load %arg14[%291, %c0_110] : memref<24x64xf32, #tpu.memory_space<vmem>>, vector<1x64xf32>
      %293 = arith.index_cast %287 : i32 to index
      %c0_111 = arith.constant 0 : index
      %294 = vector.load %arg16[%293, %c0_111] : memref<16x32xf32, #tpu.memory_space<vmem>>, vector<1x32xf32>
      %295 = vector.shape_cast %294 : vector<1x32xf32> to vector<1x32xf32>
      %296 = vector.broadcast %295 : vector<1x32xf32> to vector<16x32xf32>
      %297 = arith.mulf %296, %71 : vector<16x32xf32>
      %cst_112 = arith.constant dense<0.000000e+00> : vector<16xf32>
      %298 = vector.multi_reduction <add>, %297, %cst_112 [1] : vector<16x32xf32> to vector<16xf32>
      %299 = vector.shape_cast %298 : vector<16xf32> to vector<16x1xf32>
      %300 = arith.mulf %296, %76 : vector<16x32xf32>
      %cst_113 = arith.constant dense<0.000000e+00> : vector<16xf32>
      %301 = vector.multi_reduction <add>, %300, %cst_113 [1] : vector<16x32xf32> to vector<16xf32>
      %302 = vector.shape_cast %301 : vector<16xf32> to vector<16x1xf32>
      %303 = vector.broadcast %289 : vector<1x64xf32> to vector<16x64xf32>
      %304 = arith.mulf %77, %303 : vector<16x64xf32>
      %305 = math.exp %304 : vector<16x64xf32>
      %306 = arith.mulf %280, %305 : vector<16x64xf32>
      %307 = arith.mulf %289, %292 : vector<1x64xf32>
      %308 = vector.broadcast %299 : vector<16x1xf32> to vector<16x64xf32>
      %309 = vector.broadcast %307 : vector<1x64xf32> to vector<16x64xf32>
      %310 = arith.mulf %308, %309 : vector<16x64xf32>
      %311 = arith.addf %306, %310 : vector<16x64xf32>
      %312 = vector.broadcast %302 : vector<16x1xf32> to vector<16x64xf32>
      %313 = arith.mulf %312, %311 : vector<16x64xf32>
      %cst_114 = arith.constant dense<0.000000e+00> : vector<64xf32>
      %314 = vector.multi_reduction <add>, %313, %cst_114 [0] : vector<16x64xf32> to vector<64xf32>
      %315 = vector.shape_cast %314 : vector<64xf32> to vector<1x64xf32>
      %316 = arith.mulf %78, %292 : vector<1x64xf32>
      %317 = arith.addf %315, %316 : vector<1x64xf32>
      %c7_i32 = arith.constant 7 : i32
      %318 = arith.addi %100, %c7_i32 : i32
      %319 = arith.index_cast %318 : i32 to index
      %c0_115 = arith.constant 0 : index
      %320 = vector.load %arg15[%319, %c0_115] : memref<16x64xf32, #tpu.memory_space<vmem>>, vector<1x64xf32>
      %c8_i32_116 = arith.constant 8 : i32
      %321 = arith.addi %c8_i32_116, %318 : i32
      %322 = arith.index_cast %321 : i32 to index
      %c0_117 = arith.constant 0 : index
      %323 = vector.load %arg14[%322, %c0_117] : memref<24x64xf32, #tpu.memory_space<vmem>>, vector<1x64xf32>
      %324 = arith.index_cast %318 : i32 to index
      %c0_118 = arith.constant 0 : index
      %325 = vector.load %arg16[%324, %c0_118] : memref<16x32xf32, #tpu.memory_space<vmem>>, vector<1x32xf32>
      %326 = vector.shape_cast %325 : vector<1x32xf32> to vector<1x32xf32>
      %327 = vector.broadcast %326 : vector<1x32xf32> to vector<16x32xf32>
      %328 = arith.mulf %327, %71 : vector<16x32xf32>
      %cst_119 = arith.constant dense<0.000000e+00> : vector<16xf32>
      %329 = vector.multi_reduction <add>, %328, %cst_119 [1] : vector<16x32xf32> to vector<16xf32>
      %330 = vector.shape_cast %329 : vector<16xf32> to vector<16x1xf32>
      %331 = arith.mulf %327, %76 : vector<16x32xf32>
      %cst_120 = arith.constant dense<0.000000e+00> : vector<16xf32>
      %332 = vector.multi_reduction <add>, %331, %cst_120 [1] : vector<16x32xf32> to vector<16xf32>
      %333 = vector.shape_cast %332 : vector<16xf32> to vector<16x1xf32>
      %334 = vector.broadcast %320 : vector<1x64xf32> to vector<16x64xf32>
      %335 = arith.mulf %77, %334 : vector<16x64xf32>
      %336 = math.exp %335 : vector<16x64xf32>
      %337 = arith.mulf %311, %336 : vector<16x64xf32>
      %338 = arith.mulf %320, %323 : vector<1x64xf32>
      %339 = vector.broadcast %330 : vector<16x1xf32> to vector<16x64xf32>
      %340 = vector.broadcast %338 : vector<1x64xf32> to vector<16x64xf32>
      %341 = arith.mulf %339, %340 : vector<16x64xf32>
      %342 = arith.addf %337, %341 : vector<16x64xf32>
      %343 = vector.broadcast %333 : vector<16x1xf32> to vector<16x64xf32>
      %344 = arith.mulf %343, %342 : vector<16x64xf32>
      %cst_121 = arith.constant dense<0.000000e+00> : vector<64xf32>
      %345 = vector.multi_reduction <add>, %344, %cst_121 [0] : vector<16x64xf32> to vector<64xf32>
      %346 = vector.shape_cast %345 : vector<64xf32> to vector<1x64xf32>
      %347 = arith.mulf %78, %323 : vector<1x64xf32>
      %348 = arith.addf %346, %347 : vector<1x64xf32>
      %349 = tpu.concatenate %131, %162, %193, %224, %255, %286, %317, %348 in 0 : vector<1x64xf32>, vector<1x64xf32>, vector<1x64xf32>, vector<1x64xf32>, vector<1x64xf32>, vector<1x64xf32>, vector<1x64xf32>, vector<1x64xf32> -> vector<8x64xf32>
      %350 = arith.index_cast %100 : i32 to index
      %c0_122 = arith.constant 0 : index
      %351 = vector.load %arg17[%350, %c0_122] : memref<16x64xf32, #tpu.memory_space<vmem>>, vector<8x64xf32>
      tpu.vector_store %arg17[%350, %c0_122], %349 {strides = array<i32>} : memref<16x64xf32, #tpu.memory_space<vmem>>, vector<8x64xf32>,
      scf.yield %342 : vector<16x64xf32>
    }
    %c2_i32_49 = arith.constant 2 : i32
    %c0_50 = arith.constant 0 : index
    %c0_51 = arith.constant 0 : index
    %82 = vector.load %arg13[%c0_50, %c0_51] : memref<16x64xf32, #tpu.memory_space<vmem>>, vector<16x64xf32>
    tpu.vector_store %arg13[%c0_50, %c0_51], %81 {strides = array<i32>} : memref<16x64xf32, #tpu.memory_space<vmem>>, vector<16x64xf32>,
    %c0_52 = arith.constant 0 : index
    %c0_53 = arith.constant 0 : index
    %83 = vector.load %arg17[%c0_52, %c0_53] : memref<16x64xf32, #tpu.memory_space<vmem>>, vector<16x64xf32>
    %cst_54 = arith.constant 0.000000e+00 : f32
    %84 = vector.broadcast %cst_54 : f32 to vector<16x64xf32>
    %85 = arith.subf %84, %8 : vector<16x64xf32>
    %86 = math.exp %85 : vector<16x64xf32>
    %cst_55 = arith.constant 1.000000e+00 : f32
    %87 = vector.broadcast %cst_55 : f32 to vector<16x64xf32>
    %88 = arith.addf %87, %86 : vector<16x64xf32>
    %cst_56 = arith.constant 1.000000e+00 : f32
    %89 = vector.broadcast %cst_56 : f32 to vector<16x64xf32>
    %90 = arith.divf %89, %88 : vector<16x64xf32>
    %91 = arith.mulf %8, %90 : vector<16x64xf32>
    %92 = arith.mulf %83, %91 : vector<16x64xf32>
    %93 = arith.truncf %92 : vector<16x64xf32> to vector<16x64xbf16>
    %c0_57 = arith.constant 0 : index
    %c0_58 = arith.constant 0 : index
    %94 = vector.load %arg11[%c0_57, %c0_58] : memref<64x32xbf16, #tpu.memory_space<vmem>>, vector<64x32xbf16>
    %cst_59 = arith.constant dense<0.000000e+00> : vector<16x32xf32>
    %95 = tpu.matmul %93, %94, %cst_59 {dimension_numbers = #tpu.dot_dimension_numbers<[1], [0], [0], [1], [0, 0, 1, 1], [], []>} : vector<16x64xbf16>, vector<64x32xbf16>, vector<16x32xf32> -> vector<16x32xf32>
    %c0_60 = arith.constant 0 : index
    %c0_61 = arith.constant 0 : index
    %c0_62 = arith.constant 0 : index
    %96 = vector.load %arg12[%c0_60, %c0_61, %c0_62] : memref<1x16x32xf32, #tpu.memory_space<vmem>>, vector<1x16x32xf32>
    %97 = vector.shape_cast %96 : vector<1x16x32xf32> to vector<16x32xf32>
    %98 = vector.shape_cast %95 : vector<16x32xf32> to vector<1x16x32xf32>
    tpu.vector_store %arg12[%c0_60, %c0_61, %c0_62], %98 {strides = array<i32>} : memref<1x16x32xf32, #tpu.memory_space<vmem>>, vector<1x16x32xf32>,
    return
  }
  func.func @transform_0(%arg0: i32, %arg1: i32) -> (i32, i32, i32) {
    %c0_i32 = arith.constant 0 : i32
    %c0_i32_0 = arith.constant 0 : i32
    return %arg0, %arg1, %c0_i32 : i32, i32, i32
  }
  func.func @transform_1(%arg0: i32, %arg1: i32) -> (i32, i32) {
    %c0_i32 = arith.constant 0 : i32
    %c0_i32_0 = arith.constant 0 : i32
    %c0_i32_1 = arith.constant 0 : i32
    return %c0_i32, %c0_i32_0 : i32, i32
  }
  func.func @transform_2(%arg0: i32, %arg1: i32) -> (i32, i32) {
    %c0_i32 = arith.constant 0 : i32
    %c0_i32_0 = arith.constant 0 : i32
    %c0_i32_1 = arith.constant 0 : i32
    return %c0_i32, %c0_i32_0 : i32, i32
  }
  func.func @transform_3(%arg0: i32, %arg1: i32) -> (i32, i32) {
    %c0_i32 = arith.constant 0 : i32
    %c0_i32_0 = arith.constant 0 : i32
    %c0_i32_1 = arith.constant 0 : i32
    return %c0_i32, %c0_i32_0 : i32, i32
  }
  func.func @transform_4(%arg0: i32, %arg1: i32) -> (i32, i32) {
    %c0_i32 = arith.constant 0 : i32
    %c0_i32_0 = arith.constant 0 : i32
    %c0_i32_1 = arith.constant 0 : i32
    return %c0_i32, %c0_i32_0 : i32, i32
  }
  func.func @transform_5(%arg0: i32, %arg1: i32) -> (i32, i32) {
    %c0_i32 = arith.constant 0 : i32
    %c0_i32_0 = arith.constant 0 : i32
    %c0_i32_1 = arith.constant 0 : i32
    return %c0_i32, %c0_i32_0 : i32, i32
  }
  func.func @transform_6(%arg0: i32, %arg1: i32) -> (i32, i32) {
    %c0_i32 = arith.constant 0 : i32
    %c0_i32_0 = arith.constant 0 : i32
    %c0_i32_1 = arith.constant 0 : i32
    return %c0_i32, %c0_i32_0 : i32, i32
  }
  func.func @transform_7(%arg0: i32, %arg1: i32) -> (i32, i32) {
    %c0_i32 = arith.constant 0 : i32
    %c0_i32_0 = arith.constant 0 : i32
    %c0_i32_1 = arith.constant 0 : i32
    return %c0_i32, %c0_i32_0 : i32, i32
  }
  func.func @transform_8(%arg0: i32, %arg1: i32) -> (i32, i32) {
    %c0_i32 = arith.constant 0 : i32
    %c0_i32_0 = arith.constant 0 : i32
    %c0_i32_1 = arith.constant 0 : i32
    return %c0_i32, %c0_i32_0 : i32, i32
  }
  func.func @transform_9(%arg0: i32, %arg1: i32) -> (i32, i32) {
    %c0_i32 = arith.constant 0 : i32
    %c0_i32_0 = arith.constant 0 : i32
    %c0_i32_1 = arith.constant 0 : i32
    return %c0_i32, %c0_i32_0 : i32, i32
  }
  func.func @transform_10(%arg0: i32, %arg1: i32) -> (i32, i32, i32) {
    %c0_i32 = arith.constant 0 : i32
    %c0_i32_0 = arith.constant 0 : i32
    return %arg0, %arg1, %c0_i32 : i32, i32, i32
  }
}

</mosaic_0001>

<llo_original>
// kernel: tpu_custom_call.1
$region0: #{tpu_custom_call.1}
  #allocation0 [shape = 'u32[]', space=smem, size = 0x4, offset = 0x4, fixed_abs, tag = 'smem constant byte address 0x4 - core index']
  #allocation1 [shape = 'u32[72,128]{1,0:T(1,128)}', space=vmem, size = 0x9000, scoped, tag = 'internal scratch']
  #allocation2 [shape = 'f32[16,64]{1,0:T(8,128)}', space=vmem, size = 0x2000, scoped, tag = 'scratch operand']
  #allocation3 [shape = 'f32[24,64]{1,0:T(8,128)}', space=vmem, size = 0x3000, scoped, tag = 'scratch operand']
  #allocation4 [shape = 'f32[16,64]{1,0:T(8,128)}', space=vmem, size = 0x2000, scoped, tag = 'scratch operand']
  #allocation5 [shape = 'f32[16,32]{1,0:T(8,128)}', space=vmem, size = 0x2000, scoped, tag = 'scratch operand']
  #allocation6 [shape = 'f32[16,64]{1,0:T(8,128)}', space=vmem, size = 0x2000, scoped, tag = 'scratch operand']
  %s0 = inlined_call_operand.vmem [shape: bf16[2,32,32], index: 0, kind: input, shape index: {}]
  %s1 = inlined_call_operand.vmem [shape: bf16[32,128], index: 1, kind: input, shape index: {}]
  %s2 = inlined_call_operand.hbm [shape: f32[4,64], index: 2, kind: input, shape index: {}]
  %s3 = inlined_call_operand.vmem [shape: f32[1,64], index: 3, kind: input, shape index: {}]
  %s4 = inlined_call_operand.hbm [shape: bf16[64,128], index: 4, kind: input, shape index: {}]
  %s5 = inlined_call_operand.vmem [shape: bf16[2,64], index: 5, kind: input, shape index: {}]
  %s6 = inlined_call_operand.vmem [shape: f32[1,64], index: 6, kind: input, shape index: {}]
  %s7 = inlined_call_operand.hbm [shape: f32[16,64], index: 7, kind: input, shape index: {}]
  %s8 = inlined_call_operand.vmem [shape: f32[1,64], index: 8, kind: input, shape index: {}]
  %s9 = inlined_call_operand.vmem [shape: bf16[64,32], index: 9, kind: input, shape index: {}]
  %s10 = inlined_call_operand.hbm [shape: f32[2,32,32], index: 10, kind: output, shape index: {}]
  %s11 = sld [smem:[#allocation0]]
  $region96: #{tpu_custom_call.1} parent=0
    _
  %s13 = ssub.s32 1, %s11
  %s14 = scalar_select 0, %s13, %s11
  $region1: #{tpu_custom_call.1} parent=0
    #allocation7 [shape = 'u8[2048]{0}', space=vmem, size = 0x800, scoped, tag = 'input window, operand 2, single buffered']
    #allocation8 [shape = 's32[2]{0}', space=sflag, size = 0x8, scoped, tag = 'scoped memory for tpu_custom_call.1']
    #allocation9 [shape = 's32[2]{0}', space=sflag, size = 0x8, scoped, tag = 'scoped memory for tpu_custom_call.1']
    #allocation10 [shape = 'u8[16384]{0}', space=vmem, size = 0x4000, scoped, tag = 'input window, operand 4, single buffered']
    #allocation11 [shape = 's32[1]{0}', space=sflag, size = 0x4, scoped, tag = 'scoped memory for tpu_custom_call.1']
    #allocation12 [shape = 'u8[8192]{0}', space=vmem, size = 0x2000, scoped, tag = 'input window, operand 7, single buffered']
    #allocation13 [shape = 'u8[16384]{0}', space=vmem, size = 0x4000, scoped, tag = 'output window, operand 0']
    %15 = vsyncpa [#allocation8], 0
    %16 = vsyncpa [#allocation11], 0
    %17 = vsyncpa [#allocation9], 0
    %s18 = scalar_lea.sflag [#allocation9], 1
    %19 = vsyncpa %s18, 0
    loop: start=0, step=1, limit=6
    $region2: #{tpu_custom_call.1} parent=1 // loop_pre_header
      _
    $region3: #{tpu_custom_call.1} parent=1 // loop_header
      %s21 = sphi 0, %s25
      %p22 = scmp.ge.s32.totalorder %s21, 6
      %s28 = sphi 0, %s40
      %s29 = sphi 0, %s36
      %s30 = sphi 0, %s28
      %s31 = sphi 0, %s29
      %s32 = sphi 0, %s30
      %s33 = sphi 0, %s31
      %s45 = sphi 0, %s47
      %s48 = sphi 0, %s45
      %s49 = sphi 0, %s48
      %s65 = sphi 0, %s49
      %s69 = sphi 0, %s69
      %s71 = sphi 0, %s69
      %s72 = sphi 0, %s71
      %s86 = sphi 0, %s72
      %s90 = sphi 0, %s90
      %s92 = sphi 0, %s90
      %s93 = sphi 0, %s92
      %s107 = sphi 0, %s93
      %s111 = sphi 0, %s111
      %s113 = sphi 0, %s111
      %s114 = sphi 0, %s113
      %s128 = sphi 0, %s114
      %s132 = sphi 0, %s132
      %s134 = sphi 0, %s132
      %s135 = sphi 0, %s134
      %s149 = sphi 0, %s135
      %s153 = sphi 0, %s153
      %s155 = sphi 0, %s153
      %s156 = sphi 0, %s155
      %s170 = sphi 0, %s156
      %s174 = sphi 0, %s174
      %s176 = sphi 0, %s174
      %s177 = sphi 0, %s176
      %s191 = sphi 0, %s177
      %s195 = sphi 0, %s195
      %s197 = sphi 0, %s195
      %s198 = sphi 0, %s197
      %s212 = sphi 0, %s198
      %s216 = sphi 0, %s216
      %s218 = sphi 0, %s216
      %s219 = sphi 0, %s218
      %s233 = sphi 0, %s219
      %s237 = sphi 0, %s237
      %s239 = sphi 0, %s237
      %s240 = sphi 0, %s239
      %s254 = sphi 0, %s240
      %s262 = sphi 0, %s264
      %s265 = sphi 0, %s262
      %s266 = sphi 0, %s265
      %s282 = sphi 0, %s266
    $region4: #{tpu_custom_call.1} parent=1 // loop_header_branch
      %24 = sbr.rel (%p22) target = $region8
    $region5: #{tpu_custom_call.1} parent=1 // loop_body
      %s26 = ssub.s32 %s21, 1
      %s27 = ssub.s32 %s21, 2
      %s34 = sadd.s32 1, %s29
      %p35 = scmp.ge.s32.totalorder %s34, 2
      %s36 = scalar_select %p35, 0, %s34
      %s37 = sadd.s32 1, %s28
      %s38 = scalar_select %p35, %s37, %s28
      %p39 = scmp.ge.s32.totalorder %s38, 2
      %s40 = scalar_select %p39, 0, %s38
      %s41 = ssub.s32 %s28, %s40
      %s42 = ssub.s32 %s29, %s36
      %s43 = sor.u32 %s41, %s42
      %p44 = scmp.eq.s32.totalorder %s43, 0
      %s46 = sadd.s32 %s45, 1
      %s47 = scalar_select %p44, %s45, %s46
      %p50 = pneg %p44
      %p51 = scmp.eq.s32.totalorder %s21, 3
      %p52 = por %p50, %p51
      %p53 = scmp.ne.s32.totalorder %s45, %s48
      %p54 = scmp.eq.s32.totalorder %s21, 0
      %p55 = por %p53, %p54
      %p56 = scmp.ne.s32.totalorder %s45, %s48
      %p57 = scmp.eq.s32.totalorder %s26, 3
      %p58 = por %p56, %p57
      %p59 = scmp.ne.s32.totalorder %s48, %s49
      %p60 = scmp.eq.s32.totalorder %s26, 0
      %p61 = por %p59, %p60
      %p62 = scmp.ne.s32.totalorder %s48, %s49
      %p63 = scmp.eq.s32.totalorder %s27, 3
      %p64 = por %p62, %p63
      %p66 = scmp.ne.s32.totalorder %s49, %s65
      %p67 = scmp.eq.s32.totalorder %s27, 0
      %p68 = por %p66, %p67
      %s70 = sadd.s32 %s69, 1
      %p73 = scmp.eq.s32.totalorder %s21, 3
      %p74 = scmp.ne.s32.totalorder %s69, %s71
      %p75 = scmp.eq.s32.totalorder %s21, 0
      %p76 = por %p74, %p75
      %p77 = scmp.ne.s32.totalorder %s69, %s71
      %p78 = scmp.eq.s32.totalorder %s26, 3
      %p79 = por %p77, %p78
      %p80 = scmp.ne.s32.totalorder %s71, %s72
      %p81 = scmp.eq.s32.totalorder %s26, 0
      %p82 = por %p80, %p81
      %p83 = scmp.ne.s32.totalorder %s71, %s72
      %p84 = scmp.eq.s32.totalorder %s27, 3
      %p85 = por %p83, %p84
      %p87 = scmp.ne.s32.totalorder %s72, %s86
      %p88 = scmp.eq.s32.totalorder %s27, 0
      %p89 = por %p87, %p88
      %s91 = sadd.s32 %s90, 1
      %p94 = scmp.eq.s32.totalorder %s21, 3
      %p95 = scmp.ne.s32.totalorder %s90, %s92
      %p96 = scmp.eq.s32.totalorder %s21, 0
      %p97 = por %p95, %p96
      %p98 = scmp.ne.s32.totalorder %s90, %s92
      %p99 = scmp.eq.s32.totalorder %s26, 3
      %p100 = por %p98, %p99
      %p101 = scmp.ne.s32.totalorder %s92, %s93
      %p102 = scmp.eq.s32.totalorder %s26, 0
      %p103 = por %p101, %p102
      %p104 = scmp.ne.s32.totalorder %s92, %s93
      %p105 = scmp.eq.s32.totalorder %s27, 3
      %p106 = por %p104, %p105
      %p108 = scmp.ne.s32.totalorder %s93, %s107
      %p109 = scmp.eq.s32.totalorder %s27, 0
      %p110 = por %p108, %p109
      %s112 = sadd.s32 %s111, 1
      %p115 = scmp.eq.s32.totalorder %s21, 3
      %p116 = scmp.ne.s32.totalorder %s111, %s113
      %p117 = scmp.eq.s32.totalorder %s21, 0
      %p118 = por %p116, %p117
      %p119 = scmp.ne.s32.totalorder %s111, %s113
      %p120 = scmp.eq.s32.totalorder %s26, 3
      %p121 = por %p119, %p120
      %p122 = scmp.ne.s32.totalorder %s113, %s114
      %p123 = scmp.eq.s32.totalorder %s26, 0
      %p124 = por %p122, %p123
      %p125 = scmp.ne.s32.totalorder %s113, %s114
      %p126 = scmp.eq.s32.totalorder %s27, 3
      %p127 = por %p125, %p126
      %p129 = scmp.ne.s32.totalorder %s114, %s128
      %p130 = scmp.eq.s32.totalorder %s27, 0
      %p131 = por %p129, %p130
      %s133 = sadd.s32 %s132, 1
      %p136 = scmp.eq.s32.totalorder %s21, 3
      %p137 = scmp.ne.s32.totalorder %s132, %s134
      %p138 = scmp.eq.s32.totalorder %s21, 0
      %p139 = por %p137, %p138
      %p140 = scmp.ne.s32.totalorder %s132, %s134
      %p141 = scmp.eq.s32.totalorder %s26, 3
      %p142 = por %p140, %p141
      %p143 = scmp.ne.s32.totalorder %s134, %s135
      %p144 = scmp.eq.s32.totalorder %s26, 0
      %p145 = por %p143, %p144
      %p146 = scmp.ne.s32.totalorder %s134, %s135
      %p147 = scmp.eq.s32.totalorder %s27, 3
      %p148 = por %p146, %p147
      %p150 = scmp.ne.s32.totalorder %s135, %s149
      %p151 = scmp.eq.s32.totalorder %s27, 0
      %p152 = por %p150, %p151
      %s154 = sadd.s32 %s153, 1
      %p157 = scmp.eq.s32.totalorder %s21, 3
      %p158 = scmp.ne.s32.totalorder %s153, %s155
      %p159 = scmp.eq.s32.totalorder %s21, 0
      %p160 = por %p158, %p159
      %p161 = scmp.ne.s32.totalorder %s153, %s155
      %p162 = scmp.eq.s32.totalorder %s26, 3
      %p163 = por %p161, %p162
      %p164 = scmp.ne.s32.totalorder %s155, %s156
      %p165 = scmp.eq.s32.totalorder %s26, 0
      %p166 = por %p164, %p165
      %p167 = scmp.ne.s32.totalorder %s155, %s156
      %p168 = scmp.eq.s32.totalorder %s27, 3
      %p169 = por %p167, %p168
      %p171 = scmp.ne.s32.totalorder %s156, %s170
      %p172 = scmp.eq.s32.totalorder %s27, 0
      %p173 = por %p171, %p172
      %s175 = sadd.s32 %s174, 1
      %p178 = scmp.eq.s32.totalorder %s21, 3
      %p179 = scmp.ne.s32.totalorder %s174, %s176
      %p180 = scmp.eq.s32.totalorder %s21, 0
      %p181 = por %p179, %p180
      %p182 = scmp.ne.s32.totalorder %s174, %s176
      %p183 = scmp.eq.s32.totalorder %s26, 3
      %p184 = por %p182, %p183
      %p185 = scmp.ne.s32.totalorder %s176, %s177
      %p186 = scmp.eq.s32.totalorder %s26, 0
      %p187 = por %p185, %p186
      %p188 = scmp.ne.s32.totalorder %s176, %s177
      %p189 = scmp.eq.s32.totalorder %s27, 3
      %p190 = por %p188, %p189
      %p192 = scmp.ne.s32.totalorder %s177, %s191
      %p193 = scmp.eq.s32.totalorder %s27, 0
      %p194 = por %p192, %p193
      %s196 = sadd.s32 %s195, 1
      %p199 = scmp.eq.s32.totalorder %s21, 3
      %p200 = scmp.ne.s32.totalorder %s195, %s197
      %p201 = scmp.eq.s32.totalorder %s21, 0
      %p202 = por %p200, %p201
      %p203 = scmp.ne.s32.totalorder %s195, %s197
      %p204 = scmp.eq.s32.totalorder %s26, 3
      %p205 = por %p203, %p204
      %p206 = scmp.ne.s32.totalorder %s197, %s198
      %p207 = scmp.eq.s32.totalorder %s26, 0
      %p208 = por %p206, %p207
      %p209 = scmp.ne.s32.totalorder %s197, %s198
      %p210 = scmp.eq.s32.totalorder %s27, 3
      %p211 = por %p209, %p210
      %p213 = scmp.ne.s32.totalorder %s198, %s212
      %p214 = scmp.eq.s32.totalorder %s27, 0
      %p215 = por %p213, %p214
      %s217 = sadd.s32 %s216, 1
      %p220 = scmp.eq.s32.totalorder %s21, 3
      %p221 = scmp.ne.s32.totalorder %s216, %s218
      %p222 = scmp.eq.s32.totalorder %s21, 0
      %p223 = por %p221, %p222
      %p224 = scmp.ne.s32.totalorder %s216, %s218
      %p225 = scmp.eq.s32.totalorder %s26, 3
      %p226 = por %p224, %p225
      %p227 = scmp.ne.s32.totalorder %s218, %s219
      %p228 = scmp.eq.s32.totalorder %s26, 0
      %p229 = por %p227, %p228
      %p230 = scmp.ne.s32.totalorder %s218, %s219
      %p231 = scmp.eq.s32.totalorder %s27, 3
      %p232 = por %p230, %p231
      %p234 = scmp.ne.s32.totalorder %s219, %s233
      %p235 = scmp.eq.s32.totalorder %s27, 0
      %p236 = por %p234, %p235
      %s238 = sadd.s32 %s237, 1
      %p241 = scmp.eq.s32.totalorder %s21, 3
      %p242 = scmp.ne.s32.totalorder %s237, %s239
      %p243 = scmp.eq.s32.totalorder %s21, 0
      %p244 = por %p242, %p243
      %p245 = scmp.ne.s32.totalorder %s237, %s239
      %p246 = scmp.eq.s32.totalorder %s26, 3
      %p247 = por %p245, %p246
      %p248 = scmp.ne.s32.totalorder %s239, %s240
      %p249 = scmp.eq.s32.totalorder %s26, 0
      %p250 = por %p248, %p249
      %p251 = scmp.ne.s32.totalorder %s239, %s240
      %p252 = scmp.eq.s32.totalorder %s27, 3
      %p253 = por %p251, %p252
      %p255 = scmp.ne.s32.totalorder %s240, %s254
      %p256 = scmp.eq.s32.totalorder %s27, 0
      %p257 = por %p255, %p256
      %s258 = ssub.s32 %s28, %s40
      %s259 = ssub.s32 %s29, %s36
      %s260 = sor.u32 %s258, %s259
      %p261 = scmp.eq.s32.totalorder %s260, 0
      %s263 = sadd.s32 %s262, 1
      %s264 = scalar_select %p261, %s262, %s263
      %p267 = pneg %p261
      %p268 = scmp.eq.s32.totalorder %s21, 3
      %p269 = por %p267, %p268
      %p270 = scmp.ne.s32.totalorder %s262, %s265
      %p271 = scmp.eq.s32.totalorder %s21, 0
      %p272 = por %p270, %p271
      %p273 = scmp.ne.s32.totalorder %s262, %s265
      %p274 = scmp.eq.s32.totalorder %s26, 3
      %p275 = por %p273, %p274
      %p276 = scmp.ne.s32.totalorder %s265, %s266
      %p277 = scmp.eq.s32.totalorder %s26, 0
      %p278 = por %p276, %p277
      %p279 = scmp.ne.s32.totalorder %s265, %s266
      %p280 = scmp.eq.s32.totalorder %s27, 3
      %p281 = por %p279, %p280
      %p283 = scmp.ne.s32.totalorder %s266, %s282
      %p284 = scmp.eq.s32.totalorder %s27, 0
      %p285 = por %p283, %p284
      %p286 = scmp.le.s32.totalorder 1, %s21
      %p287 = scmp.lt.s32.totalorder %s21, 5
      %p288 = pnand %p286, %p287
      %p289 = pneg %p288
      // Predicated region
      $region9: #{tpu_custom_call.1} parent=5 // pred_check
        _
      $region10: #{tpu_custom_call.1} parent=5 // pred_check_branch
        %291 = sbr.rel (%p288) target = $region12
      $region11: #{tpu_custom_call.1} parent=5 // pred_region
        %s292 = ssub.s32 %s21, 1
        // Predicated region
        $region13: #{tpu_custom_call.1} parent=11 // pred_check
          %p293 = pneg %p82
        $region14: #{tpu_custom_call.1} parent=11 // pred_check_branch
          %295 = sbr.rel (%p293) target = $region16
        $region15: #{tpu_custom_call.1} parent=11 // pred_region
          _
        $region16: #{tpu_custom_call.1} parent=11 // pred_fallthru
          _
        // Predicated region
        $region17: #{tpu_custom_call.1} parent=11 // pred_check
          %p296 = pneg %p103
        $region18: #{tpu_custom_call.1} parent=11 // pred_check_branch
          %298 = sbr.rel (%p296) target = $region20
        $region19: #{tpu_custom_call.1} parent=11 // pred_region
          %300 = vsyncadd [#allocation8], 0
          %s302 = sshll.u32 %s2, 4
          %s303 = int_to_ptr.hbm [resolvable:$true] %s302
          %s304 = sshll.u32 [#allocation7], 4
          %s305 = int_to_ptr.vmem [resolvable:$true] %s304
          %307 = dma.hbm_to_vmem [thread:$0]  %s303, 64, %s305, [#allocation8]
        $region20: #{tpu_custom_call.1} parent=11 // pred_fallthru
          _
        // Predicated region
        $region21: #{tpu_custom_call.1} parent=11 // pred_check
          %p308 = pneg %p124
        $region22: #{tpu_custom_call.1} parent=11 // pred_check_branch
          %310 = sbr.rel (%p308) target = $region24
        $region23: #{tpu_custom_call.1} parent=11 // pred_region
          _
        $region24: #{tpu_custom_call.1} parent=11 // pred_fallthru
          _
        // Predicated region
        $region25: #{tpu_custom_call.1} parent=11 // pred_check
          %p311 = pneg %p145
        $region26: #{tpu_custom_call.1} parent=11 // pred_check_branch
          %313 = sbr.rel (%p311) target = $region28
        $region27: #{tpu_custom_call.1} parent=11 // pred_region
          %315 = vsyncadd [#allocation11], 0
          %s316 = sshll.u32 %s4, 4
          %s317 = int_to_ptr.hbm [resolvable:$true] %s316
          %s318 = sshll.u32 [#allocation10], 4
          %s319 = int_to_ptr.vmem [resolvable:$true] %s318
          %324 = dma.hbm_to_vmem [thread:$0]  %s317, 512, %s319, [#allocation11], 64, 64, 4
        $region28: #{tpu_custom_call.1} parent=11 // pred_fallthru
          _
        // Predicated region
        $region29: #{tpu_custom_call.1} parent=11 // pred_check
          %p325 = pneg %p166
        $region30: #{tpu_custom_call.1} parent=11 // pred_check_branch
          %327 = sbr.rel (%p325) target = $region32
        $region31: #{tpu_custom_call.1} parent=11 // pred_region
          _
        $region32: #{tpu_custom_call.1} parent=11 // pred_fallthru
          _
        // Predicated region
        $region33: #{tpu_custom_call.1} parent=11 // pred_check
          %p328 = pneg %p187
        $region34: #{tpu_custom_call.1} parent=11 // pred_check_branch
          %330 = sbr.rel (%p328) target = $region36
        $region35: #{tpu_custom_call.1} parent=11 // pred_region
          _
        $region36: #{tpu_custom_call.1} parent=11 // pred_fallthru
          _
        // Predicated region
        $region37: #{tpu_custom_call.1} parent=11 // pred_check
          %p331 = pneg %p208
        $region38: #{tpu_custom_call.1} parent=11 // pred_check_branch
          %333 = sbr.rel (%p331) target = $region40
        $region39: #{tpu_custom_call.1} parent=11 // pred_region
          %335 = vsyncadd [#allocation11], 0
          %s336 = sshll.u32 %s7, 4
          %s337 = int_to_ptr.hbm [resolvable:$true] %s336
          %s338 = sshll.u32 [#allocation12], 4
          %s339 = int_to_ptr.vmem [resolvable:$true] %s338
          %344 = dma.hbm_to_vmem [thread:$0]  %s337, 256, %s339, [#allocation11], 128, 128, 8
        $region40: #{tpu_custom_call.1} parent=11 // pred_fallthru
          _
        // Predicated region
        $region41: #{tpu_custom_call.1} parent=11 // pred_check
          %p345 = pneg %p229
        $region42: #{tpu_custom_call.1} parent=11 // pred_check_branch
          %347 = sbr.rel (%p345) target = $region44
        $region43: #{tpu_custom_call.1} parent=11 // pred_region
          _
        $region44: #{tpu_custom_call.1} parent=11 // pred_fallthru
          _
        // Predicated region
        $region45: #{tpu_custom_call.1} parent=11 // pred_check
          %p348 = pneg %p250
        $region46: #{tpu_custom_call.1} parent=11 // pred_check_branch
          %350 = sbr.rel (%p348) target = $region48
        $region47: #{tpu_custom_call.1} parent=11 // pred_region
          _
        $region48: #{tpu_custom_call.1} parent=11 // pred_fallthru
          _
      $region12: #{tpu_custom_call.1} parent=5 // pred_fallthru
        _
      %p351 = scmp.lt.s32.totalorder %s21, 4
      // Predicated region
      $region49: #{tpu_custom_call.1} parent=5 // pred_check
        %p352 = pneg %p351
      $region50: #{tpu_custom_call.1} parent=5 // pred_check_branch
        %354 = sbr.rel (%p352) target = $region52
      $region51: #{tpu_custom_call.1} parent=5 // pred_region
        // Predicated region
        $region53: #{tpu_custom_call.1} parent=51 // pred_check
          %p355 = pneg %p55
        $region54: #{tpu_custom_call.1} parent=51 // pred_check_branch
          %357 = sbr.rel (%p355) target = $region56
        $region55: #{tpu_custom_call.1} parent=51 // pred_region
          %s358 = smul.u32 2, %s29
          %p359 = scmp.lt.s32.totalorder %s28, 1
          %s360 = scalar_select %p359, %s28, 1
          %p361 = scmp.lt.s32.totalorder %s358, 3
          %s362 = scalar_select %p361, %s358, 3
          %s363 = smul.addr %s360, 4
          %s364 = sadd.s32 %s362, %s363
          %s365 = smul.addr %s364, 4
          %s366 = scalar_lea.vmem %s0, %s365
          %s367 = smul.u32 2, %s29
        $region56: #{tpu_custom_call.1} parent=51 // pred_fallthru
          _
      $region52: #{tpu_custom_call.1} parent=5 // pred_fallthru
        _
      %p368 = scmp.le.s32.totalorder 1, %s21
      %p369 = scmp.lt.s32.totalorder %s21, 5
      %p370 = pnand %p368, %p369
      %p371 = pneg %p370
      // Predicated region
      $region57: #{tpu_custom_call.1} parent=5 // pred_check
        _
      $region58: #{tpu_custom_call.1} parent=5 // pred_check_branch
        %373 = sbr.rel (%p370) target = $region60
      $region59: #{tpu_custom_call.1} parent=5 // pred_region
        %s374 = ssub.s32 %s21, 1
        // Predicated region
        $region61: #{tpu_custom_call.1} parent=59 // pred_check
          %p375 = pneg %p103
        $region62: #{tpu_custom_call.1} parent=59 // pred_check_branch
          %377 = sbr.rel (%p375) target = $region64
        $region63: #{tpu_custom_call.1} parent=59 // pred_region
          %379 = dma.done [#allocation8], 64
        $region64: #{tpu_custom_call.1} parent=59 // pred_fallthru
          _
        // Predicated region
        $region65: #{tpu_custom_call.1} parent=59 // pred_check
          %p380 = pneg %p145
        $region66: #{tpu_custom_call.1} parent=59 // pred_check_branch
          %382 = sbr.rel (%p380) target = $region68
        $region67: #{tpu_custom_call.1} parent=59 // pred_region
          %384 = dma.done [#allocation11], 512
        $region68: #{tpu_custom_call.1} parent=59 // pred_fallthru
          _
        // Predicated region
        $region69: #{tpu_custom_call.1} parent=59 // pred_check
          %p385 = pneg %p208
        $region70: #{tpu_custom_call.1} parent=59 // pred_check_branch
          %387 = sbr.rel (%p385) target = $region72
        $region71: #{tpu_custom_call.1} parent=59 // pred_region
          %389 = dma.done [#allocation11], 256
        $region72: #{tpu_custom_call.1} parent=59 // pred_fallthru
          _
        %s390 = smul.u32 2, %s31
        %p391 = scmp.lt.s32.totalorder %s30, 1
        %s392 = scalar_select %p391, %s30, 1
        %p393 = scmp.lt.s32.totalorder %s390, 3
        %s394 = scalar_select %p393, %s390, 3
        %s395 = smul.addr %s392, 4
        %s396 = sadd.s32 %s394, %s395
        %s397 = smul.addr %s396, 4
        %s398 = scalar_lea.vmem %s0, %s397
        %p399 = pneg %p61
        %p400 = pneg %p58
        %p401 = pneg %p82
        %p402 = pneg %p79
        %p403 = pneg %p103
        %p404 = pneg %p100
        %p405 = pneg %p124
        %p406 = pneg %p121
        %p407 = pneg %p145
        %p408 = pneg %p142
        %p409 = pneg %p166
        %p410 = pneg %p163
        %p411 = pneg %p187
        %p412 = pneg %p184
        %p413 = pneg %p208
        %p414 = pneg %p205
        %p415 = pneg %p229
        %p416 = pneg %p226
        %p417 = pneg %p250
        %p418 = pneg %p247
        %p419 = pneg %p278
        %p420 = pneg %p275
        %s421 = sand.u32 %s265, 1
        %s422 = scalar_lea.sflag [#allocation9], %s421
        %s423 = sand.u32 %s265, 1
        %s424 = smul.addr %s423, 16
        %s425 = scalar_lea.vmem [#allocation13], %s424
        %s426 = smul.u32 2, %s31
        %p427 = scmp.lt.s32.totalorder %s30, 1
        %s428 = scalar_select %p427, %s30, 1
        %p429 = scmp.lt.s32.totalorder %s426, 3
        %s430 = scalar_select %p429, %s426, 3
        %s431 = smul.addr %s428, 4
        %s432 = sadd.s32 %s430, %s431
        %s433 = smul.addr %s432, 4
        %s434 = scalar_lea.vmem %s0, %s433
        %s435 = smul.u32 2, %s31
        %s436 = smul.u32 2, %s31
        %p438 = scmp.eq.s32.totalorder %s31, 0
        // Predicated region
        $region73: #{tpu_custom_call.1} parent=59 // pred_check
          %p439 = pneg %p438
        $region74: #{tpu_custom_call.1} parent=59 // pred_check_branch
          %441 = sbr.rel (%p439) target = $region76
        $region75: #{tpu_custom_call.1} parent=59 // pred_region
          %vm442 = vcmask 523264
          %443 = vst.msk [vmem:[#allocation2] sm:$0xff] %vm442, 0.0
          %444 = vst.msk [vmem:[#allocation2 + $0x8] sm:$0xff] %vm442, 0.0
          %445 = vst.msk [vmem:[#allocation3] sm:$0xff] %vm442, 0.0
        $region76: #{tpu_custom_call.1} parent=59 // pred_fallthru
          _
        %v446 = vld [vmem:[%s434] sm:$0xf]
        %v447 = vld [vmem:[%s434 + $0x4] sm:$0xf]
        %v448 = vld [vmem:[%s1] sm:$0xf]
        %v449 = vld [vmem:[%s1 + $0x4] sm:$0xf]
        %v450 = vld [vmem:[%s1 + $0x8] sm:$0xf]
        %v451 = vld [vmem:[%s1 + $0xc] sm:$0xf]
        %v454 = vunpack.c.l.b16 %v446
        %v455 = vunpack.c.l.b16 %v447
        %v456 = vpack.c.b16 %v455, %v454
        %v461 = vunpack.c.l.b16 %v448
        %v462 = vunpack.c.l.b16 %v449
        %v463 = vunpack.c.l.b16 %v450
        %v464 = vunpack.c.l.b16 %v451
        %v465 = vpack.c.b16 %v462, %v461
        %v466 = vpack.c.b16 %v464, %v463
        %vm469 = vcmask 261120
        %v471 = vsel %vm469, %v456, 0
        %473 = vmatpush.bf16.msra.mxu0 0
        %474 = vmatpush.bf16.msra.mxu0 0
        %475 = vmatpush.bf16.msra.mxu0 0
        %476 = vmatpush.bf16.msra.mxu0 0
        %477 = vmatpush.bf16.msra.mxu0 0
        %478 = vmatpush.bf16.msra.mxu0 0
        %479 = vmatpush.bf16.msra.mxu0 %v466
        %480 = vmatpush.bf16.msra.mxu0 %v465
        %481 = vmatmul.bf16.gmra.mxu0 %v471
        %v482 = vpop.f32.mrf.mxu0
        %v483 = vadd.f32 0.0, %v482
        %v484 = vpop.f32.mrf.mxu0
        %v485 = vadd.f32 0.0, %v484
        %486 = vdwg.mxu0
        %vm487 = vcmask 523264
        %488 = vst.msk [vmem:[#allocation3 + $0x8] sm:$0xff] %vm487, %v483
        %489 = vst.msk [vmem:[#allocation3 + $0x10] sm:$0xff] %vm487, %v485
        %v490 = vld [vmem:[#allocation3 + $0x5] sm:$0xff]
        %v491 = vld [vmem:[#allocation3 + $0xd] sm:$0xff]
        %v492 = vld [vmem:[#allocation7] sm:$0x1]
        %v493 = vperm.slane %v492, 0
        %v494 = vmul.f32 %v490, %v493
        %v495 = vmul.f32 %v491, %v493
        %v496 = vadd.f32 %v494, 0.0
        %v497 = vadd.f32 %v495, 0.0
        %v498 = vld [vmem:[#allocation3 + $0x6] sm:$0xff]
        %v499 = vld [vmem:[#allocation3 + $0xe] sm:$0xff]
        %v500 = vld [vmem:[#allocation7 + $0x1] sm:$0x1]
        %v501 = vperm.slane %v500, 0
        %v502 = vmul.f32 %v498, %v501
        %v503 = vmul.f32 %v499, %v501
        %v504 = vadd.f32 %v496, %v502
        %v505 = vadd.f32 %v497, %v503
        %v506 = vld [vmem:[#allocation3 + $0x7] sm:$0xff]
        %v507 = vld [vmem:[#allocation3 + $0xf] sm:$0xff]
        %v508 = vld [vmem:[#allocation7 + $0x2] sm:$0x1]
        %v509 = vperm.slane %v508, 0
        %v510 = vmul.f32 %v506, %v509
        %v511 = vmul.f32 %v507, %v509
        %v512 = vadd.f32 %v504, %v510
        %v513 = vadd.f32 %v505, %v511
        %v514 = vld [vmem:[#allocation3 + $0x8] sm:$0xff]
        %v515 = vld [vmem:[#allocation3 + $0x10] sm:$0xff]
        %v516 = vld [vmem:[#allocation7 + $0x3] sm:$0x1]
        %v517 = vperm.slane %v516, 0
        %v518 = vmul.f32 %v514, %v517
        %v519 = vmul.f32 %v515, %v517
        %v520 = vadd.f32 %v512, %v518
        %v521 = vadd.f32 %v513, %v519
        %v522 = vld [vmem:[%s3] sm:$0x1]
        %v524 = vperm.slane %v522, 0
        %v526 = vadd.f32 %v520, %v524
        %v527 = vadd.f32 %v521, %v524
        %v528 = vld [vmem:[#allocation3 + $0x15] sm:$0x7]
        %vm529 = vcmask 518144
        %530 = vst.msk [vmem:[#allocation3 + $0x5] sm:$0x7] %vm529, %v528
        %v531 = vsub.f32 0.0, %v526
        %v532 = vsub.f32 0.0, %v527
        %v533 = vmul.f32 %v531, 1.442695
        %v534 = vpow.pop %v533
        %v535 = vmul.f32 %v532, 1.442695
        %v536 = vpow.pop %v535
        %v537 = vadd.f32 %v534, 1.0
        %v538 = vadd.f32 %v536, 1.0
        %v539 = vrcp.pop %v537
        %v540 = vmul.f32 %v537, %v539
        %v541 = vsub.f32 1.0, %v540
        %v542 = vmul.f32 %v539, %v541
        %v543 = vadd.f32 %v539, %v542
        %vm544 = vweird.f32 %v537
        %vm545 = vweird.f32 %v539
        %vm546 = vmor %vm544, %vm545
        %v547 = vsel %vm546, %v539, %v543
        %v548 = vand.u32 2147483647, %v537
        %vm549 = vcmp.eq.f32.partialorder %v548, 8.507059e+37
        %v550 = vand.u32 %v537, 2147483648
        %v551 = vor.u32 1.1754944e-38, %v550
        %v552 = vsel %vm549, %v551, %v547
        %v553 = vmul.f32 1.0, %v552
        %v554 = vrcp.pop %v538
        %v555 = vmul.f32 %v538, %v554
        %v556 = vsub.f32 1.0, %v555
        %v557 = vmul.f32 %v554, %v556
        %v558 = vadd.f32 %v554, %v557
        %vm559 = vweird.f32 %v538
        %vm560 = vweird.f32 %v554
        %vm561 = vmor %vm559, %vm560
        %v562 = vsel %vm561, %v554, %v558
        %v563 = vand.u32 2147483647, %v538
        %vm564 = vcmp.eq.f32.partialorder %v563, 8.507059e+37
        %v565 = vand.u32 %v538, 2147483648
        %v566 = vor.u32 1.1754944e-38, %v565
        %v567 = vsel %vm564, %v566, %v562
        %v568 = vmul.f32 1.0, %v567
        %v569 = vmul.f32 %v526, %v553
        %v570 = vmul.f32 %v527, %v568
        %571 = vst.msk [vmem:[#allocation3 + $0x8] sm:$0xff] %vm487, %v569
        %572 = vst.msk [vmem:[#allocation3 + $0x10] sm:$0xff] %vm487, %v570
        %v573 = vpack.c.bf16 %v570, %v569
        %v574 = vld [vmem:[#allocation10] sm:$0xf]
        %v575 = vld [vmem:[#allocation10 + $0x4] sm:$0xf]
        %v576 = vld [vmem:[#allocation10 + $0x8] sm:$0xf]
        %v577 = vld [vmem:[#allocation10 + $0xc] sm:$0xf]
        %v578 = vld [vmem:[#allocation10 + $0x10] sm:$0xf]
        %v579 = vld [vmem:[#allocation10 + $0x14] sm:$0xf]
        %v580 = vld [vmem:[#allocation10 + $0x18] sm:$0xf]
        %v581 = vld [vmem:[#allocation10 + $0x1c] sm:$0xf]
        %v590 = vunpack.c.l.b16 %v574
        %v591 = vunpack.c.l.b16 %v575
        %v592 = vunpack.c.l.b16 %v576
        %v593 = vunpack.c.l.b16 %v577
        %v594 = vunpack.c.l.b16 %v578
        %v595 = vunpack.c.l.b16 %v579
        %v596 = vunpack.c.l.b16 %v580
        %v597 = vunpack.c.l.b16 %v581
        %v598 = vpack.c.b16 %v591, %v590
        %v599 = vpack.c.b16 %v593, %v592
        %v600 = vpack.c.b16 %v595, %v594
        %v601 = vpack.c.b16 %v597, %v596
        %v607 = vsel %vm487, %v573, 0
        %609 = vmatpush.bf16.msra.mxu0 0
        %610 = vmatpush.bf16.msra.mxu0 0
        %611 = vmatpush.bf16.msra.mxu0 0
        %612 = vmatpush.bf16.msra.mxu0 0
        %613 = vmatpush.bf16.msra.mxu0 %v601
        %614 = vmatpush.bf16.msra.mxu0 %v600
        %615 = vmatpush.bf16.msra.mxu0 %v599
        %616 = vmatpush.bf16.msra.mxu0 %v598
        %617 = vmatmul.bf16.gmra.mxu0 %v607
        %v618 = vpop.f32.mrf.mxu0
        %v619 = vadd.f32 0.0, %v618
        %v620 = vpop.f32.mrf.mxu0
        %v621 = vadd.f32 0.0, %v620
        %622 = vdwg.mxu0
        %v623 = vpack.c.bf16 %v621, %v619
        %v624 = vld [vmem:[%s5] sm:$0x1]
        %v625 = vld [vmem:[%s6] sm:$0x1]
        %v627 = vperm.slane %v625, 0
        %vm629 = vcmask 15360
        %v631 = vsel %vm629, %v623, 0
        %vm633 = vcmask 1040384
        %v635 = vsel %vm633, %v624, 0
        %637 = vmatpush.bf16.msra.mxu0 0
        %638 = vmatpush.bf16.msra.mxu0 0
        %639 = vmatpush.bf16.msra.mxu0 0
        %640 = vmatpush.bf16.msra.mxu0 0
        %641 = vmatpush.bf16.msra.mxu0 0
        %642 = vmatpush.bf16.msra.mxu0 0
        %643 = vmatpush.bf16.msra.mxu0 0
        %644 = vmatpush.bf16.msra.mxu0 %v635
        %645 = vmatmul.bf16.gmra.mxu0 %v631
        %v646 = vpop.f32.mrf.mxu0
        %v647 = vadd.f32 %v627, %v646
        %v648 = vpop.f32.mrf.mxu0
        %v649 = vadd.f32 %v627, %v648
        %650 = vdwg.mxu0
        %vm651 = vcmp.gt.f32.partialorder %v647, 20.0
        %vm652 = vcmp.gt.f32.partialorder %v649, 20.0
        %v653 = vmin.f32 %v647, 20.0
        %v654 = vmin.f32 %v649, 20.0
        %v655 = vmul.f32 %v653, 1.442695
        %v656 = vpow.pop %v655
        %v657 = vmul.f32 %v654, 1.442695
        %v658 = vpow.pop %v657
        %v659 = vadd.f32 %v656, 1.0
        %v660 = vadd.f32 %v658, 1.0
        %v661 = vlog2.pop %v659
        %v662 = vmul.f32 %v661, 0.6931472
        %v663 = vlog2.pop %v660
        %v664 = vmul.f32 %v663, 0.6931472
        %v665 = vsel %vm651, %v647, %v662
        %v666 = vsel %vm652, %v649, %v664
        %667 = vst.msk [vmem:[#allocation4] sm:$0xff] %vm487, %v665
        %668 = vst.msk [vmem:[#allocation4 + $0x8] sm:$0xff] %vm487, %v666
        %671 = vrot.lane.b32.xlu0 %v619, 126
        %v672 = vpop.permute.xlu0 %671
        %673 = vrot.lane.b32.xlu0 %v621, 126
        %v674 = vpop.permute.xlu0 %673
        %677 = vst.msk [vmem:[#allocation5] sm:$0xff] %vm469, %v672
        %678 = vst.msk [vmem:[#allocation5 + $0x8] sm:$0xff] %vm469, %v674
        %v679 = vlaneseq
        %v680 = vshrl.u32 %v679, 7
        %v681 = vadd.s32 %v680, 8
        %v682 = vlaneseq
        %v683 = vand.u32 %v682, 127
        %vm684 = vcmp.eq.s32.totalorder %v683, %v680
        %vm685 = vcmp.eq.s32.totalorder %v683, %v681
        %v686 = vsel %vm684, 1, 0
        %v687 = vsel %vm685, 1, 0
        %v688 = vcvt.s32.f32 %v686
        %v689 = vcvt.s32.f32 %v687
        %v690 = vadd.s32 %v680, 16
        %v691 = vadd.s32 %v681, 16
        %vm692 = vcmp.eq.s32.totalorder %v683, %v690
        %vm693 = vcmp.eq.s32.totalorder %v683, %v691
        %v694 = vsel %vm692, 1, 0
        %v695 = vsel %vm693, 1, 0
        %v696 = vcvt.s32.f32 %v694
        %v697 = vcvt.s32.f32 %v695
        %v698 = vld [vmem:[#allocation12] sm:$0xff]
        %v699 = vld [vmem:[#allocation12 + $0x8] sm:$0xff]
        %v700 = vld [vmem:[%s8] sm:$0x1]
        %v701 = vld [vmem:[#allocation2] sm:$0xff]
        %v702 = vld [vmem:[#allocation2 + $0x8] sm:$0xff]
        loop: start=0, step=1, limit=2
        $region77: #{tpu_custom_call.1} parent=59 // loop_pre_header
          _
        $region78: #{tpu_custom_call.1} parent=59 // loop_header
          %s704 = sphi 0, %s708
          %p705 = scmp.ge.s32.totalorder %s704, 2
          %v709 = vphi %v701, %v1120
          %v710 = vphi %v702, %v1121
        $region79: #{tpu_custom_call.1} parent=59 // loop_header_branch
          %707 = sbr.rel (%p705) target = $region83
        $region80: #{tpu_custom_call.1} parent=59 // loop_body
          %s711 = smul.u32 %s704, 8
          %s712 = scalar_lea.vmem [#allocation4], %s711
          %v713 = vld [vmem:[%s712] sm:$0x1]
          %s714 = sadd.s32 %s711, 8
          %s715 = scalar_lea.vmem [#allocation3], %s714
          %v716 = vld [vmem:[%s715] sm:$0x1]
          %s717 = scalar_lea.vmem [#allocation5], %s711
          %v718 = vld [vmem:[%s717] sm:$0x1]
          %v719 = vperm.slane %v718, 0
          %v720 = vmul.f32 %v719, %v688
          %v721 = vmul.f32 %v719, %v689
          %v722 = vsel %vm469, %v720, 0.0
          %723 = vadd.xlane.f32.xlu0 %v722
          %v724 = vpop.xlane.xlu0 %723
          %v725 = vsel %vm469, %v721, 0.0
          %726 = vadd.xlane.f32.xlu0 %v725
          %v727 = vpop.xlane.xlu0 %726
          %v728 = vmul.f32 %v719, %v696
          %v729 = vmul.f32 %v719, %v697
          %v730 = vsel %vm469, %v728, 0.0
          %731 = vadd.xlane.f32.xlu0 %v730
          %v732 = vpop.xlane.xlu0 %731
          %v733 = vsel %vm469, %v729, 0.0
          %734 = vadd.xlane.f32.xlu0 %v733
          %v735 = vpop.xlane.xlu0 %734
          %v736 = vperm.slane %v713, 0
          %v737 = vmul.f32 %v698, %v736
          %v738 = vmul.f32 %v699, %v736
          %v739 = vmul.f32 %v737, 1.442695
          %v740 = vpow.pop %v739
          %v741 = vmul.f32 %v738, 1.442695
          %v742 = vpow.pop %v741
          %v743 = vmul.f32 %v709, %v740
          %v744 = vmul.f32 %v710, %v742
          %v745 = vmul.f32 %v713, %v716
          %v746 = vperm.slane %v745, 0
          %v747 = vmul.f32 %v724, %v746
          %v748 = vmul.f32 %v727, %v746
          %v749 = vadd.f32 %v743, %v747
          %v750 = vadd.f32 %v744, %v748
          %v751 = vmul.f32 %v732, %v749
          %v752 = vmul.f32 %v735, %v750
          %v753 = vsel %vm487, %v751, 0.0
          %v754 = vsel %vm487, %v752, 0.0
          %v755 = vadd.f32 %v753, %v754
          %v756 = vrot.slane %v755, 4
          %v757 = vadd.f32 %v755, %v756
          %v758 = vrot.slane %v757, 2
          %v759 = vadd.f32 %v757, %v758
          %v760 = vrot.slane %v759, 1
          %v761 = vadd.f32 %v759, %v760
          %v762 = vmul.f32 %v700, %v716
          %v763 = vadd.f32 %v761, %v762
          %s764 = sadd.s32 %s711, 1
          %s765 = scalar_lea.vmem [#allocation4], %s764
          %v766 = vld [vmem:[%s765] sm:$0x1]
          %s767 = sadd.s32 %s711, 9
          %s768 = scalar_lea.vmem [#allocation3], %s767
          %v769 = vld [vmem:[%s768] sm:$0x1]
          %s770 = scalar_lea.vmem [#allocation5], %s764
          %v771 = vld [vmem:[%s770] sm:$0x1]
          %v772 = vperm.slane %v771, 0
          %v773 = vmul.f32 %v772, %v688
          %v774 = vmul.f32 %v772, %v689
          %v775 = vsel %vm469, %v773, 0.0
          %776 = vadd.xlane.f32.xlu0 %v775
          %v777 = vpop.xlane.xlu0 %776
          %v778 = vsel %vm469, %v774, 0.0
          %779 = vadd.xlane.f32.xlu0 %v778
          %v780 = vpop.xlane.xlu0 %779
          %v781 = vmul.f32 %v772, %v696
          %v782 = vmul.f32 %v772, %v697
          %v783 = vsel %vm469, %v781, 0.0
          %784 = vadd.xlane.f32.xlu0 %v783
          %v785 = vpop.xlane.xlu0 %784
          %v786 = vsel %vm469, %v782, 0.0
          %787 = vadd.xlane.f32.xlu0 %v786
          %v788 = vpop.xlane.xlu0 %787
          %v789 = vperm.slane %v766, 0
          %v790 = vmul.f32 %v698, %v789
          %v791 = vmul.f32 %v699, %v789
          %v792 = vmul.f32 %v790, 1.442695
          %v793 = vpow.pop %v792
          %v794 = vmul.f32 %v791, 1.442695
          %v795 = vpow.pop %v794
          %v796 = vmul.f32 %v749, %v793
          %v797 = vmul.f32 %v750, %v795
          %v798 = vmul.f32 %v766, %v769
          %v799 = vperm.slane %v798, 0
          %v800 = vmul.f32 %v777, %v799
          %v801 = vmul.f32 %v780, %v799
          %v802 = vadd.f32 %v796, %v800
          %v803 = vadd.f32 %v797, %v801
          %v804 = vmul.f32 %v785, %v802
          %v805 = vmul.f32 %v788, %v803
          %v806 = vsel %vm487, %v804, 0.0
          %v807 = vsel %vm487, %v805, 0.0
          %v808 = vadd.f32 %v806, %v807
          %v809 = vrot.slane %v808, 4
          %v810 = vadd.f32 %v808, %v809
          %v811 = vrot.slane %v810, 2
          %v812 = vadd.f32 %v810, %v811
          %v813 = vrot.slane %v812, 1
          %v814 = vadd.f32 %v812, %v813
          %v815 = vmul.f32 %v700, %v769
          %v816 = vadd.f32 %v814, %v815
          %s817 = sadd.s32 %s711, 2
          %s818 = scalar_lea.vmem [#allocation4], %s817
          %v819 = vld [vmem:[%s818] sm:$0x1]
          %s820 = sadd.s32 %s711, 10
          %s821 = scalar_lea.vmem [#allocation3], %s820
          %v822 = vld [vmem:[%s821] sm:$0x1]
          %s823 = scalar_lea.vmem [#allocation5], %s817
          %v824 = vld [vmem:[%s823] sm:$0x1]
          %v825 = vperm.slane %v824, 0
          %v826 = vmul.f32 %v825, %v688
          %v827 = vmul.f32 %v825, %v689
          %v828 = vsel %vm469, %v826, 0.0
          %829 = vadd.xlane.f32.xlu0 %v828
          %v830 = vpop.xlane.xlu0 %829
          %v831 = vsel %vm469, %v827, 0.0
          %832 = vadd.xlane.f32.xlu0 %v831
          %v833 = vpop.xlane.xlu0 %832
          %v834 = vmul.f32 %v825, %v696
          %v835 = vmul.f32 %v825, %v697
          %v836 = vsel %vm469, %v834, 0.0
          %837 = vadd.xlane.f32.xlu0 %v836
          %v838 = vpop.xlane.xlu0 %837
          %v839 = vsel %vm469, %v835, 0.0
          %840 = vadd.xlane.f32.xlu0 %v839
          %v841 = vpop.xlane.xlu0 %840
          %v842 = vperm.slane %v819, 0
          %v843 = vmul.f32 %v698, %v842
          %v844 = vmul.f32 %v699, %v842
          %v845 = vmul.f32 %v843, 1.442695
          %v846 = vpow.pop %v845
          %v847 = vmul.f32 %v844, 1.442695
          %v848 = vpow.pop %v847
          %v849 = vmul.f32 %v802, %v846
          %v850 = vmul.f32 %v803, %v848
          %v851 = vmul.f32 %v819, %v822
          %v852 = vperm.slane %v851, 0
          %v853 = vmul.f32 %v830, %v852
          %v854 = vmul.f32 %v833, %v852
          %v855 = vadd.f32 %v849, %v853
          %v856 = vadd.f32 %v850, %v854
          %v857 = vmul.f32 %v838, %v855
          %v858 = vmul.f32 %v841, %v856
          %v859 = vsel %vm487, %v857, 0.0
          %v860 = vsel %vm487, %v858, 0.0
          %v861 = vadd.f32 %v859, %v860
          %v862 = vrot.slane %v861, 4
          %v863 = vadd.f32 %v861, %v862
          %v864 = vrot.slane %v863, 2
          %v865 = vadd.f32 %v863, %v864
          %v866 = vrot.slane %v865, 1
          %v867 = vadd.f32 %v865, %v866
          %v868 = vmul.f32 %v700, %v822
          %v869 = vadd.f32 %v867, %v868
          %s870 = sadd.s32 %s711, 3
          %s871 = scalar_lea.vmem [#allocation4], %s870
          %v872 = vld [vmem:[%s871] sm:$0x1]
          %s873 = sadd.s32 %s711, 11
          %s874 = scalar_lea.vmem [#allocation3], %s873
          %v875 = vld [vmem:[%s874] sm:$0x1]
          %s876 = scalar_lea.vmem [#allocation5], %s870
          %v877 = vld [vmem:[%s876] sm:$0x1]
          %v878 = vperm.slane %v877, 0
          %v879 = vmul.f32 %v878, %v688
          %v880 = vmul.f32 %v878, %v689
          %v881 = vsel %vm469, %v879, 0.0
          %882 = vadd.xlane.f32.xlu0 %v881
          %v883 = vpop.xlane.xlu0 %882
          %v884 = vsel %vm469, %v880, 0.0
          %885 = vadd.xlane.f32.xlu0 %v884
          %v886 = vpop.xlane.xlu0 %885
          %v887 = vmul.f32 %v878, %v696
          %v888 = vmul.f32 %v878, %v697
          %v889 = vsel %vm469, %v887, 0.0
          %890 = vadd.xlane.f32.xlu0 %v889
          %v891 = vpop.xlane.xlu0 %890
          %v892 = vsel %vm469, %v888, 0.0
          %893 = vadd.xlane.f32.xlu0 %v892
          %v894 = vpop.xlane.xlu0 %893
          %v895 = vperm.slane %v872, 0
          %v896 = vmul.f32 %v698, %v895
          %v897 = vmul.f32 %v699, %v895
          %v898 = vmul.f32 %v896, 1.442695
          %v899 = vpow.pop %v898
          %v900 = vmul.f32 %v897, 1.442695
          %v901 = vpow.pop %v900
          %v902 = vmul.f32 %v855, %v899
          %v903 = vmul.f32 %v856, %v901
          %v904 = vmul.f32 %v872, %v875
          %v905 = vperm.slane %v904, 0
          %v906 = vmul.f32 %v883, %v905
          %v907 = vmul.f32 %v886, %v905
          %v908 = vadd.f32 %v902, %v906
          %v909 = vadd.f32 %v903, %v907
          %v910 = vmul.f32 %v891, %v908
          %v911 = vmul.f32 %v894, %v909
          %v912 = vsel %vm487, %v910, 0.0
          %v913 = vsel %vm487, %v911, 0.0
          %v914 = vadd.f32 %v912, %v913
          %v915 = vrot.slane %v914, 4
          %v916 = vadd.f32 %v914, %v915
          %v917 = vrot.slane %v916, 2
          %v918 = vadd.f32 %v916, %v917
          %v919 = vrot.slane %v918, 1
          %v920 = vadd.f32 %v918, %v919
          %v921 = vmul.f32 %v700, %v875
          %v922 = vadd.f32 %v920, %v921
          %s923 = sadd.s32 %s711, 4
          %s924 = scalar_lea.vmem [#allocation4], %s923
          %v925 = vld [vmem:[%s924] sm:$0x1]
          %s926 = sadd.s32 %s711, 12
          %s927 = scalar_lea.vmem [#allocation3], %s926
          %v928 = vld [vmem:[%s927] sm:$0x1]
          %s929 = scalar_lea.vmem [#allocation5], %s923
          %v930 = vld [vmem:[%s929] sm:$0x1]
          %v931 = vperm.slane %v930, 0
          %v932 = vmul.f32 %v931, %v688
          %v933 = vmul.f32 %v931, %v689
          %v934 = vsel %vm469, %v932, 0.0
          %935 = vadd.xlane.f32.xlu0 %v934
          %v936 = vpop.xlane.xlu0 %935
          %v937 = vsel %vm469, %v933, 0.0
          %938 = vadd.xlane.f32.xlu0 %v937
          %v939 = vpop.xlane.xlu0 %938
          %v940 = vmul.f32 %v931, %v696
          %v941 = vmul.f32 %v931, %v697
          %v942 = vsel %vm469, %v940, 0.0
          %943 = vadd.xlane.f32.xlu0 %v942
          %v944 = vpop.xlane.xlu0 %943
          %v945 = vsel %vm469, %v941, 0.0
          %946 = vadd.xlane.f32.xlu0 %v945
          %v947 = vpop.xlane.xlu0 %946
          %v948 = vperm.slane %v925, 0
          %v949 = vmul.f32 %v698, %v948
          %v950 = vmul.f32 %v699, %v948
          %v951 = vmul.f32 %v949, 1.442695
          %v952 = vpow.pop %v951
          %v953 = vmul.f32 %v950, 1.442695
          %v954 = vpow.pop %v953
          %v955 = vmul.f32 %v908, %v952
          %v956 = vmul.f32 %v909, %v954
          %v957 = vmul.f32 %v925, %v928
          %v958 = vperm.slane %v957, 0
          %v959 = vmul.f32 %v936, %v958
          %v960 = vmul.f32 %v939, %v958
          %v961 = vadd.f32 %v955, %v959
          %v962 = vadd.f32 %v956, %v960
          %v963 = vmul.f32 %v944, %v961
          %v964 = vmul.f32 %v947, %v962
          %v965 = vsel %vm487, %v963, 0.0
          %v966 = vsel %vm487, %v964, 0.0
          %v967 = vadd.f32 %v965, %v966
          %v968 = vrot.slane %v967, 4
          %v969 = vadd.f32 %v967, %v968
          %v970 = vrot.slane %v969, 2
          %v971 = vadd.f32 %v969, %v970
          %v972 = vrot.slane %v971, 1
          %v973 = vadd.f32 %v971, %v972
          %v974 = vmul.f32 %v700, %v928
          %v975 = vadd.f32 %v973, %v974
          %s976 = sadd.s32 %s711, 5
          %s977 = scalar_lea.vmem [#allocation4], %s976
          %v978 = vld [vmem:[%s977] sm:$0x1]
          %s979 = sadd.s32 %s711, 13
          %s980 = scalar_lea.vmem [#allocation3], %s979
          %v981 = vld [vmem:[%s980] sm:$0x1]
          %s982 = scalar_lea.vmem [#allocation5], %s976
          %v983 = vld [vmem:[%s982] sm:$0x1]
          %v984 = vperm.slane %v983, 0
          %v985 = vmul.f32 %v984, %v688
          %v986 = vmul.f32 %v984, %v689
          %v987 = vsel %vm469, %v985, 0.0
          %988 = vadd.xlane.f32.xlu0 %v987
          %v989 = vpop.xlane.xlu0 %988
          %v990 = vsel %vm469, %v986, 0.0
          %991 = vadd.xlane.f32.xlu0 %v990
          %v992 = vpop.xlane.xlu0 %991
          %v993 = vmul.f32 %v984, %v696
          %v994 = vmul.f32 %v984, %v697
          %v995 = vsel %vm469, %v993, 0.0
          %996 = vadd.xlane.f32.xlu0 %v995
          %v997 = vpop.xlane.xlu0 %996
          %v998 = vsel %vm469, %v994, 0.0
          %999 = vadd.xlane.f32.xlu0 %v998
          %v1000 = vpop.xlane.xlu0 %999
          %v1001 = vperm.slane %v978, 0
          %v1002 = vmul.f32 %v698, %v1001
          %v1003 = vmul.f32 %v699, %v1001
          %v1004 = vmul.f32 %v1002, 1.442695
          %v1005 = vpow.pop %v1004
          %v1006 = vmul.f32 %v1003, 1.442695
          %v1007 = vpow.pop %v1006
          %v1008 = vmul.f32 %v961, %v1005
          %v1009 = vmul.f32 %v962, %v1007
          %v1010 = vmul.f32 %v978, %v981
          %v1011 = vperm.slane %v1010, 0
          %v1012 = vmul.f32 %v989, %v1011
          %v1013 = vmul.f32 %v992, %v1011
          %v1014 = vadd.f32 %v1008, %v1012
          %v1015 = vadd.f32 %v1009, %v1013
          %v1016 = vmul.f32 %v997, %v1014
          %v1017 = vmul.f32 %v1000, %v1015
          %v1018 = vsel %vm487, %v1016, 0.0
          %v1019 = vsel %vm487, %v1017, 0.0
          %v1020 = vadd.f32 %v1018, %v1019
          %v1021 = vrot.slane %v1020, 4
          %v1022 = vadd.f32 %v1020, %v1021
          %v1023 = vrot.slane %v1022, 2
          %v1024 = vadd.f32 %v1022, %v1023
          %v1025 = vrot.slane %v1024, 1
          %v1026 = vadd.f32 %v1024, %v1025
          %v1027 = vmul.f32 %v700, %v981
          %v1028 = vadd.f32 %v1026, %v1027
          %s1029 = sadd.s32 %s711, 6
          %s1030 = scalar_lea.vmem [#allocation4], %s1029
          %v1031 = vld [vmem:[%s1030] sm:$0x1]
          %s1032 = sadd.s32 %s711, 14
          %s1033 = scalar_lea.vmem [#allocation3], %s1032
          %v1034 = vld [vmem:[%s1033] sm:$0x1]
          %s1035 = scalar_lea.vmem [#allocation5], %s1029
          %v1036 = vld [vmem:[%s1035] sm:$0x1]
          %v1037 = vperm.slane %v1036, 0
          %v1038 = vmul.f32 %v1037, %v688
          %v1039 = vmul.f32 %v1037, %v689
          %v1040 = vsel %vm469, %v1038, 0.0
          %1041 = vadd.xlane.f32.xlu0 %v1040
          %v1042 = vpop.xlane.xlu0 %1041
          %v1043 = vsel %vm469, %v1039, 0.0
          %1044 = vadd.xlane.f32.xlu0 %v1043
          %v1045 = vpop.xlane.xlu0 %1044
          %v1046 = vmul.f32 %v1037, %v696
          %v1047 = vmul.f32 %v1037, %v697
          %v1048 = vsel %vm469, %v1046, 0.0
          %1049 = vadd.xlane.f32.xlu0 %v1048
          %v1050 = vpop.xlane.xlu0 %1049
          %v1051 = vsel %vm469, %v1047, 0.0
          %1052 = vadd.xlane.f32.xlu0 %v1051
          %v1053 = vpop.xlane.xlu0 %1052
          %v1054 = vperm.slane %v1031, 0
          %v1055 = vmul.f32 %v698, %v1054
          %v1056 = vmul.f32 %v699, %v1054
          %v1057 = vmul.f32 %v1055, 1.442695
          %v1058 = vpow.pop %v1057
          %v1059 = vmul.f32 %v1056, 1.442695
          %v1060 = vpow.pop %v1059
          %v1061 = vmul.f32 %v1014, %v1058
          %v1062 = vmul.f32 %v1015, %v1060
          %v1063 = vmul.f32 %v1031, %v1034
          %v1064 = vperm.slane %v1063, 0
          %v1065 = vmul.f32 %v1042, %v1064
          %v1066 = vmul.f32 %v1045, %v1064
          %v1067 = vadd.f32 %v1061, %v1065
          %v1068 = vadd.f32 %v1062, %v1066
          %v1069 = vmul.f32 %v1050, %v1067
          %v1070 = vmul.f32 %v1053, %v1068
          %v1071 = vsel %vm487, %v1069, 0.0
          %v1072 = vsel %vm487, %v1070, 0.0
          %v1073 = vadd.f32 %v1071, %v1072
          %v1074 = vrot.slane %v1073, 4
          %v1075 = vadd.f32 %v1073, %v1074
          %v1076 = vrot.slane %v1075, 2
          %v1077 = vadd.f32 %v1075, %v1076
          %v1078 = vrot.slane %v1077, 1
          %v1079 = vadd.f32 %v1077, %v1078
          %v1080 = vmul.f32 %v700, %v1034
          %v1081 = vadd.f32 %v1079, %v1080
          %s1082 = sadd.s32 %s711, 7
          %s1083 = scalar_lea.vmem [#allocation4], %s1082
          %v1084 = vld [vmem:[%s1083] sm:$0x1]
          %s1085 = sadd.s32 %s711, 15
          %s1086 = scalar_lea.vmem [#allocation3], %s1085
          %v1087 = vld [vmem:[%s1086] sm:$0x1]
          %s1088 = scalar_lea.vmem [#allocation5], %s1082
          %v1089 = vld [vmem:[%s1088] sm:$0x1]
          %v1090 = vperm.slane %v1089, 0
          %v1091 = vmul.f32 %v1090, %v688
          %v1092 = vmul.f32 %v1090, %v689
          %v1093 = vsel %vm469, %v1091, 0.0
          %1094 = vadd.xlane.f32.xlu0 %v1093
          %v1095 = vpop.xlane.xlu0 %1094
          %v1096 = vsel %vm469, %v1092, 0.0
          %1097 = vadd.xlane.f32.xlu0 %v1096
          %v1098 = vpop.xlane.xlu0 %1097
          %v1099 = vmul.f32 %v1090, %v696
          %v1100 = vmul.f32 %v1090, %v697
          %v1101 = vsel %vm469, %v1099, 0.0
          %1102 = vadd.xlane.f32.xlu0 %v1101
          %v1103 = vpop.xlane.xlu0 %1102
          %v1104 = vsel %vm469, %v1100, 0.0
          %1105 = vadd.xlane.f32.xlu0 %v1104
          %v1106 = vpop.xlane.xlu0 %1105
          %v1107 = vperm.slane %v1084, 0
          %v1108 = vmul.f32 %v698, %v1107
          %v1109 = vmul.f32 %v699, %v1107
          %v1110 = vmul.f32 %v1108, 1.442695
          %v1111 = vpow.pop %v1110
          %v1112 = vmul.f32 %v1109, 1.442695
          %v1113 = vpow.pop %v1112
          %v1114 = vmul.f32 %v1067, %v1111
          %v1115 = vmul.f32 %v1068, %v1113
          %v1116 = vmul.f32 %v1084, %v1087
          %v1117 = vperm.slane %v1116, 0
          %v1118 = vmul.f32 %v1095, %v1117
          %v1119 = vmul.f32 %v1098, %v1117
          %v1120 = vadd.f32 %v1114, %v1118
          %v1121 = vadd.f32 %v1115, %v1119
          %v1122 = vmul.f32 %v1103, %v1120
          %v1123 = vmul.f32 %v1106, %v1121
          %v1124 = vsel %vm487, %v1122, 0.0
          %v1125 = vsel %vm487, %v1123, 0.0
          %v1126 = vadd.f32 %v1124, %v1125
          %v1127 = vrot.slane %v1126, 4
          %v1128 = vadd.f32 %v1126, %v1127
          %v1129 = vrot.slane %v1128, 2
          %v1130 = vadd.f32 %v1128, %v1129
          %v1131 = vrot.slane %v1130, 1
          %v1132 = vadd.f32 %v1130, %v1131
          %v1133 = vmul.f32 %v700, %v1087
          %v1134 = vadd.f32 %v1132, %v1133
          %v1136 = vrot.slane %v816, 7
          %v1139 = vrot.slane %v869, 6
          %v1142 = vrot.slane %v922, 5
          %v1145 = vrot.slane %v975, 4
          %v1148 = vrot.slane %v1028, 3
          %v1151 = vrot.slane %v1081, 2
          %v1154 = vrot.slane %v1134, 1
          %v1156 = vsel %vm633, %v763, %v1136
          %vm1157 = vcmask 1041408
          %v1158 = vsel %vm1157, %v1156, %v1139
          %vm1159 = vcmask 1042432
          %v1160 = vsel %vm1159, %v1158, %v1142
          %vm1161 = vcmask 1043456
          %v1162 = vsel %vm1161, %v1160, %v1145
          %vm1163 = vcmask 1044480
          %v1164 = vsel %vm1163, %v1162, %v1148
          %vm1165 = vcmask 1045504
          %v1166 = vsel %vm1165, %v1164, %v1151
          %vm1167 = vcmask 1046528
          %v1168 = vsel %vm1167, %v1166, %v1154
          %s1169 = scalar_lea.vmem [#allocation6], %s711
          %1170 = vst.msk [vmem:[%s1169] sm:$0xff] %vm487, %v1168
        $region81: #{tpu_custom_call.1} parent=59 // loop_footer
          %s708 = sadd.s32 1, %s704
        $region82: #{tpu_custom_call.1} parent=59 // loop_footer_branch
          %703 = sbr.rel target = $region78
        $region83: #{tpu_custom_call.1} parent=59 // loop_exit
          _
        %1171 = vst.msk [vmem:[#allocation2] sm:$0xff] %vm487, %v709
        %1172 = vst.msk [vmem:[#allocation2 + $0x8] sm:$0xff] %vm487, %v710
        %v1173 = vld [vmem:[#allocation6] sm:$0xff]
        %v1174 = vld [vmem:[#allocation6 + $0x8] sm:$0xff]
        %v1175 = vsub.f32 0.0, %v483
        %v1176 = vsub.f32 0.0, %v485
        %v1177 = vmul.f32 %v1175, 1.442695
        %v1178 = vpow.pop %v1177
        %v1179 = vmul.f32 %v1176, 1.442695
        %v1180 = vpow.pop %v1179
        %v1181 = vadd.f32 %v1178, 1.0
        %v1182 = vadd.f32 %v1180, 1.0
        %v1183 = vrcp.pop %v1181
        %v1184 = vmul.f32 %v1181, %v1183
        %v1185 = vsub.f32 1.0, %v1184
        %v1186 = vmul.f32 %v1183, %v1185
        %v1187 = vadd.f32 %v1183, %v1186
        %vm1188 = vweird.f32 %v1181
        %vm1189 = vweird.f32 %v1183
        %vm1190 = vmor %vm1188, %vm1189
        %v1191 = vsel %vm1190, %v1183, %v1187
        %v1192 = vand.u32 2147483647, %v1181
        %vm1193 = vcmp.eq.f32.partialorder %v1192, 8.507059e+37
        %v1194 = vand.u32 %v1181, 2147483648
        %v1195 = vor.u32 1.1754944e-38, %v1194
        %v1196 = vsel %vm1193, %v1195, %v1191
        %v1197 = vmul.f32 1.0, %v1196
        %v1198 = vrcp.pop %v1182
        %v1199 = vmul.f32 %v1182, %v1198
        %v1200 = vsub.f32 1.0, %v1199
        %v1201 = vmul.f32 %v1198, %v1200
        %v1202 = vadd.f32 %v1198, %v1201
        %vm1203 = vweird.f32 %v1182
        %vm1204 = vweird.f32 %v1198
        %vm1205 = vmor %vm1203, %vm1204
        %v1206 = vsel %vm1205, %v1198, %v1202
        %v1207 = vand.u32 2147483647, %v1182
        %vm1208 = vcmp.eq.f32.partialorder %v1207, 8.507059e+37
        %v1209 = vand.u32 %v1182, 2147483648
        %v1210 = vor.u32 1.1754944e-38, %v1209
        %v1211 = vsel %vm1208, %v1210, %v1206
        %v1212 = vmul.f32 1.0, %v1211
        %v1213 = vmul.f32 %v483, %v1197
        %v1214 = vmul.f32 %v485, %v1212
        %1217 = vrot.lane.b32.xlu0 %v1213, 64
        %v1218 = vpop.permute.xlu0 %1217
        %1219 = vrot.lane.b32.xlu0 %v1214, 64
        %v1220 = vpop.permute.xlu0 %1219
        %v1223 = vmul.f32 %v1173, %v1218
        %v1224 = vmul.f32 %v1174, %v1220
        %v1225 = vpack.c.bf16 %v1224, %v1223
        %v1226 = vld [vmem:[%s9] sm:$0xf]
        %v1227 = vld [vmem:[%s9 + $0x4] sm:$0xf]
        %v1228 = vld [vmem:[%s9 + $0x8] sm:$0xf]
        %v1229 = vld [vmem:[%s9 + $0xc] sm:$0xf]
        %v1230 = vld [vmem:[%s9 + $0x10] sm:$0xf]
        %v1231 = vld [vmem:[%s9 + $0x14] sm:$0xf]
        %v1232 = vld [vmem:[%s9 + $0x18] sm:$0xf]
        %v1233 = vld [vmem:[%s9 + $0x1c] sm:$0xf]
        %v1242 = vunpack.c.l.b16 %v1226
        %v1243 = vunpack.c.l.b16 %v1227
        %v1244 = vunpack.c.l.b16 %v1228
        %v1245 = vunpack.c.l.b16 %v1229
        %v1246 = vunpack.c.l.b16 %v1230
        %v1247 = vunpack.c.l.b16 %v1231
        %v1248 = vunpack.c.l.b16 %v1232
        %v1249 = vunpack.c.l.b16 %v1233
        %v1250 = vpack.c.b16 %v1243, %v1242
        %v1251 = vpack.c.b16 %v1245, %v1244
        %v1252 = vpack.c.b16 %v1247, %v1246
        %v1253 = vpack.c.b16 %v1249, %v1248
        %v1259 = vsel %vm487, %v1225, 0
        %1261 = vmatpush.bf16.msra.mxu0 0
        %1262 = vmatpush.bf16.msra.mxu0 0
        %1263 = vmatpush.bf16.msra.mxu0 0
        %1264 = vmatpush.bf16.msra.mxu0 0
        %1265 = vmatpush.bf16.msra.mxu0 %v1253
        %1266 = vmatpush.bf16.msra.mxu0 %v1252
        %1267 = vmatpush.bf16.msra.mxu0 %v1251
        %1268 = vmatpush.bf16.msra.mxu0 %v1250
        %1269 = vmatmul.bf16.gmra.mxu0 %v1259
        %v1270 = vpop.f32.mrf.mxu0
        %v1271 = vadd.f32 0.0, %v1270
        %v1272 = vpop.f32.mrf.mxu0
        %v1273 = vadd.f32 0.0, %v1272
        %1274 = vdwg.mxu0
        %1275 = vst.msk [vmem:[%s425] sm:$0xff] %vm469, %v1271
        %1276 = vst.msk [vmem:[%s425 + $0x8] sm:$0xff] %vm469, %v1273
        %s1277 = sand.u32 %s265, 1
        %s1278 = scalar_lea.sflag [#allocation9], %s1277
        %s1279 = sand.u32 %s265, 1
        %s1280 = smul.addr %s1279, 16
        %s1281 = scalar_lea.vmem [#allocation13], %s1280
        // Predicated region
        $region84: #{tpu_custom_call.1} parent=59 // pred_check
          %p1282 = pneg %p275
        $region85: #{tpu_custom_call.1} parent=59 // pred_check_branch
          %1284 = sbr.rel (%p1282) target = $region87
        $region86: #{tpu_custom_call.1} parent=59 // pred_region
          %s1285 = smul.u32 2, %s31
          %1287 = vsyncadd %s1278, 0
          %s1288 = smul.addr %s30, 4
          %s1289 = sadd.s32 %s1285, %s1288
          %s1290 = smul.addr %s1289, 8
          %s1291 = scalar_lea.hbm %s10, %s1290
          %s1292 = sshll.u32 %s1281, 4
          %s1293 = int_to_ptr.vmem [resolvable:$true] %s1292
          %s1294 = sshll.u32 %s1291, 4
          %s1295 = int_to_ptr.hbm [resolvable:$true] %s1294
          %1300 = dma.vmem_to_hbm [thread:$0]  %s1293, 256, %s1295, %s1278, 128, 128, 8
        $region87: #{tpu_custom_call.1} parent=59 // pred_fallthru
          _
      $region60: #{tpu_custom_call.1} parent=5 // pred_fallthru
        _
      %p1301 = scmp.le.s32.totalorder 2, %s21
      // Predicated region
      $region88: #{tpu_custom_call.1} parent=5 // pred_check
        %p1302 = pneg %p1301
      $region89: #{tpu_custom_call.1} parent=5 // pred_check_branch
        %1304 = sbr.rel (%p1302) target = $region91
      $region90: #{tpu_custom_call.1} parent=5 // pred_region
        %s1305 = ssub.s32 %s21, 2
        // Predicated region
        $region92: #{tpu_custom_call.1} parent=90 // pred_check
          %p1306 = pneg %p281
        $region93: #{tpu_custom_call.1} parent=90 // pred_check_branch
          %1308 = sbr.rel (%p1306) target = $region95
        $region94: #{tpu_custom_call.1} parent=90 // pred_region
          %s1309 = sand.u32 %s266, 1
          %s1310 = scalar_lea.sflag [#allocation9], %s1309
          %s1311 = sand.u32 %s266, 1
          %s1312 = smul.addr %s1311, 16
          %s1313 = scalar_lea.vmem [#allocation13], %s1312
          %1315 = dma.done %s1310, 256
        $region95: #{tpu_custom_call.1} parent=90 // pred_fallthru
          _
      $region91: #{tpu_custom_call.1} parent=5 // pred_fallthru
        _
    $region6: #{tpu_custom_call.1} parent=1 // loop_footer
      %s25 = sadd.s32 1, %s21
    $region7: #{tpu_custom_call.1} parent=1 // loop_footer_branch
      %20 = sbr.rel target = $region3
    $region8: #{tpu_custom_call.1} parent=1 // loop_exit
      _
    %1316 = vsyncpa [#allocation8], 1
    %s1317 = scalar_lea.sflag [#allocation8], 1
    %1318 = vsyncpa %s1317, 1
    %1319 = vsyncpa [#allocation11], 1
    %1320 = vsyncpa [#allocation9], 1
    %s1321 = scalar_lea.sflag [#allocation9], 1
    %1322 = vsyncpa %s1321, 1

// kernel: tpu_custom_call.1
$region0: #{tpu_custom_call.1}
  #allocation0 [shape = 'u32[]', space=smem, size = 0x4, offset = 0x4, fixed_abs, tag = 'smem constant byte address 0x4 - core index']
  #allocation1 [shape = 'u32[72,128]{1,0:T(1,128)}', space=vmem, size = 0x9000, scoped, tag = 'internal scratch']
  #allocation2 [shape = 'f32[16,64]{1,0:T(8,128)}', space=vmem, size = 0x2000, scoped, tag = 'scratch operand']
  #allocation3 [shape = 'f32[24,64]{1,0:T(8,128)}', space=vmem, size = 0x3000, scoped, tag = 'scratch operand']
  #allocation4 [shape = 'f32[16,64]{1,0:T(8,128)}', space=vmem, size = 0x2000, scoped, tag = 'scratch operand']
  #allocation5 [shape = 'f32[16,32]{1,0:T(8,128)}', space=vmem, size = 0x2000, scoped, tag = 'scratch operand']
  #allocation6 [shape = 'f32[16,64]{1,0:T(8,128)}', space=vmem, size = 0x2000, scoped, tag = 'scratch operand']
  %s0 = inlined_call_operand.vmem [shape: bf16[2,32,32], index: 0, kind: input, shape index: {}]
  %s1 = inlined_call_operand.vmem [shape: bf16[32,128], index: 1, kind: input, shape index: {}]
  %s2 = inlined_call_operand.hbm [shape: f32[4,64], index: 2, kind: input, shape index: {}]
  %s3 = inlined_call_operand.vmem [shape: f32[1,64], index: 3, kind: input, shape index: {}]
  %s4 = inlined_call_operand.hbm [shape: bf16[64,128], index: 4, kind: input, shape index: {}]
  %s5 = inlined_call_operand.vmem [shape: bf16[2,64], index: 5, kind: input, shape index: {}]
  %s6 = inlined_call_operand.vmem [shape: f32[1,64], index: 6, kind: input, shape index: {}]
  %s7 = inlined_call_operand.hbm [shape: f32[16,64], index: 7, kind: input, shape index: {}]
  %s8 = inlined_call_operand.vmem [shape: f32[1,64], index: 8, kind: input, shape index: {}]
  %s9 = inlined_call_operand.vmem [shape: bf16[64,32], index: 9, kind: input, shape index: {}]
  %s10 = inlined_call_operand.hbm [shape: f32[2,32,32], index: 10, kind: output, shape index: {}]
  %s11 = sld [smem:[#allocation0]]
  $region96: #{tpu_custom_call.1} parent=0
    _
  %s13 = ssub.s32 1, %s11
  %s14 = scalar_select 0, %s13, %s11
  $region1: #{tpu_custom_call.1} parent=0
    #allocation7 [shape = 'u8[2048]{0}', space=vmem, size = 0x800, scoped, tag = 'input window, operand 2, single buffered']
    #allocation8 [shape = 's32[2]{0}', space=sflag, size = 0x8, scoped, tag = 'scoped memory for tpu_custom_call.1']
    #allocation9 [shape = 's32[2]{0}', space=sflag, size = 0x8, scoped, tag = 'scoped memory for tpu_custom_call.1']
    #allocation10 [shape = 'u8[16384]{0}', space=vmem, size = 0x4000, scoped, tag = 'input window, operand 4, single buffered']
    #allocation11 [shape = 's32[1]{0}', space=sflag, size = 0x4, scoped, tag = 'scoped memory for tpu_custom_call.1']
    #allocation12 [shape = 'u8[8192]{0}', space=vmem, size = 0x2000, scoped, tag = 'input window, operand 7, single buffered']
    #allocation13 [shape = 'u8[16384]{0}', space=vmem, size = 0x4000, scoped, tag = 'output window, operand 0']
    %15 = vsyncpa [#allocation8], 0
    %16 = vsyncpa [#allocation11], 0
    %17 = vsyncpa [#allocation9], 0
    %s18 = scalar_lea.sflag [#allocation9], 1
    %19 = vsyncpa %s18, 0
    loop: start=0, step=1, limit=6
    $region2: #{tpu_custom_call.1} parent=1 // loop_pre_header
      _
    $region3: #{tpu_custom_call.1} parent=1 // loop_header
      %s21 = sphi 0, %s25
      %p22 = scmp.ge.s32.totalorder %s21, 6
      %s28 = sphi 0, %s40
      %s29 = sphi 0, %s36
      %s30 = sphi 0, %s28
      %s31 = sphi 0, %s29
      %s32 = sphi 0, %s30
      %s33 = sphi 0, %s31
      %s45 = sphi 0, %s47
      %s48 = sphi 0, %s45
      %s49 = sphi 0, %s48
      %s65 = sphi 0, %s49
      %s69 = sphi 0, %s69
      %s71 = sphi 0, %s69
      %s72 = sphi 0, %s71
      %s86 = sphi 0, %s72
      %s90 = sphi 0, %s90
      %s92 = sphi 0, %s90
      %s93 = sphi 0, %s92
      %s107 = sphi 0, %s93
      %s111 = sphi 0, %s111
      %s113 = sphi 0, %s111
      %s114 = sphi 0, %s113
      %s128 = sphi 0, %s114
      %s132 = sphi 0, %s132
      %s134 = sphi 0, %s132
      %s135 = sphi 0, %s134
      %s149 = sphi 0, %s135
      %s153 = sphi 0, %s153
      %s155 = sphi 0, %s153
      %s156 = sphi 0, %s155
      %s170 = sphi 0, %s156
      %s174 = sphi 0, %s174
      %s176 = sphi 0, %s174
      %s177 = sphi 0, %s176
      %s191 = sphi 0, %s177
      %s195 = sphi 0, %s195
      %s197 = sphi 0, %s195
      %s198 = sphi 0, %s197
      %s212 = sphi 0, %s198
      %s216 = sphi 0, %s216
      %s218 = sphi 0, %s216
      %s219 = sphi 0, %s218
      %s233 = sphi 0, %s219
      %s237 = sphi 0, %s237
      %s239 = sphi 0, %s237
      %s240 = sphi 0, %s239
      %s254 = sphi 0, %s240
      %s262 = sphi 0, %s264
      %s265 = sphi 0, %s262
      %s266 = sphi 0, %s265
      %s282 = sphi 0, %s266
    $region4: #{tpu_custom_call.1} parent=1 // loop_header_branch
      %24 = sbr.rel (%p22) target = $region8
    $region5: #{tpu_custom_call.1} parent=1 // loop_body
      %s26 = ssub.s32 %s21, 1
      %s27 = ssub.s32 %s21, 2
      %s34 = sadd.s32 1, %s29
      %p35 = scmp.ge.s32.totalorder %s34, 2
      %s36 = scalar_select %p35, 0, %s34
      %s37 = sadd.s32 1, %s28
      %s38 = scalar_select %p35, %s37, %s28
      %p39 = scmp.ge.s32.totalorder %s38, 2
      %s40 = scalar_select %p39, 0, %s38
      %s41 = ssub.s32 %s28, %s40
      %s42 = ssub.s32 %s29, %s36
      %s43 = sor.u32 %s41, %s42
      %p44 = scmp.eq.s32.totalorder %s43, 0
      %s46 = sadd.s32 %s45, 1
      %s47 = scalar_select %p44, %s45, %s46
      %p50 = pneg %p44
      %p51 = scmp.eq.s32.totalorder %s21, 3
      %p52 = por %p50, %p51
      %p53 = scmp.ne.s32.totalorder %s45, %s48
      %p54 = scmp.eq.s32.totalorder %s21, 0
      %p55 = por %p53, %p54
      %p56 = scmp.ne.s32.totalorder %s45, %s48
      %p57 = scmp.eq.s32.totalorder %s26, 3
      %p58 = por %p56, %p57
      %p59 = scmp.ne.s32.totalorder %s48, %s49
      %p60 = scmp.eq.s32.totalorder %s26, 0
      %p61 = por %p59, %p60
      %p62 = scmp.ne.s32.totalorder %s48, %s49
      %p63 = scmp.eq.s32.totalorder %s27, 3
      %p64 = por %p62, %p63
      %p66 = scmp.ne.s32.totalorder %s49, %s65
      %p67 = scmp.eq.s32.totalorder %s27, 0
      %p68 = por %p66, %p67
      %s70 = sadd.s32 %s69, 1
      %p73 = scmp.eq.s32.totalorder %s21, 3
      %p74 = scmp.ne.s32.totalorder %s69, %s71
      %p75 = scmp.eq.s32.totalorder %s21, 0
      %p76 = por %p74, %p75
      %p77 = scmp.ne.s32.totalorder %s69, %s71
      %p78 = scmp.eq.s32.totalorder %s26, 3
      %p79 = por %p77, %p78
      %p80 = scmp.ne.s32.totalorder %s71, %s72
      %p81 = scmp.eq.s32.totalorder %s26, 0
      %p82 = por %p80, %p81
      %p83 = scmp.ne.s32.totalorder %s71, %s72
      %p84 = scmp.eq.s32.totalorder %s27, 3
      %p85 = por %p83, %p84
      %p87 = scmp.ne.s32.totalorder %s72, %s86
      %p88 = scmp.eq.s32.totalorder %s27, 0
      %p89 = por %p87, %p88
      %s91 = sadd.s32 %s90, 1
      %p94 = scmp.eq.s32.totalorder %s21, 3
      %p95 = scmp.ne.s32.totalorder %s90, %s92
      %p96 = scmp.eq.s32.totalorder %s21, 0
      %p97 = por %p95, %p96
      %p98 = scmp.ne.s32.totalorder %s90, %s92
      %p99 = scmp.eq.s32.totalorder %s26, 3
      %p100 = por %p98, %p99
      %p101 = scmp.ne.s32.totalorder %s92, %s93
      %p102 = scmp.eq.s32.totalorder %s26, 0
      %p103 = por %p101, %p102
      %p104 = scmp.ne.s32.totalorder %s92, %s93
      %p105 = scmp.eq.s32.totalorder %s27, 3
      %p106 = por %p104, %p105
      %p108 = scmp.ne.s32.totalorder %s93, %s107
      %p109 = scmp.eq.s32.totalorder %s27, 0
      %p110 = por %p108, %p109
      %s112 = sadd.s32 %s111, 1
      %p115 = scmp.eq.s32.totalorder %s21, 3
      %p116 = scmp.ne.s32.totalorder %s111, %s113
      %p117 = scmp.eq.s32.totalorder %s21, 0
      %p118 = por %p116, %p117
      %p119 = scmp.ne.s32.totalorder %s111, %s113
      %p120 = scmp.eq.s32.totalorder %s26, 3
      %p121 = por %p119, %p120
      %p122 = scmp.ne.s32.totalorder %s113, %s114
      %p123 = scmp.eq.s32.totalorder %s26, 0
      %p124 = por %p122, %p123
      %p125 = scmp.ne.s32.totalorder %s113, %s114
      %p126 = scmp.eq.s32.totalorder %s27, 3
      %p127 = por %p125, %p126
      %p129 = scmp.ne.s32.totalorder %s114, %s128
      %p130 = scmp.eq.s32.totalorder %s27, 0
      %p131 = por %p129, %p130
      %s133 = sadd.s32 %s132, 1
      %p136 = scmp.eq.s32.totalorder %s21, 3
      %p137 = scmp.ne.s32.totalorder %s132, %s134
      %p138 = scmp.eq.s32.totalorder %s21, 0
      %p139 = por %p137, %p138
      %p140 = scmp.ne.s32.totalorder %s132, %s134
      %p141 = scmp.eq.s32.totalorder %s26, 3
      %p142 = por %p140, %p141
      %p143 = scmp.ne.s32.totalorder %s134, %s135
      %p144 = scmp.eq.s32.totalorder %s26, 0
      %p145 = por %p143, %p144
      %p146 = scmp.ne.s32.totalorder %s134, %s135
      %p147 = scmp.eq.s32.totalorder %s27, 3
      %p148 = por %p146, %p147
      %p150 = scmp.ne.s32.totalorder %s135, %s149
      %p151 = scmp.eq.s32.totalorder %s27, 0
      %p152 = por %p150, %p151
      %s154 = sadd.s32 %s153, 1
      %p157 = scmp.eq.s32.totalorder %s21, 3
      %p158 = scmp.ne.s32.totalorder %s153, %s155
      %p159 = scmp.eq.s32.totalorder %s21, 0
      %p160 = por %p158, %p159
      %p161 = scmp.ne.s32.totalorder %s153, %s155
      %p162 = scmp.eq.s32.totalorder %s26, 3
      %p163 = por %p161, %p162
      %p164 = scmp.ne.s32.totalorder %s155, %s156
      %p165 = scmp.eq.s32.totalorder %s26, 0
      %p166 = por %p164, %p165
      %p167 = scmp.ne.s32.totalorder %s155, %s156
      %p168 = scmp.eq.s32.totalorder %s27, 3
      %p169 = por %p167, %p168
      %p171 = scmp.ne.s32.totalorder %s156, %s170
      %p172 = scmp.eq.s32.totalorder %s27, 0
      %p173 = por %p171, %p172
      %s175 = sadd.s32 %s174, 1
      %p178 = scmp.eq.s32.totalorder %s21, 3
      %p179 = scmp.ne.s32.totalorder %s174, %s176
      %p180 = scmp.eq.s32.totalorder %s21, 0
      %p181 = por %p179, %p180
      %p182 = scmp.ne.s32.totalorder %s174, %s176
      %p183 = scmp.eq.s32.totalorder %s26, 3
      %p184 = por %p182, %p183
      %p185 = scmp.ne.s32.totalorder %s176, %s177
      %p186 = scmp.eq.s32.totalorder %s26, 0
      %p187 = por %p185, %p186
      %p188 = scmp.ne.s32.totalorder %s176, %s177
      %p189 = scmp.eq.s32.totalorder %s27, 3
      %p190 = por %p188, %p189
      %p192 = scmp.ne.s32.totalorder %s177, %s191
      %p193 = scmp.eq.s32.totalorder %s27, 0
      %p194 = por %p192, %p193
      %s196 = sadd.s32 %s195, 1
      %p199 = scmp.eq.s32.totalorder %s21, 3
      %p200 = scmp.ne.s32.totalorder %s195, %s197
      %p201 = scmp.eq.s32.totalorder %s21, 0
      %p202 = por %p200, %p201
      %p203 = scmp.ne.s32.totalorder %s195, %s197
      %p204 = scmp.eq.s32.totalorder %s26, 3
      %p205 = por %p203, %p204
      %p206 = scmp.ne.s32.totalorder %s197, %s198
      %p207 = scmp.eq.s32.totalorder %s26, 0
      %p208 = por %p206, %p207
      %p209 = scmp.ne.s32.totalorder %s197, %s198
      %p210 = scmp.eq.s32.totalorder %s27, 3
      %p211 = por %p209, %p210
      %p213 = scmp.ne.s32.totalorder %s198, %s212
      %p214 = scmp.eq.s32.totalorder %s27, 0
      %p215 = por %p213, %p214
      %s217 = sadd.s32 %s216, 1
      %p220 = scmp.eq.s32.totalorder %s21, 3
      %p221 = scmp.ne.s32.totalorder %s216, %s218
      %p222 = scmp.eq.s32.totalorder %s21, 0
      %p223 = por %p221, %p222
      %p224 = scmp.ne.s32.totalorder %s216, %s218
      %p225 = scmp.eq.s32.totalorder %s26, 3
      %p226 = por %p224, %p225
      %p227 = scmp.ne.s32.totalorder %s218, %s219
      %p228 = scmp.eq.s32.totalorder %s26, 0
      %p229 = por %p227, %p228
      %p230 = scmp.ne.s32.totalorder %s218, %s219
      %p231 = scmp.eq.s32.totalorder %s27, 3
      %p232 = por %p230, %p231
      %p234 = scmp.ne.s32.totalorder %s219, %s233
      %p235 = scmp.eq.s32.totalorder %s27, 0
      %p236 = por %p234, %p235
      %s238 = sadd.s32 %s237, 1
      %p241 = scmp.eq.s32.totalorder %s21, 3
      %p242 = scmp.ne.s32.totalorder %s237, %s239
      %p243 = scmp.eq.s32.totalorder %s21, 0
      %p244 = por %p242, %p243
      %p245 = scmp.ne.s32.totalorder %s237, %s239
      %p246 = scmp.eq.s32.totalorder %s26, 3
      %p247 = por %p245, %p246
      %p248 = scmp.ne.s32.totalorder %s239, %s240
      %p249 = scmp.eq.s32.totalorder %s26, 0
      %p250 = por %p248, %p249
      %p251 = scmp.ne.s32.totalorder %s239, %s240
      %p252 = scmp.eq.s32.totalorder %s27, 3
      %p253 = por %p251, %p252
      %p255 = scmp.ne.s32.totalorder %s240, %s254
      %p256 = scmp.eq.s32.totalorder %s27, 0
      %p257 = por %p255, %p256
      %s258 = ssub.s32 %s28, %s40
      %s259 = ssub.s32 %s29, %s36
      %s260 = sor.u32 %s258, %s259
      %p261 = scmp.eq.s32.totalorder %s260, 0
      %s263 = sadd.s32 %s262, 1
      %s264 = scalar_select %p261, %s262, %s263
      %p267 = pneg %p261
      %p268 = scmp.eq.s32.totalorder %s21, 3
      %p269 = por %p267, %p268
      %p270 = scmp.ne.s32.totalorder %s262, %s265
      %p271 = scmp.eq.s32.totalorder %s21, 0
      %p272 = por %p270, %p271
      %p273 = scmp.ne.s32.totalorder %s262, %s265
      %p274 = scmp.eq.s32.totalorder %s26, 3
      %p275 = por %p273, %p274
      %p276 = scmp.ne.s32.totalorder %s265, %s266
      %p277 = scmp.eq.s32.totalorder %s26, 0
      %p278 = por %p276, %p277
      %p279 = scmp.ne.s32.totalorder %s265, %s266
      %p280 = scmp.eq.s32.totalorder %s27, 3
      %p281 = por %p279, %p280
      %p283 = scmp.ne.s32.totalorder %s266, %s282
      %p284 = scmp.eq.s32.totalorder %s27, 0
      %p285 = por %p283, %p284
      %p286 = scmp.le.s32.totalorder 1, %s21
      %p287 = scmp.lt.s32.totalorder %s21, 5
      %p288 = pnand %p286, %p287
      %p289 = pneg %p288
      // Predicated region
      $region9: #{tpu_custom_call.1} parent=5 // pred_check
        _
      $region10: #{tpu_custom_call.1} parent=5 // pred_check_branch
        %291 = sbr.rel (%p288) target = $region12
      $region11: #{tpu_custom_call.1} parent=5 // pred_region
        %s292 = ssub.s32 %s21, 1
        // Predicated region
        $region13: #{tpu_custom_call.1} parent=11 // pred_check
          %p293 = pneg %p82
        $region14: #{tpu_custom_call.1} parent=11 // pred_check_branch
          %295 = sbr.rel (%p293) target = $region16
        $region15: #{tpu_custom_call.1} parent=11 // pred_region
          _
        $region16: #{tpu_custom_call.1} parent=11 // pred_fallthru
          _
        // Predicated region
        $region17: #{tpu_custom_call.1} parent=11 // pred_check
          %p296 = pneg %p103
        $region18: #{tpu_custom_call.1} parent=11 // pred_check_branch
          %298 = sbr.rel (%p296) target = $region20
        $region19: #{tpu_custom_call.1} parent=11 // pred_region
          %300 = vsyncadd [#allocation8], 0
          %s302 = sshll.u32 %s2, 4
          %s303 = int_to_ptr.hbm [resolvable:$true] %s302
          %s304 = sshll.u32 [#allocation7], 4
          %s305 = int_to_ptr.vmem [resolvable:$true] %s304
          %307 = dma.hbm_to_vmem [thread:$0]  %s303, 64, %s305, [#allocation8]
        $region20: #{tpu_custom_call.1} parent=11 // pred_fallthru
          _
        // Predicated region
        $region21: #{tpu_custom_call.1} parent=11 // pred_check
          %p308 = pneg %p124
        $region22: #{tpu_custom_call.1} parent=11 // pred_check_branch
          %310 = sbr.rel (%p308) target = $region24
        $region23: #{tpu_custom_call.1} parent=11 // pred_region
          _
        $region24: #{tpu_custom_call.1} parent=11 // pred_fallthru
          _
        // Predicated region
        $region25: #{tpu_custom_call.1} parent=11 // pred_check
          %p311 = pneg %p145
        $region26: #{tpu_custom_call.1} parent=11 // pred_check_branch
          %313 = sbr.rel (%p311) target = $region28
        $region27: #{tpu_custom_call.1} parent=11 // pred_region
          %315 = vsyncadd [#allocation11], 0
          %s316 = sshll.u32 %s4, 4
          %s317 = int_to_ptr.hbm [resolvable:$true] %s316
          %s318 = sshll.u32 [#allocation10], 4
          %s319 = int_to_ptr.vmem [resolvable:$true] %s318
          %324 = dma.hbm_to_vmem [thread:$0]  %s317, 512, %s319, [#allocation11], 64, 64, 4
        $region28: #{tpu_custom_call.1} parent=11 // pred_fallthru
          _
        // Predicated region
        $region29: #{tpu_custom_call.1} parent=11 // pred_check
          %p325 = pneg %p166
        $region30: #{tpu_custom_call.1} parent=11 // pred_check_branch
          %327 = sbr.rel (%p325) target = $region32
        $region31: #{tpu_custom_call.1} parent=11 // pred_region
          _
        $region32: #{tpu_custom_call.1} parent=11 // pred_fallthru
          _
        // Predicated region
        $region33: #{tpu_custom_call.1} parent=11 // pred_check
          %p328 = pneg %p187
        $region34: #{tpu_custom_call.1} parent=11 // pred_check_branch
          %330 = sbr.rel (%p328) target = $region36
        $region35: #{tpu_custom_call.1} parent=11 // pred_region
          _
        $region36: #{tpu_custom_call.1} parent=11 // pred_fallthru
          _
        // Predicated region
        $region37: #{tpu_custom_call.1} parent=11 // pred_check
          %p331 = pneg %p208
        $region38: #{tpu_custom_call.1} parent=11 // pred_check_branch
          %333 = sbr.rel (%p331) target = $region40
        $region39: #{tpu_custom_call.1} parent=11 // pred_region
          %335 = vsyncadd [#allocation11], 0
          %s336 = sshll.u32 %s7, 4
          %s337 = int_to_ptr.hbm [resolvable:$true] %s336
          %s338 = sshll.u32 [#allocation12], 4
          %s339 = int_to_ptr.vmem [resolvable:$true] %s338
          %344 = dma.hbm_to_vmem [thread:$0]  %s337, 256, %s339, [#allocation11], 128, 128, 8
        $region40: #{tpu_custom_call.1} parent=11 // pred_fallthru
          _
        // Predicated region
        $region41: #{tpu_custom_call.1} parent=11 // pred_check
          %p345 = pneg %p229
        $region42: #{tpu_custom_call.1} parent=11 // pred_check_branch
          %347 = sbr.rel (%p345) target = $region44
        $region43: #{tpu_custom_call.1} parent=11 // pred_region
          _
        $region44: #{tpu_custom_call.1} parent=11 // pred_fallthru
          _
        // Predicated region
        $region45: #{tpu_custom_call.1} parent=11 // pred_check
          %p348 = pneg %p250
        $region46: #{tpu_custom_call.1} parent=11 // pred_check_branch
          %350 = sbr.rel (%p348) target = $region48
        $region47: #{tpu_custom_call.1} parent=11 // pred_region
          _
        $region48: #{tpu_custom_call.1} parent=11 // pred_fallthru
          _
      $region12: #{tpu_custom_call.1} parent=5 // pred_fallthru
        _
      %p351 = scmp.lt.s32.totalorder %s21, 4
      // Predicated region
      $region49: #{tpu_custom_call.1} parent=5 // pred_check
        %p352 = pneg %p351
      $region50: #{tpu_custom_call.1} parent=5 // pred_check_branch
        %354 = sbr.rel (%p352) target = $region52
      $region51: #{tpu_custom_call.1} parent=5 // pred_region
        // Predicated region
        $region53: #{tpu_custom_call.1} parent=51 // pred_check
          %p355 = pneg %p55
        $region54: #{tpu_custom_call.1} parent=51 // pred_check_branch
          %357 = sbr.rel (%p355) target = $region56
        $region55: #{tpu_custom_call.1} parent=51 // pred_region
          %s358 = smul.u32 2, %s29
          %p359 = scmp.lt.s32.totalorder %s28, 1
          %s360 = scalar_select %p359, %s28, 1
          %p361 = scmp.lt.s32.totalorder %s358, 3
          %s362 = scalar_select %p361, %s358, 3
          %s363 = smul.addr %s360, 4
          %s364 = sadd.s32 %s362, %s363
          %s365 = smul.addr %s364, 4
          %s366 = scalar_lea.vmem %s0, %s365
          %s367 = smul.u32 2, %s29
        $region56: #{tpu_custom_call.1} parent=51 // pred_fallthru
          _
      $region52: #{tpu_custom_call.1} parent=5 // pred_fallthru
        _
      %p368 = scmp.le.s32.totalorder 1, %s21
      %p369 = scmp.lt.s32.totalorder %s21, 5
      %p370 = pnand %p368, %p369
      %p371 = pneg %p370
      // Predicated region
      $region57: #{tpu_custom_call.1} parent=5 // pred_check
        _
      $region58: #{tpu_custom_call.1} parent=5 // pred_check_branch
        %373 = sbr.rel (%p370) target = $region60
      $region59: #{tpu_custom_call.1} parent=5 // pred_region
        %s374 = ssub.s32 %s21, 1
        // Predicated region
        $region61: #{tpu_custom_call.1} parent=59 // pred_check
          %p375 = pneg %p103
        $region62: #{tpu_custom_call.1} parent=59 // pred_check_branch
          %377 = sbr.rel (%p375) target = $region64
        $region63: #{tpu_custom_call.1} parent=59 // pred_region
          %379 = dma.done [#allocation8], 64
        $region64: #{tpu_custom_call.1} parent=59 // pred_fallthru
          _
        // Predicated region
        $region65: #{tpu_custom_call.1} parent=59 // pred_check
          %p380 = pneg %p145
        $region66: #{tpu_custom_call.1} parent=59 // pred_check_branch
          %382 = sbr.rel (%p380) target = $region68
        $region67: #{tpu_custom_call.1} parent=59 // pred_region
          %384 = dma.done [#allocation11], 512
        $region68: #{tpu_custom_call.1} parent=59 // pred_fallthru
          _
        // Predicated region
        $region69: #{tpu_custom_call.1} parent=59 // pred_check
          %p385 = pneg %p208
        $region70: #{tpu_custom_call.1} parent=59 // pred_check_branch
          %387 = sbr.rel (%p385) target = $region72
        $region71: #{tpu_custom_call.1} parent=59 // pred_region
          %389 = dma.done [#allocation11], 256
        $region72: #{tpu_custom_call.1} parent=59 // pred_fallthru
          _
        %s390 = smul.u32 2, %s31
        %p391 = scmp.lt.s32.totalorder %s30, 1
        %s392 = scalar_select %p391, %s30, 1
        %p393 = scmp.lt.s32.totalorder %s390, 3
        %s394 = scalar_select %p393, %s390, 3
        %s395 = smul.addr %s392, 4
        %s396 = sadd.s32 %s394, %s395
        %s397 = smul.addr %s396, 4
        %s398 = scalar_lea.vmem %s0, %s397
        %p399 = pneg %p61
        %p400 = pneg %p58
        %p401 = pneg %p82
        %p402 = pneg %p79
        %p403 = pneg %p103
        %p404 = pneg %p100
        %p405 = pneg %p124
        %p406 = pneg %p121
        %p407 = pneg %p145
        %p408 = pneg %p142
        %p409 = pneg %p166
        %p410 = pneg %p163
        %p411 = pneg %p187
        %p412 = pneg %p184
        %p413 = pneg %p208
        %p414 = pneg %p205
        %p415 = pneg %p229
        %p416 = pneg %p226
        %p417 = pneg %p250
        %p418 = pneg %p247
        %p419 = pneg %p278
        %p420 = pneg %p275
        %s421 = sand.u32 %s265, 1
        %s422 = scalar_lea.sflag [#allocation9], %s421
        %s423 = sand.u32 %s265, 1
        %s424 = smul.addr %s423, 16
        %s425 = scalar_lea.vmem [#allocation13], %s424
        %s426 = smul.u32 2, %s31
        %p427 = scmp.lt.s32.totalorder %s30, 1
        %s428 = scalar_select %p427, %s30, 1
        %p429 = scmp.lt.s32.totalorder %s426, 3
        %s430 = scalar_select %p429, %s426, 3
        %s431 = smul.addr %s428, 4
        %s432 = sadd.s32 %s430, %s431
        %s433 = smul.addr %s432, 4
        %s434 = scalar_lea.vmem %s0, %s433
        %s435 = smul.u32 2, %s31
        %s436 = smul.u32 2, %s31
        %p438 = scmp.eq.s32.totalorder %s31, 0
        // Predicated region
        $region73: #{tpu_custom_call.1} parent=59 // pred_check
          %p439 = pneg %p438
        $region74: #{tpu_custom_call.1} parent=59 // pred_check_branch
          %441 = sbr.rel (%p439) target = $region76
        $region75: #{tpu_custom_call.1} parent=59 // pred_region
          %vm442 = vcmask 523264
          %443 = vst.msk [vmem:[#allocation2] sm:$0xff] %vm442, 0.0
          %444 = vst.msk [vmem:[#allocation2 + $0x8] sm:$0xff] %vm442, 0.0
          %445 = vst.msk [vmem:[#allocation3] sm:$0xff] %vm442, 0.0
        $region76: #{tpu_custom_call.1} parent=59 // pred_fallthru
          _
        %v446 = vld [vmem:[%s434] sm:$0xf]
        %v447 = vld [vmem:[%s434 + $0x4] sm:$0xf]
        %v448 = vld [vmem:[%s1] sm:$0xf]
        %v449 = vld [vmem:[%s1 + $0x4] sm:$0xf]
        %v450 = vld [vmem:[%s1 + $0x8] sm:$0xf]
        %v451 = vld [vmem:[%s1 + $0xc] sm:$0xf]
        %v454 = vunpack.c.l.b16 %v446
        %v455 = vunpack.c.l.b16 %v447
        %v456 = vpack.c.b16 %v455, %v454
        %v461 = vunpack.c.l.b16 %v448
        %v462 = vunpack.c.l.b16 %v449
        %v463 = vunpack.c.l.b16 %v450
        %v464 = vunpack.c.l.b16 %v451
        %v465 = vpack.c.b16 %v462, %v461
        %v466 = vpack.c.b16 %v464, %v463
        %vm469 = vcmask 261120
        %v471 = vsel %vm469, %v456, 0
        %473 = vmatpush.bf16.msra.mxu0 0
        %474 = vmatpush.bf16.msra.mxu0 0
        %475 = vmatpush.bf16.msra.mxu0 0
        %476 = vmatpush.bf16.msra.mxu0 0
        %477 = vmatpush.bf16.msra.mxu0 0
        %478 = vmatpush.bf16.msra.mxu0 0
        %479 = vmatpush.bf16.msra.mxu0 %v466
        %480 = vmatpush.bf16.msra.mxu0 %v465
        %481 = vmatmul.bf16.gmra.mxu0 %v471
        %v482 = vpop.f32.mrf.mxu0
        %v483 = vadd.f32 0.0, %v482
        %v484 = vpop.f32.mrf.mxu0
        %v485 = vadd.f32 0.0, %v484
        %486 = vdwg.mxu0
        %vm487 = vcmask 523264
        %488 = vst.msk [vmem:[#allocation3 + $0x8] sm:$0xff] %vm487, %v483
        %489 = vst.msk [vmem:[#allocation3 + $0x10] sm:$0xff] %vm487, %v485
        %v490 = vld [vmem:[#allocation3 + $0x5] sm:$0xff]
        %v491 = vld [vmem:[#allocation3 + $0xd] sm:$0xff]
        %v492 = vld [vmem:[#allocation7] sm:$0x1]
        %v493 = vperm.slane %v492, 0
        %v494 = vmul.f32 %v490, %v493
        %v495 = vmul.f32 %v491, %v493
        %v496 = vadd.f32 %v494, 0.0
        %v497 = vadd.f32 %v495, 0.0
        %v498 = vld [vmem:[#allocation3 + $0x6] sm:$0xff]
        %v499 = vld [vmem:[#allocation3 + $0xe] sm:$0xff]
        %v500 = vld [vmem:[#allocation7 + $0x1] sm:$0x1]
        %v501 = vperm.slane %v500, 0
        %v502 = vmul.f32 %v498, %v501
        %v503 = vmul.f32 %v499, %v501
        %v504 = vadd.f32 %v496, %v502
        %v505 = vadd.f32 %v497, %v503
        %v506 = vld [vmem:[#allocation3 + $0x7] sm:$0xff]
        %v507 = vld [vmem:[#allocation3 + $0xf] sm:$0xff]
        %v508 = vld [vmem:[#allocation7 + $0x2] sm:$0x1]
        %v509 = vperm.slane %v508, 0
        %v510 = vmul.f32 %v506, %v509
        %v511 = vmul.f32 %v507, %v509
        %v512 = vadd.f32 %v504, %v510
        %v513 = vadd.f32 %v505, %v511
        %v514 = vld [vmem:[#allocation3 + $0x8] sm:$0xff]
        %v515 = vld [vmem:[#allocation3 + $0x10] sm:$0xff]
        %v516 = vld [vmem:[#allocation7 + $0x3] sm:$0x1]
        %v517 = vperm.slane %v516, 0
        %v518 = vmul.f32 %v514, %v517
        %v519 = vmul.f32 %v515, %v517
        %v520 = vadd.f32 %v512, %v518
        %v521 = vadd.f32 %v513, %v519
        %v522 = vld [vmem:[%s3] sm:$0x1]
        %v524 = vperm.slane %v522, 0
        %v526 = vadd.f32 %v520, %v524
        %v527 = vadd.f32 %v521, %v524
        %v528 = vld [vmem:[#allocation3 + $0x15] sm:$0x7]
        %vm529 = vcmask 518144
        %530 = vst.msk [vmem:[#allocation3 + $0x5] sm:$0x7] %vm529, %v528
        %v531 = vsub.f32 0.0, %v526
        %v532 = vsub.f32 0.0, %v527
        %v533 = vmul.f32 %v531, 1.442695
        %v534 = vpow.pop %v533
        %v535 = vmul.f32 %v532, 1.442695
        %v536 = vpow.pop %v535
        %v537 = vadd.f32 %v534, 1.0
        %v538 = vadd.f32 %v536, 1.0
        %v539 = vrcp.pop %v537
        %v540 = vmul.f32 %v537, %v539
        %v541 = vsub.f32 1.0, %v540
        %v542 = vmul.f32 %v539, %v541
        %v543 = vadd.f32 %v539, %v542
        %vm544 = vweird.f32 %v537
        %vm545 = vweird.f32 %v539
        %vm546 = vmor %vm544, %vm545
        %v547 = vsel %vm546, %v539, %v543
        %v548 = vand.u32 2147483647, %v537
        %vm549 = vcmp.eq.f32.partialorder %v548, 8.507059e+37
        %v550 = vand.u32 %v537, 2147483648
        %v551 = vor.u32 1.1754944e-38, %v550
        %v552 = vsel %vm549, %v551, %v547
        %v553 = vmul.f32 1.0, %v552
        %v554 = vrcp.pop %v538
        %v555 = vmul.f32 %v538, %v554
        %v556 = vsub.f32 1.0, %v555
        %v557 = vmul.f32 %v554, %v556
        %v558 = vadd.f32 %v554, %v557
        %vm559 = vweird.f32 %v538
        %vm560 = vweird.f32 %v554
        %vm561 = vmor %vm559, %vm560
        %v562 = vsel %vm561, %v554, %v558
        %v563 = vand.u32 2147483647, %v538
        %vm564 = vcmp.eq.f32.partialorder %v563, 8.507059e+37
        %v565 = vand.u32 %v538, 2147483648
        %v566 = vor.u32 1.1754944e-38, %v565
        %v567 = vsel %vm564, %v566, %v562
        %v568 = vmul.f32 1.0, %v567
        %v569 = vmul.f32 %v526, %v553
        %v570 = vmul.f32 %v527, %v568
        %571 = vst.msk [vmem:[#allocation3 + $0x8] sm:$0xff] %vm487, %v569
        %572 = vst.msk [vmem:[#allocation3 + $0x10] sm:$0xff] %vm487, %v570
        %v573 = vpack.c.bf16 %v570, %v569
        %v574 = vld [vmem:[#allocation10] sm:$0xf]
        %v575 = vld [vmem:[#allocation10 + $0x4] sm:$0xf]
        %v576 = vld [vmem:[#allocation10 + $0x8] sm:$0xf]
        %v577 = vld [vmem:[#allocation10 + $0xc] sm:$0xf]
        %v578 = vld [vmem:[#allocation10 + $0x10] sm:$0xf]
        %v579 = vld [vmem:[#allocation10 + $0x14] sm:$0xf]
        %v580 = vld [vmem:[#allocation10 + $0x18] sm:$0xf]
        %v581 = vld [vmem:[#allocation10 + $0x1c] sm:$0xf]
        %v590 = vunpack.c.l.b16 %v574
        %v591 = vunpack.c.l.b16 %v575
        %v592 = vunpack.c.l.b16 %v576
        %v593 = vunpack.c.l.b16 %v577
        %v594 = vunpack.c.l.b16 %v578
        %v595 = vunpack.c.l.b16 %v579
        %v596 = vunpack.c.l.b16 %v580
        %v597 = vunpack.c.l.b16 %v581
        %v598 = vpack.c.b16 %v591, %v590
        %v599 = vpack.c.b16 %v593, %v592
        %v600 = vpack.c.b16 %v595, %v594
        %v601 = vpack.c.b16 %v597, %v596
        %v607 = vsel %vm487, %v573, 0
        %609 = vmatpush.bf16.msra.mxu0 0
        %610 = vmatpush.bf16.msra.mxu0 0
        %611 = vmatpush.bf16.msra.mxu0 0
        %612 = vmatpush.bf16.msra.mxu0 0
        %613 = vmatpush.bf16.msra.mxu0 %v601
        %614 = vmatpush.bf16.msra.mxu0 %v600
        %615 = vmatpush.bf16.msra.mxu0 %v599
        %616 = vmatpush.bf16.msra.mxu0 %v598
        %617 = vmatmul.bf16.gmra.mxu0 %v607
        %v618 = vpop.f32.mrf.mxu0
        %v619 = vadd.f32 0.0, %v618
        %v620 = vpop.f32.mrf.mxu0
        %v621 = vadd.f32 0.0, %v620
        %622 = vdwg.mxu0
        %v623 = vpack.c.bf16 %v621, %v619
        %v624 = vld [vmem:[%s5] sm:$0x1]
        %v625 = vld [vmem:[%s6] sm:$0x1]
        %v627 = vperm.slane %v625, 0
        %vm629 = vcmask 15360
        %v631 = vsel %vm629, %v623, 0
        %vm633 = vcmask 1040384
        %v635 = vsel %vm633, %v624, 0
        %637 = vmatpush.bf16.msra.mxu0 0
        %638 = vmatpush.bf16.msra.mxu0 0
        %639 = vmatpush.bf16.msra.mxu0 0
        %640 = vmatpush.bf16.msra.mxu0 0
        %641 = vmatpush.bf16.msra.mxu0 0
        %642 = vmatpush.bf16.msra.mxu0 0
        %643 = vmatpush.bf16.msra.mxu0 0
        %644 = vmatpush.bf16.msra.mxu0 %v635
        %645 = vmatmul.bf16.gmra.mxu0 %v631
        %v646 = vpop.f32.mrf.mxu0
        %v647 = vadd.f32 %v627, %v646
        %v648 = vpop.f32.mrf.mxu0
        %v649 = vadd.f32 %v627, %v648
        %650 = vdwg.mxu0
        %vm651 = vcmp.gt.f32.partialorder %v647, 20.0
        %vm652 = vcmp.gt.f32.partialorder %v649, 20.0
        %v653 = vmin.f32 %v647, 20.0
        %v654 = vmin.f32 %v649, 20.0
        %v655 = vmul.f32 %v653, 1.442695
        %v656 = vpow.pop %v655
        %v657 = vmul.f32 %v654, 1.442695
        %v658 = vpow.pop %v657
        %v659 = vadd.f32 %v656, 1.0
        %v660 = vadd.f32 %v658, 1.0
        %v661 = vlog2.pop %v659
        %v662 = vmul.f32 %v661, 0.6931472
        %v663 = vlog2.pop %v660
        %v664 = vmul.f32 %v663, 0.6931472
        %v665 = vsel %vm651, %v647, %v662
        %v666 = vsel %vm652, %v649, %v664
        %667 = vst.msk [vmem:[#allocation4] sm:$0xff] %vm487, %v665
        %668 = vst.msk [vmem:[#allocation4 + $0x8] sm:$0xff] %vm487, %v666
        %671 = vrot.lane.b32.xlu0 %v619, 126
        %v672 = vpop.permute.xlu0 %671
        %673 = vrot.lane.b32.xlu0 %v621, 126
        %v674 = vpop.permute.xlu0 %673
        %677 = vst.msk [vmem:[#allocation5] sm:$0xff] %vm469, %v672
        %678 = vst.msk [vmem:[#allocation5 + $0x8] sm:$0xff] %vm469, %v674
        %v679 = vlaneseq
        %v680 = vshrl.u32 %v679, 7
        %v681 = vadd.s32 %v680, 8
        %v682 = vlaneseq
        %v683 = vand.u32 %v682, 127
        %vm684 = vcmp.eq.s32.totalorder %v683, %v680
        %vm685 = vcmp.eq.s32.totalorder %v683, %v681
        %v686 = vsel %vm684, 1, 0
        %v687 = vsel %vm685, 1, 0
        %v688 = vcvt.s32.f32 %v686
        %v689 = vcvt.s32.f32 %v687
        %v690 = vadd.s32 %v680, 16
        %v691 = vadd.s32 %v681, 16
        %vm692 = vcmp.eq.s32.totalorder %v683, %v690
        %vm693 = vcmp.eq.s32.totalorder %v683, %v691
        %v694 = vsel %vm692, 1, 0
        %v695 = vsel %vm693, 1, 0
        %v696 = vcvt.s32.f32 %v694
        %v697 = vcvt.s32.f32 %v695
        %v698 = vld [vmem:[#allocation12] sm:$0xff]
        %v699 = vld [vmem:[#allocation12 + $0x8] sm:$0xff]
        %v700 = vld [vmem:[%s8] sm:$0x1]
        %v701 = vld [vmem:[#allocation2] sm:$0xff]
        %v702 = vld [vmem:[#allocation2 + $0x8] sm:$0xff]
        loop: start=0, step=1, limit=2
        $region77: #{tpu_custom_call.1} parent=59 // loop_pre_header
          _
        $region78: #{tpu_custom_call.1} parent=59 // loop_header
          %s704 = sphi 0, %s708
          %p705 = scmp.ge.s32.totalorder %s704, 2
          %v709 = vphi %v701, %v1120
          %v710 = vphi %v702, %v1121
        $region79: #{tpu_custom_call.1} parent=59 // loop_header_branch
          %707 = sbr.rel (%p705) target = $region83
        $region80: #{tpu_custom_call.1} parent=59 // loop_body
          %s711 = smul.u32 %s704, 8
          %s712 = scalar_lea.vmem [#allocation4], %s711
          %v713 = vld [vmem:[%s712] sm:$0x1]
          %s714 = sadd.s32 %s711, 8
          %s715 = scalar_lea.vmem [#allocation3], %s714
          %v716 = vld [vmem:[%s715] sm:$0x1]
          %s717 = scalar_lea.vmem [#allocation5], %s711
          %v718 = vld [vmem:[%s717] sm:$0x1]
          %v719 = vperm.slane %v718, 0
          %v720 = vmul.f32 %v719, %v688
          %v721 = vmul.f32 %v719, %v689
          %v722 = vsel %vm469, %v720, 0.0
          %723 = vadd.xlane.f32.xlu0 %v722
          %v724 = vpop.xlane.xlu0 %723
          %v725 = vsel %vm469, %v721, 0.0
          %726 = vadd.xlane.f32.xlu0 %v725
          %v727 = vpop.xlane.xlu0 %726
          %v728 = vmul.f32 %v719, %v696
          %v729 = vmul.f32 %v719, %v697
          %v730 = vsel %vm469, %v728, 0.0
          %731 = vadd.xlane.f32.xlu0 %v730
          %v732 = vpop.xlane.xlu0 %731
          %v733 = vsel %vm469, %v729, 0.0
          %734 = vadd.xlane.f32.xlu0 %v733
          %v735 = vpop.xlane.xlu0 %734
          %v736 = vperm.slane %v713, 0
          %v737 = vmul.f32 %v698, %v736
          %v738 = vmul.f32 %v699, %v736
          %v739 = vmul.f32 %v737, 1.442695
          %v740 = vpow.pop %v739
          %v741 = vmul.f32 %v738, 1.442695
          %v742 = vpow.pop %v741
          %v743 = vmul.f32 %v709, %v740
          %v744 = vmul.f32 %v710, %v742
          %v745 = vmul.f32 %v713, %v716
          %v746 = vperm.slane %v745, 0
          %v747 = vmul.f32 %v724, %v746
          %v748 = vmul.f32 %v727, %v746
          %v749 = vadd.f32 %v743, %v747
          %v750 = vadd.f32 %v744, %v748
          %v751 = vmul.f32 %v732, %v749
          %v752 = vmul.f32 %v735, %v750
          %v753 = vsel %vm487, %v751, 0.0
          %v754 = vsel %vm487, %v752, 0.0
          %v755 = vadd.f32 %v753, %v754
          %v756 = vrot.slane %v755, 4
          %v757 = vadd.f32 %v755, %v756
          %v758 = vrot.slane %v757, 2
          %v759 = vadd.f32 %v757, %v758
          %v760 = vrot.slane %v759, 1
          %v761 = vadd.f32 %v759, %v760
          %v762 = vmul.f32 %v700, %v716
          %v763 = vadd.f32 %v761, %v762
          %s764 = sadd.s32 %s711, 1
          %s765 = scalar_lea.vmem [#allocation4], %s764
          %v766 = vld [vmem:[%s765] sm:$0x1]
          %s767 = sadd.s32 %s711, 9
          %s768 = scalar_lea.vmem [#allocation3], %s767
          %v769 = vld [vmem:[%s768] sm:$0x1]
          %s770 = scalar_lea.vmem [#allocation5], %s764
          %v771 = vld [vmem:[%s770] sm:$0x1]
          %v772 = vperm.slane %v771, 0
          %v773 = vmul.f32 %v772, %v688
          %v774 = vmul.f32 %v772, %v689
          %v775 = vsel %vm469, %v773, 0.0
          %776 = vadd.xlane.f32.xlu0 %v775
          %v777 = vpop.xlane.xlu0 %776
          %v778 = vsel %vm469, %v774, 0.0
          %779 = vadd.xlane.f32.xlu0 %v778
          %v780 = vpop.xlane.xlu0 %779
          %v781 = vmul.f32 %v772, %v696
          %v782 = vmul.f32 %v772, %v697
          %v783 = vsel %vm469, %v781, 0.0
          %784 = vadd.xlane.f32.xlu0 %v783
          %v785 = vpop.xlane.xlu0 %784
          %v786 = vsel %vm469, %v782, 0.0
          %787 = vadd.xlane.f32.xlu0 %v786
          %v788 = vpop.xlane.xlu0 %787
          %v789 = vperm.slane %v766, 0
          %v790 = vmul.f32 %v698, %v789
          %v791 = vmul.f32 %v699, %v789
          %v792 = vmul.f32 %v790, 1.442695
          %v793 = vpow.pop %v792
          %v794 = vmul.f32 %v791, 1.442695
          %v795 = vpow.pop %v794
          %v796 = vmul.f32 %v749, %v793
          %v797 = vmul.f32 %v750, %v795
          %v798 = vmul.f32 %v766, %v769
          %v799 = vperm.slane %v798, 0
          %v800 = vmul.f32 %v777, %v799
          %v801 = vmul.f32 %v780, %v799
          %v802 = vadd.f32 %v796, %v800
          %v803 = vadd.f32 %v797, %v801
          %v804 = vmul.f32 %v785, %v802
          %v805 = vmul.f32 %v788, %v803
          %v806 = vsel %vm487, %v804, 0.0
          %v807 = vsel %vm487, %v805, 0.0
          %v808 = vadd.f32 %v806, %v807
          %v809 = vrot.slane %v808, 4
          %v810 = vadd.f32 %v808, %v809
          %v811 = vrot.slane %v810, 2
          %v812 = vadd.f32 %v810, %v811
          %v813 = vrot.slane %v812, 1
          %v814 = vadd.f32 %v812, %v813
          %v815 = vmul.f32 %v700, %v769
          %v816 = vadd.f32 %v814, %v815
          %s817 = sadd.s32 %s711, 2
          %s818 = scalar_lea.vmem [#allocation4], %s817
          %v819 = vld [vmem:[%s818] sm:$0x1]
          %s820 = sadd.s32 %s711, 10
          %s821 = scalar_lea.vmem [#allocation3], %s820
          %v822 = vld [vmem:[%s821] sm:$0x1]
          %s823 = scalar_lea.vmem [#allocation5], %s817
          %v824 = vld [vmem:[%s823] sm:$0x1]
          %v825 = vperm.slane %v824, 0
          %v826 = vmul.f32 %v825, %v688
          %v827 = vmul.f32 %v825, %v689
          %v828 = vsel %vm469, %v826, 0.0
          %829 = vadd.xlane.f32.xlu0 %v828
          %v830 = vpop.xlane.xlu0 %829
          %v831 = vsel %vm469, %v827, 0.0
          %832 = vadd.xlane.f32.xlu0 %v831
          %v833 = vpop.xlane.xlu0 %832
          %v834 = vmul.f32 %v825, %v696
          %v835 = vmul.f32 %v825, %v697
          %v836 = vsel %vm469, %v834, 0.0
          %837 = vadd.xlane.f32.xlu0 %v836
          %v838 = vpop.xlane.xlu0 %837
          %v839 = vsel %vm469, %v835, 0.0
          %840 = vadd.xlane.f32.xlu0 %v839
          %v841 = vpop.xlane.xlu0 %840
          %v842 = vperm.slane %v819, 0
          %v843 = vmul.f32 %v698, %v842
          %v844 = vmul.f32 %v699, %v842
          %v845 = vmul.f32 %v843, 1.442695
          %v846 = vpow.pop %v845
          %v847 = vmul.f32 %v844, 1.442695
          %v848 = vpow.pop %v847
          %v849 = vmul.f32 %v802, %v846
          %v850 = vmul.f32 %v803, %v848
          %v851 = vmul.f32 %v819, %v822
          %v852 = vperm.slane %v851, 0
          %v853 = vmul.f32 %v830, %v852
          %v854 = vmul.f32 %v833, %v852
          %v855 = vadd.f32 %v849, %v853
          %v856 = vadd.f32 %v850, %v854
          %v857 = vmul.f32 %v838, %v855
          %v858 = vmul.f32 %v841, %v856
          %v859 = vsel %vm487, %v857, 0.0
          %v860 = vsel %vm487, %v858, 0.0
          %v861 = vadd.f32 %v859, %v860
          %v862 = vrot.slane %v861, 4
          %v863 = vadd.f32 %v861, %v862
          %v864 = vrot.slane %v863, 2
          %v865 = vadd.f32 %v863, %v864
          %v866 = vrot.slane %v865, 1
          %v867 = vadd.f32 %v865, %v866
          %v868 = vmul.f32 %v700, %v822
          %v869 = vadd.f32 %v867, %v868
          %s870 = sadd.s32 %s711, 3
          %s871 = scalar_lea.vmem [#allocation4], %s870
          %v872 = vld [vmem:[%s871] sm:$0x1]
          %s873 = sadd.s32 %s711, 11
          %s874 = scalar_lea.vmem [#allocation3], %s873
          %v875 = vld [vmem:[%s874] sm:$0x1]
          %s876 = scalar_lea.vmem [#allocation5], %s870
          %v877 = vld [vmem:[%s876] sm:$0x1]
          %v878 = vperm.slane %v877, 0
          %v879 = vmul.f32 %v878, %v688
          %v880 = vmul.f32 %v878, %v689
          %v881 = vsel %vm469, %v879, 0.0
          %882 = vadd.xlane.f32.xlu0 %v881
          %v883 = vpop.xlane.xlu0 %882
          %v884 = vsel %vm469, %v880, 0.0
          %885 = vadd.xlane.f32.xlu0 %v884
          %v886 = vpop.xlane.xlu0 %885
          %v887 = vmul.f32 %v878, %v696
          %v888 = vmul.f32 %v878, %v697
          %v889 = vsel %vm469, %v887, 0.0
          %890 = vadd.xlane.f32.xlu0 %v889
          %v891 = vpop.xlane.xlu0 %890
          %v892 = vsel %vm469, %v888, 0.0
          %893 = vadd.xlane.f32.xlu0 %v892
          %v894 = vpop.xlane.xlu0 %893
          %v895 = vperm.slane %v872, 0
          %v896 = vmul.f32 %v698, %v895
          %v897 = vmul.f32 %v699, %v895
          %v898 = vmul.f32 %v896, 1.442695
          %v899 = vpow.pop %v898
          %v900 = vmul.f32 %v897, 1.442695
          %v901 = vpow.pop %v900
          %v902 = vmul.f32 %v855, %v899
          %v903 = vmul.f32 %v856, %v901
          %v904 = vmul.f32 %v872, %v875
          %v905 = vperm.slane %v904, 0
          %v906 = vmul.f32 %v883, %v905
          %v907 = vmul.f32 %v886, %v905
          %v908 = vadd.f32 %v902, %v906
          %v909 = vadd.f32 %v903, %v907
          %v910 = vmul.f32 %v891, %v908
          %v911 = vmul.f32 %v894, %v909
          %v912 = vsel %vm487, %v910, 0.0
          %v913 = vsel %vm487, %v911, 0.0
          %v914 = vadd.f32 %v912, %v913
          %v915 = vrot.slane %v914, 4
          %v916 = vadd.f32 %v914, %v915
          %v917 = vrot.slane %v916, 2
          %v918 = vadd.f32 %v916, %v917
          %v919 = vrot.slane %v918, 1
          %v920 = vadd.f32 %v918, %v919
          %v921 = vmul.f32 %v700, %v875
          %v922 = vadd.f32 %v920, %v921
          %s923 = sadd.s32 %s711, 4
          %s924 = scalar_lea.vmem [#allocation4], %s923
          %v925 = vld [vmem:[%s924] sm:$0x1]
          %s926 = sadd.s32 %s711, 12
          %s927 = scalar_lea.vmem [#allocation3], %s926
          %v928 = vld [vmem:[%s927] sm:$0x1]
          %s929 = scalar_lea.vmem [#allocation5], %s923
          %v930 = vld [vmem:[%s929] sm:$0x1]
          %v931 = vperm.slane %v930, 0
          %v932 = vmul.f32 %v931, %v688
          %v933 = vmul.f32 %v931, %v689
          %v934 = vsel %vm469, %v932, 0.0
          %935 = vadd.xlane.f32.xlu0 %v934
          %v936 = vpop.xlane.xlu0 %935
          %v937 = vsel %vm469, %v933, 0.0
          %938 = vadd.xlane.f32.xlu0 %v937
          %v939 = vpop.xlane.xlu0 %938
          %v940 = vmul.f32 %v931, %v696
          %v941 = vmul.f32 %v931, %v697
          %v942 = vsel %vm469, %v940, 0.0
          %943 = vadd.xlane.f32.xlu0 %v942
          %v944 = vpop.xlane.xlu0 %943
          %v945 = vsel %vm469, %v941, 0.0
          %946 = vadd.xlane.f32.xlu0 %v945
          %v947 = vpop.xlane.xlu0 %946
          %v948 = vperm.slane %v925, 0
          %v949 = vmul.f32 %v698, %v948
          %v950 = vmul.f32 %v699, %v948
          %v951 = vmul.f32 %v949, 1.442695
          %v952 = vpow.pop %v951
          %v953 = vmul.f32 %v950, 1.442695
          %v954 = vpow.pop %v953
          %v955 = vmul.f32 %v908, %v952
          %v956 = vmul.f32 %v909, %v954
          %v957 = vmul.f32 %v925, %v928
          %v958 = vperm.slane %v957, 0
          %v959 = vmul.f32 %v936, %v958
          %v960 = vmul.f32 %v939, %v958
          %v961 = vadd.f32 %v955, %v959
          %v962 = vadd.f32 %v956, %v960
          %v963 = vmul.f32 %v944, %v961
          %v964 = vmul.f32 %v947, %v962
          %v965 = vsel %vm487, %v963, 0.0
          %v966 = vsel %vm487, %v964, 0.0
          %v967 = vadd.f32 %v965, %v966
          %v968 = vrot.slane %v967, 4
          %v969 = vadd.f32 %v967, %v968
          %v970 = vrot.slane %v969, 2
          %v971 = vadd.f32 %v969, %v970
          %v972 = vrot.slane %v971, 1
          %v973 = vadd.f32 %v971, %v972
          %v974 = vmul.f32 %v700, %v928
          %v975 = vadd.f32 %v973, %v974
          %s976 = sadd.s32 %s711, 5
          %s977 = scalar_lea.vmem [#allocation4], %s976
          %v978 = vld [vmem:[%s977] sm:$0x1]
          %s979 = sadd.s32 %s711, 13
          %s980 = scalar_lea.vmem [#allocation3], %s979
          %v981 = vld [vmem:[%s980] sm:$0x1]
          %s982 = scalar_lea.vmem [#allocation5], %s976
          %v983 = vld [vmem:[%s982] sm:$0x1]
          %v984 = vperm.slane %v983, 0
          %v985 = vmul.f32 %v984, %v688
          %v986 = vmul.f32 %v984, %v689
          %v987 = vsel %vm469, %v985, 0.0
          %988 = vadd.xlane.f32.xlu0 %v987
          %v989 = vpop.xlane.xlu0 %988
          %v990 = vsel %vm469, %v986, 0.0
          %991 = vadd.xlane.f32.xlu0 %v990
          %v992 = vpop.xlane.xlu0 %991
          %v993 = vmul.f32 %v984, %v696
          %v994 = vmul.f32 %v984, %v697
          %v995 = vsel %vm469, %v993, 0.0
          %996 = vadd.xlane.f32.xlu0 %v995
          %v997 = vpop.xlane.xlu0 %996
          %v998 = vsel %vm469, %v994, 0.0
          %999 = vadd.xlane.f32.xlu0 %v998
          %v1000 = vpop.xlane.xlu0 %999
          %v1001 = vperm.slane %v978, 0
          %v1002 = vmul.f32 %v698, %v1001
          %v1003 = vmul.f32 %v699, %v1001
          %v1004 = vmul.f32 %v1002, 1.442695
          %v1005 = vpow.pop %v1004
          %v1006 = vmul.f32 %v1003, 1.442695
          %v1007 = vpow.pop %v1006
          %v1008 = vmul.f32 %v961, %v1005
          %v1009 = vmul.f32 %v962, %v1007
          %v1010 = vmul.f32 %v978, %v981
          %v1011 = vperm.slane %v1010, 0
          %v1012 = vmul.f32 %v989, %v1011
          %v1013 = vmul.f32 %v992, %v1011
          %v1014 = vadd.f32 %v1008, %v1012
          %v1015 = vadd.f32 %v1009, %v1013
          %v1016 = vmul.f32 %v997, %v1014
          %v1017 = vmul.f32 %v1000, %v1015
          %v1018 = vsel %vm487, %v1016, 0.0
          %v1019 = vsel %vm487, %v1017, 0.0
          %v1020 = vadd.f32 %v1018, %v1019
          %v1021 = vrot.slane %v1020, 4
          %v1022 = vadd.f32 %v1020, %v1021
          %v1023 = vrot.slane %v1022, 2
          %v1024 = vadd.f32 %v1022, %v1023
          %v1025 = vrot.slane %v1024, 1
          %v1026 = vadd.f32 %v1024, %v1025
          %v1027 = vmul.f32 %v700, %v981
          %v1028 = vadd.f32 %v1026, %v1027
          %s1029 = sadd.s32 %s711, 6
          %s1030 = scalar_lea.vmem [#allocation4], %s1029
          %v1031 = vld [vmem:[%s1030] sm:$0x1]
          %s1032 = sadd.s32 %s711, 14
          %s1033 = scalar_lea.vmem [#allocation3], %s1032
          %v1034 = vld [vmem:[%s1033] sm:$0x1]
          %s1035 = scalar_lea.vmem [#allocation5], %s1029
          %v1036 = vld [vmem:[%s1035] sm:$0x1]
          %v1037 = vperm.slane %v1036, 0
          %v1038 = vmul.f32 %v1037, %v688
          %v1039 = vmul.f32 %v1037, %v689
          %v1040 = vsel %vm469, %v1038, 0.0
          %1041 = vadd.xlane.f32.xlu0 %v1040
          %v1042 = vpop.xlane.xlu0 %1041
          %v1043 = vsel %vm469, %v1039, 0.0
          %1044 = vadd.xlane.f32.xlu0 %v1043
          %v1045 = vpop.xlane.xlu0 %1044
          %v1046 = vmul.f32 %v1037, %v696
          %v1047 = vmul.f32 %v1037, %v697
          %v1048 = vsel %vm469, %v1046, 0.0
          %1049 = vadd.xlane.f32.xlu0 %v1048
          %v1050 = vpop.xlane.xlu0 %1049
          %v1051 = vsel %vm469, %v1047, 0.0
          %1052 = vadd.xlane.f32.xlu0 %v1051
          %v1053 = vpop.xlane.xlu0 %1052
          %v1054 = vperm.slane %v1031, 0
          %v1055 = vmul.f32 %v698, %v1054
          %v1056 = vmul.f32 %v699, %v1054
          %v1057 = vmul.f32 %v1055, 1.442695
          %v1058 = vpow.pop %v1057
          %v1059 = vmul.f32 %v1056, 1.442695
          %v1060 = vpow.pop %v1059
          %v1061 = vmul.f32 %v1014, %v1058
          %v1062 = vmul.f32 %v1015, %v1060
          %v1063 = vmul.f32 %v1031, %v1034
          %v1064 = vperm.slane %v1063, 0
          %v1065 = vmul.f32 %v1042, %v1064
          %v1066 = vmul.f32 %v1045, %v1064
          %v1067 = vadd.f32 %v1061, %v1065
          %v1068 = vadd.f32 %v1062, %v1066
          %v1069 = vmul.f32 %v1050, %v1067
          %v1070 = vmul.f32 %v1053, %v1068
          %v1071 = vsel %vm487, %v1069, 0.0
          %v1072 = vsel %vm487, %v1070, 0.0
          %v1073 = vadd.f32 %v1071, %v1072
          %v1074 = vrot.slane %v1073, 4
          %v1075 = vadd.f32 %v1073, %v1074
          %v1076 = vrot.slane %v1075, 2
          %v1077 = vadd.f32 %v1075, %v1076
          %v1078 = vrot.slane %v1077, 1
          %v1079 = vadd.f32 %v1077, %v1078
          %v1080 = vmul.f32 %v700, %v1034
          %v1081 = vadd.f32 %v1079, %v1080
          %s1082 = sadd.s32 %s711, 7
          %s1083 = scalar_lea.vmem [#allocation4], %s1082
          %v1084 = vld [vmem:[%s1083] sm:$0x1]
          %s1085 = sadd.s32 %s711, 15
          %s1086 = scalar_lea.vmem [#allocation3], %s1085
          %v1087 = vld [vmem:[%s1086] sm:$0x1]
          %s1088 = scalar_lea.vmem [#allocation5], %s1082
          %v1089 = vld [vmem:[%s1088] sm:$0x1]
          %v1090 = vperm.slane %v1089, 0
          %v1091 = vmul.f32 %v1090, %v688
          %v1092 = vmul.f32 %v1090, %v689
          %v1093 = vsel %vm469, %v1091, 0.0
          %1094 = vadd.xlane.f32.xlu0 %v1093
          %v1095 = vpop.xlane.xlu0 %1094
          %v1096 = vsel %vm469, %v1092, 0.0
          %1097 = vadd.xlane.f32.xlu0 %v1096
          %v1098 = vpop.xlane.xlu0 %1097
          %v1099 = vmul.f32 %v1090, %v696
          %v1100 = vmul.f32 %v1090, %v697
          %v1101 = vsel %vm469, %v1099, 0.0
          %1102 = vadd.xlane.f32.xlu0 %v1101
          %v1103 = vpop.xlane.xlu0 %1102
          %v1104 = vsel %vm469, %v1100, 0.0
          %1105 = vadd.xlane.f32.xlu0 %v1104
          %v1106 = vpop.xlane.xlu0 %1105
          %v1107 = vperm.slane %v1084, 0
          %v1108 = vmul.f32 %v698, %v1107
          %v1109 = vmul.f32 %v699, %v1107
          %v1110 = vmul.f32 %v1108, 1.442695
          %v1111 = vpow.pop %v1110
          %v1112 = vmul.f32 %v1109, 1.442695
          %v1113 = vpow.pop %v1112
          %v1114 = vmul.f32 %v1067, %v1111
          %v1115 = vmul.f32 %v1068, %v1113
          %v1116 = vmul.f32 %v1084, %v1087
          %v1117 = vperm.slane %v1116, 0
          %v1118 = vmul.f32 %v1095, %v1117
          %v1119 = vmul.f32 %v1098, %v1117
          %v1120 = vadd.f32 %v1114, %v1118
          %v1121 = vadd.f32 %v1115, %v1119
          %v1122 = vmul.f32 %v1103, %v1120
          %v1123 = vmul.f32 %v1106, %v1121
          %v1124 = vsel %vm487, %v1122, 0.0
          %v1125 = vsel %vm487, %v1123, 0.0
          %v1126 = vadd.f32 %v1124, %v1125
          %v1127 = vrot.slane %v1126, 4
          %v1128 = vadd.f32 %v1126, %v1127
          %v1129 = vrot.slane %v1128, 2
          %v1130 = vadd.f32 %v1128, %v1129
          %v1131 = vrot.slane %v1130, 1
          %v1132 = vadd.f32 %v1130, %v1131
          %v1133 = vmul.f32 %v700, %v1087
          %v1134 = vadd.f32 %v1132, %v1133
          %v1136 = vrot.slane %v816, 7
          %v1139 = vrot.slane %v869, 6
          %v1142 = vrot.slane %v922, 5
          %v1145 = vrot.slane %v975, 4
          %v1148 = vrot.slane %v1028, 3
          %v1151 = vrot.slane %v1081, 2
          %v1154 = vrot.slane %v1134, 1
          %v1156 = vsel %vm633, %v763, %v1136
          %vm1157 = vcmask 1041408
          %v1158 = vsel %vm1157, %v1156, %v1139
          %vm1159 = vcmask 1042432
          %v1160 = vsel %vm1159, %v1158, %v1142
          %vm1161 = vcmask 1043456
          %v1162 = vsel %vm1161, %v1160, %v1145
          %vm1163 = vcmask 1044480
          %v1164 = vsel %vm1163, %v1162, %v1148
          %vm1165 = vcmask 1045504
          %v1166 = vsel %vm1165, %v1164, %v1151
          %vm1167 = vcmask 1046528
          %v1168 = vsel %vm1167, %v1166, %v1154
          %s1169 = scalar_lea.vmem [#allocation6], %s711
          %1170 = vst.msk [vmem:[%s1169] sm:$0xff] %vm487, %v1168
        $region81: #{tpu_custom_call.1} parent=59 // loop_footer
          %s708 = sadd.s32 1, %s704
        $region82: #{tpu_custom_call.1} parent=59 // loop_footer_branch
          %703 = sbr.rel target = $region78
        $region83: #{tpu_custom_call.1} parent=59 // loop_exit
          _
        %1171 = vst.msk [vmem:[#allocation2] sm:$0xff] %vm487, %v709
        %1172 = vst.msk [vmem:[#allocation2 + $0x8] sm:$0xff] %vm487, %v710
        %v1173 = vld [vmem:[#allocation6] sm:$0xff]
        %v1174 = vld [vmem:[#allocation6 + $0x8] sm:$0xff]
        %v1175 = vsub.f32 0.0, %v483
        %v1176 = vsub.f32 0.0, %v485
        %v1177 = vmul.f32 %v1175, 1.442695
        %v1178 = vpow.pop %v1177
        %v1179 = vmul.f32 %v1176, 1.442695
        %v1180 = vpow.pop %v1179
        %v1181 = vadd.f32 %v1178, 1.0
        %v1182 = vadd.f32 %v1180, 1.0
        %v1183 = vrcp.pop %v1181
        %v1184 = vmul.f32 %v1181, %v1183
        %v1185 = vsub.f32 1.0, %v1184
        %v1186 = vmul.f32 %v1183, %v1185
        %v1187 = vadd.f32 %v1183, %v1186
        %vm1188 = vweird.f32 %v1181
        %vm1189 = vweird.f32 %v1183
        %vm1190 = vmor %vm1188, %vm1189
        %v1191 = vsel %vm1190, %v1183, %v1187
        %v1192 = vand.u32 2147483647, %v1181
        %vm1193 = vcmp.eq.f32.partialorder %v1192, 8.507059e+37
        %v1194 = vand.u32 %v1181, 2147483648
        %v1195 = vor.u32 1.1754944e-38, %v1194
        %v1196 = vsel %vm1193, %v1195, %v1191
        %v1197 = vmul.f32 1.0, %v1196
        %v1198 = vrcp.pop %v1182
        %v1199 = vmul.f32 %v1182, %v1198
        %v1200 = vsub.f32 1.0, %v1199
        %v1201 = vmul.f32 %v1198, %v1200
        %v1202 = vadd.f32 %v1198, %v1201
        %vm1203 = vweird.f32 %v1182
        %vm1204 = vweird.f32 %v1198
        %vm1205 = vmor %vm1203, %vm1204
        %v1206 = vsel %vm1205, %v1198, %v1202
        %v1207 = vand.u32 2147483647, %v1182
        %vm1208 = vcmp.eq.f32.partialorder %v1207, 8.507059e+37
        %v1209 = vand.u32 %v1182, 2147483648
        %v1210 = vor.u32 1.1754944e-38, %v1209
        %v1211 = vsel %vm1208, %v1210, %v1206
        %v1212 = vmul.f32 1.0, %v1211
        %v1213 = vmul.f32 %v483, %v1197
        %v1214 = vmul.f32 %v485, %v1212
        %1217 = vrot.lane.b32.xlu0 %v1213, 64
        %v1218 = vpop.permute.xlu0 %1217
        %1219 = vrot.lane.b32.xlu0 %v1214, 64
        %v1220 = vpop.permute.xlu0 %1219
        %v1223 = vmul.f32 %v1173, %v1218
        %v1224 = vmul.f32 %v1174, %v1220
        %v1225 = vpack.c.bf16 %v1224, %v1223
        %v1226 = vld [vmem:[%s9] sm:$0xf]
        %v1227 = vld [vmem:[%s9 + $0x4] sm:$0xf]
        %v1228 = vld [vmem:[%s9 + $0x8] sm:$0xf]
        %v1229 = vld [vmem:[%s9 + $0xc] sm:$0xf]
        %v1230 = vld [vmem:[%s9 + $0x10] sm:$0xf]
        %v1231 = vld [vmem:[%s9 + $0x14] sm:$0xf]
        %v1232 = vld [vmem:[%s9 + $0x18] sm:$0xf]
        %v1233 = vld [vmem:[%s9 + $0x1c] sm:$0xf]
        %v1242 = vunpack.c.l.b16 %v1226
        %v1243 = vunpack.c.l.b16 %v1227
        %v1244 = vunpack.c.l.b16 %v1228
        %v1245 = vunpack.c.l.b16 %v1229
        %v1246 = vunpack.c.l.b16 %v1230
        %v1247 = vunpack.c.l.b16 %v1231
        %v1248 = vunpack.c.l.b16 %v1232
        %v1249 = vunpack.c.l.b16 %v1233
        %v1250 = vpack.c.b16 %v1243, %v1242
        %v1251 = vpack.c.b16 %v1245, %v1244
        %v1252 = vpack.c.b16 %v1247, %v1246
        %v1253 = vpack.c.b16 %v1249, %v1248
        %v1259 = vsel %vm487, %v1225, 0
        %1261 = vmatpush.bf16.msra.mxu0 0
        %1262 = vmatpush.bf16.msra.mxu0 0
        %1263 = vmatpush.bf16.msra.mxu0 0
        %1264 = vmatpush.bf16.msra.mxu0 0
        %1265 = vmatpush.bf16.msra.mxu0 %v1253
        %1266 = vmatpush.bf16.msra.mxu0 %v1252
        %1267 = vmatpush.bf16.msra.mxu0 %v1251
        %1268 = vmatpush.bf16.msra.mxu0 %v1250
        %1269 = vmatmul.bf16.gmra.mxu0 %v1259
        %v1270 = vpop.f32.mrf.mxu0
        %v1271 = vadd.f32 0.0, %v1270
        %v1272 = vpop.f32.mrf.mxu0
        %v1273 = vadd.f32 0.0, %v1272
        %1274 = vdwg.mxu0
        %1275 = vst.msk [vmem:[%s425] sm:$0xff] %vm469, %v1271
        %1276 = vst.msk [vmem:[%s425 + $0x8] sm:$0xff] %vm469, %v1273
        %s1277 = sand.u32 %s265, 1
        %s1278 = scalar_lea.sflag [#allocation9], %s1277
        %s1279 = sand.u32 %s265, 1
        %s1280 = smul.addr %s1279, 16
        %s1281 = scalar_lea.vmem [#allocation13], %s1280
        // Predicated region
        $region84: #{tpu_custom_call.1} parent=59 // pred_check
          %p1282 = pneg %p275
        $region85: #{tpu_custom_call.1} parent=59 // pred_check_branch
          %1284 = sbr.rel (%p1282) target = $region87
        $region86: #{tpu_custom_call.1} parent=59 // pred_region
          %s1285 = smul.u32 2, %s31
          %1287 = vsyncadd %s1278, 0
          %s1288 = smul.addr %s30, 4
          %s1289 = sadd.s32 %s1285, %s1288
          %s1290 = smul.addr %s1289, 8
          %s1291 = scalar_lea.hbm %s10, %s1290
          %s1292 = sshll.u32 %s1281, 4
          %s1293 = int_to_ptr.vmem [resolvable:$true] %s1292
          %s1294 = sshll.u32 %s1291, 4
          %s1295 = int_to_ptr.hbm [resolvable:$true] %s1294
          %1300 = dma.vmem_to_hbm [thread:$0]  %s1293, 256, %s1295, %s1278, 128, 128, 8
        $region87: #{tpu_custom_call.1} parent=59 // pred_fallthru
          _
      $region60: #{tpu_custom_call.1} parent=5 // pred_fallthru
        _
      %p1301 = scmp.le.s32.totalorder 2, %s21
      // Predicated region
      $region88: #{tpu_custom_call.1} parent=5 // pred_check
        %p1302 = pneg %p1301
      $region89: #{tpu_custom_call.1} parent=5 // pred_check_branch
        %1304 = sbr.rel (%p1302) target = $region91
      $region90: #{tpu_custom_call.1} parent=5 // pred_region
        %s1305 = ssub.s32 %s21, 2
        // Predicated region
        $region92: #{tpu_custom_call.1} parent=90 // pred_check
          %p1306 = pneg %p281
        $region93: #{tpu_custom_call.1} parent=90 // pred_check_branch
          %1308 = sbr.rel (%p1306) target = $region95
        $region94: #{tpu_custom_call.1} parent=90 // pred_region
          %s1309 = sand.u32 %s266, 1
          %s1310 = scalar_lea.sflag [#allocation9], %s1309
          %s1311 = sand.u32 %s266, 1
          %s1312 = smul.addr %s1311, 16
          %s1313 = scalar_lea.vmem [#allocation13], %s1312
          %1315 = dma.done %s1310, 256
        $region95: #{tpu_custom_call.1} parent=90 // pred_fallthru
          _
      $region91: #{tpu_custom_call.1} parent=5 // pred_fallthru
        _
    $region6: #{tpu_custom_call.1} parent=1 // loop_footer
      %s25 = sadd.s32 1, %s21
    $region7: #{tpu_custom_call.1} parent=1 // loop_footer_branch
      %20 = sbr.rel target = $region3
    $region8: #{tpu_custom_call.1} parent=1 // loop_exit
      _
    %1316 = vsyncpa [#allocation8], 1
    %s1317 = scalar_lea.sflag [#allocation8], 1
    %1318 = vsyncpa %s1317, 1
    %1319 = vsyncpa [#allocation11], 1
    %1320 = vsyncpa [#allocation9], 1
    %s1321 = scalar_lea.sflag [#allocation9], 1
    %1322 = vsyncpa %s1321, 1

</llo_original>
